<compile_context>
chip_gen: v5e
topology: v5e:2x2
jax: 0.10.0
libtpu: 0.0.40
codegen_flags: <defaults>
</compile_context>

<pallas_src>
import functools

import jax
import jax.numpy as jnp
from jax import lax
from jax.experimental import pallas as pl
from jax.experimental.pallas import tpu as pltpu


def _round_up(x: int, m: int) -> int:
    return (x + m - 1) // m * m


# ---------------- fused BiLSTM + max-pool + MLP head kernel -----------------


def _bilstm_pool_mlp_kernel(x_ref, wih_ref, bih_ref, whh_ref,
                            w1_ref, b1_ref, w2_ref, b2_ref,
                            pooled_ref, logits_ref,
                            gin_ref):
    """One batch tile.

    x_ref:      (S, TB, D)    bf16 time-major embeddings
    wih_ref:    (D, 8Hp)      bf16 [fwd i,f,g,o | bwd i,f,g,o] input weights
    bih_ref:    (1, 8Hp)      f32  fused b_ih + b_hh, same layout
    whh_ref:    (2Hp, 8Hp)    bf16 block-diagonal [[whh_f, 0], [0, whh_b]]
    w1_ref:     (2Hp, 512)    bf16 dense layer 1 (rows laid out [fwd | bwd])
    b1_ref:     (1, 512)      f32
    w2_ref:     (512, Cp)     bf16 dense layer 2
    b2_ref:     (1, Cp)       f32
    pooled_ref: (TB, 2Hp)     f32 out: max over time of [h_fwd | h_bwd]
    logits_ref: (TB, Cp)      f32 out
    gin_ref:    (S, TB, 8Hp)  f32 scratch (precomputed input-projection gates)
    """
    S, TB, _ = x_ref.shape
    G = wih_ref.shape[1]        # 8 * Hp
    G4 = G // 2                 # 4 * Hp
    Hp2 = whh_ref.shape[0]      # 2 * Hp
    Hp = Hp2 // 2

    # (1) Hoisted input projection: one large MXU contraction for both
    #     directions, bias folded in (broadcast over (S, TB)).
    gin = lax.dot_general(x_ref[...], wih_ref[...],
                          (((2,), (0,)), ((), ())),
                          preferred_element_type=jnp.float32)       # (S,TB,G)
    gin_ref[...] = gin + bih_ref[...]

    def cell(gates, c_prev):
        i = jax.nn.sigmoid(gates[:, 0:Hp])
        f = jax.nn.sigmoid(gates[:, Hp:2 * Hp])
        g = jnp.tanh(gates[:, 2 * Hp:3 * Hp])
        o = jax.nn.sigmoid(gates[:, 3 * Hp:4 * Hp])
        c = f * c_prev + i * g
        h = o * jnp.tanh(c)
        return h, c

    # (2) Serial recurrence: one fused matmul per step drives both directions
    #     (backward direction walks the sequence in reverse via S-1-t).
    #     h / c / running max are loop-carried f32 values.
    def step(t, carry):
        h_prev, c_prev, pooled = carry
        tb = S - 1 - t
        rec = jnp.dot(h_prev.astype(jnp.bfloat16), whh_ref[...],
                      preferred_element_type=jnp.float32)            # (TB,8Hp)
        gates_f = gin_ref[t][:, :G4] + rec[:, :G4]
        gates_b = gin_ref[tb][:, G4:] + rec[:, G4:]

        h_f, c_f = cell(gates_f, c_prev[:, :Hp])
        h_b, c_b = cell(gates_b, c_prev[:, Hp:])

        h_new = jnp.concatenate([h_f, h_b], axis=-1)                 # (TB,2Hp)
        c_new = jnp.concatenate([c_f, c_b], axis=-1)
        # Fused max pooling over time (order independent, so it's fine that
        # the two halves sit at different sequence positions this iteration).
        pooled = jnp.maximum(pooled, h_new)
        return h_new, c_new, pooled

    zero_state = jnp.zeros((TB, Hp2), jnp.float32)
    pooled0 = jnp.full((TB, Hp2), -jnp.inf, jnp.float32)
    unroll = True if S <= 32 else 4
    _, _, pooled = lax.fori_loop(0, S, step, (zero_state, zero_state, pooled0),
                                 unroll=unroll)
    pooled_ref[...] = pooled

    # (3) Dense head fused in: Linear(2H, 512) -> ReLU -> Linear(512, C).
    h1 = jnp.dot(pooled.astype(jnp.bfloat16), w1_ref[...],
                 preferred_element_type=jnp.float32) + b1_ref[...]
    h1 = jnp.maximum(h1, 0.0)
    logits_ref[...] = jnp.dot(h1.astype(jnp.bfloat16), w2_ref[...],
                              preferred_element_type=jnp.float32) + b2_ref[...]


# ------------------------------ forward wrapper ------------------------------


@functools.partial(jax.jit,
                   static_argnames=("hidden_size", "num_classes", "batch_tile"))
def iest_classifier_forward(sequences, packed, *, hidden_size, num_classes,
                            batch_tile=128):
    """sequences: (B, S) int32 token ids -> {'logits', 'sent_reprs'}."""
    B, S = sequences.shape
    H, C = hidden_size, num_classes
    emb = packed["embedding"]                     # (V, D) bf16
    D = emb.shape[1]
    Hp2 = packed["whh"].shape[0]
    Hp = Hp2 // 2
    G = packed["wih"].shape[1]
    Cp = packed["w2"].shape[1]
    MLP = packed["w1"].shape[1]

    # Word embedding lookup directly in time-major order (no transpose pass).
    x = jnp.take(emb, sequences.T, axis=0)        # (S, B, D) bf16
    # word_dropout(p=0.0) -> identity

    # Pad batch to a sublane-friendly tile; shard batch tiles over a parallel
    # grid axis (uses both TensorCores on v7x; harmless on v5e/v6e).
    TB = min(_round_up(B, 8), batch_tile)
    Bp = _round_up(B, TB)
    if Bp != B:
        x = jnp.pad(x, ((0, 0), (0, Bp - B), (0, 0)))

    pooled, logits = pl.pallas_call(
        _bilstm_pool_mlp_kernel,
        out_shape=(jax.ShapeDtypeStruct((Bp, Hp2), jnp.float32),
                   jax.ShapeDtypeStruct((Bp, Cp), jnp.float32)),
        grid_spec=pltpu.PrefetchScalarGridSpec(
            num_scalar_prefetch=0,
            grid=(Bp // TB,),
            in_specs=[
                pl.BlockSpec((S, TB, D), lambda b: (0, b, 0)),      # x
                pl.BlockSpec((D, G), lambda b: (0, 0)),             # wih
                pl.BlockSpec((1, G), lambda b: (0, 0)),             # bih
                pl.BlockSpec((Hp2, G), lambda b: (0, 0)),           # whh
                pl.BlockSpec((Hp2, MLP), lambda b: (0, 0)),         # w1
                pl.BlockSpec((1, MLP), lambda b: (0, 0)),           # b1
                pl.BlockSpec((MLP, Cp), lambda b: (0, 0)),          # w2
                pl.BlockSpec((1, Cp), lambda b: (0, 0)),            # b2
            ],
            out_specs=(pl.BlockSpec((TB, Hp2), lambda b: (b, 0)),
                       pl.BlockSpec((TB, Cp), lambda b: (b, 0))),
            scratch_shapes=[
                pltpu.VMEM((S, TB, G), jnp.float32),   # precomputed gates
            ],
        ),
        compiler_params=pltpu.CompilerParams(
            dimension_semantics=("parallel",)),
    )(x, packed["wih"], packed["bih"], packed["whh"],
      packed["w1"], packed["b1"], packed["w2"], packed["b2"])

    # sent_dropout(p=0.0) -> identity; strip hidden / batch / class padding.
    sent_reprs = jnp.concatenate([pooled[:B, :H], pooled[:B, Hp:Hp + H]],
                                 axis=-1)                          # (B, 2H)
    return {"logits": logits[:B, :C], "sent_reprs": sent_reprs}


# ----------------------- parameter init & packing ---------------------------


def init_raw_params(key, vocab_size, embed_dim, hidden_size, num_classes,
                    mlp_hidden=512):
    """Parameters in PyTorch layout (nn.Embedding / nn.LSTM / nn.Linear)."""
    ks = jax.random.split(key, 13)
    H, D, C = hidden_size, embed_dim, num_classes
    u = lambda k, shape, s=0.1: jax.random.uniform(k, shape, jnp.float32, -s, s)
    return {
        "embedding": u(ks[0], (vocab_size, D)),
        # forward direction (gate order i, f, g, o)
        "w_ih_f": u(ks[1], (4 * H, D)), "w_hh_f": u(ks[2], (4 * H, H)),
        "b_ih_f": u(ks[3], (4 * H,)),   "b_hh_f": u(ks[4], (4 * H,)),
        # backward direction
        "w_ih_b": u(ks[5], (4 * H, D)), "w_hh_b": u(ks[6], (4 * H, H)),
        "b_ih_b": u(ks[7], (4 * H,)),   "b_hh_b": u(ks[8], (4 * H,)),
        # dense head: Linear(2H, 512) -> ReLU -> Linear(512, C)
        "w_fc1": u(ks[9], (mlp_hidden, 2 * H)), "b_fc1": u(ks[10], (mlp_hidden,)),
        "w_fc2": u(ks[11], (C, mlp_hidden)),    "b_fc2": u(ks[12], (C,)),
    }


def prepare_params(raw):
    """Pack/pad PyTorch-layout params into kernel layout (done once).

    * per-gate zero padding so every gate slice is a whole 128-lane tile
      (padded hidden units provably stay 0 through the recurrence)
    * both directions' recurrent weights packed block-diagonally so the
      recurrence is a single (TB, 2Hp) @ (2Hp, 8Hp) matmul per timestep
    * matmul operands stored in bf16, biases kept in f32
    """
    H = raw["w_hh_f"].shape[1]
    C = raw["w_fc2"].shape[0]
    mlp_hidden = raw["w_fc1"].shape[0]
    Hp = _round_up(H, 128)
    Cp = _round_up(C, 128)

    def pad_gate_rows(w, pad_cols=0):
        gates = jnp.split(w, 4, axis=0)
        return jnp.concatenate(
            [jnp.pad(g, ((0, Hp - H), (0, pad_cols))) for g in gates], axis=0)

    def pack_wih(w_ih):       # (4H, D) -> (D, 4Hp)
        return pad_gate_rows(w_ih).T

    def pack_whh(w_hh):       # (4H, H) -> (Hp, 4Hp)
        return pad_gate_rows(w_hh, pad_cols=Hp - H).T

    def pack_bias(b):         # (4H,) -> (4Hp,)
        gates = jnp.split(b, 4)
        return jnp.concatenate([jnp.pad(g, (0, Hp - H)) for g in gates])

    wih = jnp.concatenate([pack_wih(raw["w_ih_f"]), pack_wih(raw["w_ih_b"])],
                          axis=1)                                # (D, 8Hp)
    bih = jnp.concatenate([pack_bias(raw["b_ih_f"] + raw["b_hh_f"]),
                           pack_bias(raw["b_ih_b"] + raw["b_hh_b"])])
    whh_f = pack_whh(raw["w_hh_f"])                              # (Hp, 4Hp)
    whh_b = pack_whh(raw["w_hh_b"])                              # (Hp, 4Hp)
    zeros = jnp.zeros((Hp, 4 * Hp), jnp.float32)
    whh = jnp.concatenate(
        [jnp.concatenate([whh_f, zeros], axis=1),
         jnp.concatenate([zeros, whh_b], axis=1)], axis=0)       # (2Hp, 8Hp)

    w1t = raw["w_fc1"].T                                         # (2H, 512)
    w1 = jnp.zeros((2 * Hp, mlp_hidden), jnp.float32)
    w1 = w1.at[:H].set(w1t[:H]).at[Hp:Hp + H].set(w1t[H:])       # (2Hp, 512)
    w2 = jnp.pad(raw["w_fc2"].T, ((0, 0), (0, Cp - C)))          # (512, Cp)
    b2 = jnp.pad(raw["b_fc2"], (0, Cp - C))

    bf16 = jnp.bfloat16
    return {
        "embedding": raw["embedding"].astype(bf16),
        "wih": wih.astype(bf16),
        "bih": bih.reshape(1, -1).astype(jnp.float32),
        "whh": whh.astype(bf16),
        "w1": w1.astype(bf16),
        "b1": raw["b_fc1"].reshape(1, -1).astype(jnp.float32),
        "w2": w2.astype(bf16),
        "b2": b2.reshape(1, -1).astype(jnp.float32),
    }


# ---------------------------------- demo -------------------------------------


if __name__ == "__main__":
    B, S = 2, 8            # batch, sentence length
    VOCAB = 50
    D = 32                 # word embedding dim
    H = 32                 # LSTM hidden size per direction
    C = 6                  # num classes

    key = jax.random.PRNGKey(0)
    pkey, dkey = jax.random.split(key)
    raw = init_raw_params(pkey, VOCAB, D, H, C)
    packed = prepare_params(raw)

    sequences = jax.random.randint(dkey, (B, S), 0, VOCAB, dtype=jnp.int32)

    out = iest_classifier_forward(sequences, packed,
                                  hidden_size=H, num_classes=C)
    jax.block_until_ready(out)

    assert out["logits"].shape == (B, C)
    assert out["sent_reprs"].shape == (B, 2 * H)
    assert bool(jnp.all(jnp.isfinite(out["logits"])))
    assert bool(jnp.all(jnp.isfinite(out["sent_reprs"])))
    print("KERNEL_OK")
</pallas_src>

<mosaic_0001>
module attributes {stable_mosaic.version = 11 : i64} {
  func.func @_bilstm_pool_mlp_kernel(%arg0: i32, %arg1: memref<8x8x32xbf16, #tpu.memory_space<vmem>>, %arg2: memref<32x1024xbf16, #tpu.memory_space<vmem>>, %arg3: memref<1x1024xf32, #tpu.memory_space<vmem>>, %arg4: memref<256x1024xbf16, #tpu.memory_space<vmem>>, %arg5: memref<256x512xbf16, #tpu.memory_space<vmem>>, %arg6: memref<1x512xf32, #tpu.memory_space<vmem>>, %arg7: memref<512x128xbf16, #tpu.memory_space<vmem>>, %arg8: memref<1x128xf32, #tpu.memory_space<vmem>>, %arg9: memref<8x256xf32, #tpu.memory_space<vmem>>, %arg10: memref<8x128xf32, #tpu.memory_space<vmem>>, %arg11: memref<8x8x1024xf32, #tpu.memory_space<vmem>>) attributes {dimension_semantics = [#tpu.dimension_semantics<parallel>], iteration_bounds = array<i64: 1>, scalar_prefetch = 0 : i64, scratch_operands = 1 : i64, tpu.core_type = #tpu.core_type<tc>, window_params = [{transform_indices = @transform_0, window_bounds = array<i64: 8, 8, 32>}, {pipeline_mode = #tpu.pipeline_mode<synchronous>, transform_indices = @transform_1, window_bounds = array<i64: 32, 1024>}, {pipeline_mode = #tpu.pipeline_mode<synchronous>, transform_indices = @transform_2, window_bounds = array<i64: 1, 1024>}, {pipeline_mode = #tpu.pipeline_mode<synchronous>, transform_indices = @transform_3, window_bounds = array<i64: 256, 1024>}, {pipeline_mode = #tpu.pipeline_mode<synchronous>, transform_indices = @transform_4, window_bounds = array<i64: 256, 512>}, {pipeline_mode = #tpu.pipeline_mode<synchronous>, transform_indices = @transform_5, window_bounds = array<i64: 1, 512>}, {pipeline_mode = #tpu.pipeline_mode<synchronous>, transform_indices = @transform_6, window_bounds = array<i64: 512, 128>}, {pipeline_mode = #tpu.pipeline_mode<synchronous>, transform_indices = @transform_7, window_bounds = array<i64: 1, 128>}, {transform_indices = @transform_8, window_bounds = array<i64: 8, 256>}, {transform_indices = @transform_9, window_bounds = array<i64: 8, 128>}]} {
    %c0 = arith.constant 0 : index
    %c0_0 = arith.constant 0 : index
    %c0_1 = arith.constant 0 : index
    %0 = vector.load %arg1[%c0, %c0_0, %c0_1] : memref<8x8x32xbf16, #tpu.memory_space<vmem>>, vector<8x8x32xbf16>
    %c0_2 = arith.constant 0 : index
    %c0_3 = arith.constant 0 : index
    %1 = vector.load %arg2[%c0_2, %c0_3] : memref<32x1024xbf16, #tpu.memory_space<vmem>>, vector<32x1024xbf16>
    %cst = arith.constant dense<0.000000e+00> : vector<8x8x1024xf32>
    %2 = tpu.matmul %0, %1, %cst {dimension_numbers = #tpu.dot_dimension_numbers<[2], [0], [0, 1], [1], [0, 0, 0, 1, 1, 1], [], []>} : vector<8x8x32xbf16>, vector<32x1024xbf16>, vector<8x8x1024xf32> -> vector<8x8x1024xf32>
    %c0_4 = arith.constant 0 : index
    %c0_5 = arith.constant 0 : index
    %3 = vector.load %arg3[%c0_4, %c0_5] : memref<1x1024xf32, #tpu.memory_space<vmem>>, vector<1x1024xf32>
    %4 = vector.shape_cast %3 : vector<1x1024xf32> to vector<1x1x1024xf32>
    %5 = vector.broadcast %4 : vector<1x1x1024xf32> to vector<8x8x1024xf32>
    %6 = arith.addf %2, %5 : vector<8x8x1024xf32>
    %c0_6 = arith.constant 0 : index
    %c0_7 = arith.constant 0 : index
    %c0_8 = arith.constant 0 : index
    %7 = vector.load %arg11[%c0_6, %c0_7, %c0_8] : memref<8x8x1024xf32, #tpu.memory_space<vmem>>, vector<8x8x1024xf32>
    tpu.vector_store %arg11[%c0_6, %c0_7, %c0_8], %6 {strides = array<i32>} : memref<8x8x1024xf32, #tpu.memory_space<vmem>>, vector<8x8x1024xf32>,
    %cst_9 = arith.constant 0.000000e+00 : f32
    %8 = vector.broadcast %cst_9 : f32 to vector<8x256xf32>
    %cst_10 = arith.constant 0xFF800000 : f32
    %9 = vector.broadcast %cst_10 : f32 to vector<8x256xf32>
    %c0_i32 = arith.constant 0 : i32
    %c7_i32 = arith.constant 7 : i32
    %10 = arith.subi %c7_i32, %c0_i32 : i32
    %11 = arith.truncf %8 : vector<8x256xf32> to vector<8x256xbf16>
    %c0_11 = arith.constant 0 : index
    %c0_12 = arith.constant 0 : index
    %12 = vector.load %arg4[%c0_11, %c0_12] : memref<256x1024xbf16, #tpu.memory_space<vmem>>, vector<256x1024xbf16>
    %cst_13 = arith.constant dense<0.000000e+00> : vector<8x1024xf32>
    %13 = tpu.matmul %11, %12, %cst_13 {dimension_numbers = #tpu.dot_dimension_numbers<[1], [0], [0], [1], [0, 0, 1, 1], [], []>} : vector<8x256xbf16>, vector<256x1024xbf16>, vector<8x1024xf32> -> vector<8x1024xf32>
    %14 = arith.index_cast %c0_i32 : i32 to index
    %c0_14 = arith.constant 0 : index
    %c0_15 = arith.constant 0 : index
    %15 = vector.load %arg11[%14, %c0_14, %c0_15] : memref<8x8x1024xf32, #tpu.memory_space<vmem>>, vector<1x8x1024xf32>
    %16 = vector.shape_cast %15 : vector<1x8x1024xf32> to vector<8x1024xf32>
    %17 = vector.extract_strided_slice %16 {offsets = [0, 0], sizes = [8, 512], strides = [1, 1]} : vector<8x1024xf32> to vector<8x512xf32>
    %18 = vector.extract_strided_slice %13 {offsets = [0, 0], sizes = [8, 512], strides = [1, 1]} : vector<8x1024xf32> to vector<8x512xf32>
    %19 = arith.addf %17, %18 : vector<8x512xf32>
    %20 = arith.index_cast %10 : i32 to index
    %c0_16 = arith.constant 0 : index
    %c0_17 = arith.constant 0 : index
    %21 = vector.load %arg11[%20, %c0_16, %c0_17] : memref<8x8x1024xf32, #tpu.memory_space<vmem>>, vector<1x8x1024xf32>
    %22 = vector.shape_cast %21 : vector<1x8x1024xf32> to vector<8x1024xf32>
    %23 = vector.extract_strided_slice %22 {offsets = [0, 512], sizes = [8, 512], strides = [1, 1]} : vector<8x1024xf32> to vector<8x512xf32>
    %24 = vector.extract_strided_slice %13 {offsets = [0, 512], sizes = [8, 512], strides = [1, 1]} : vector<8x1024xf32> to vector<8x512xf32>
    %25 = arith.addf %23, %24 : vector<8x512xf32>
    %26 = vector.extract_strided_slice %8 {offsets = [0, 0], sizes = [8, 128], strides = [1, 1]} : vector<8x256xf32> to vector<8x128xf32>
    %27 = vector.extract_strided_slice %19 {offsets = [0, 0], sizes = [8, 128], strides = [1, 1]} : vector<8x512xf32> to vector<8x128xf32>
    %28 = arith.negf %27 : vector<8x128xf32>
    %29 = math.exp %28 : vector<8x128xf32>
    %cst_18 = arith.constant 1.000000e+00 : f32
    %30 = vector.broadcast %cst_18 : f32 to vector<8x128xf32>
    %31 = arith.addf %30, %29 : vector<8x128xf32>
    %32 = arith.divf %30, %31 : vector<8x128xf32>
    %33 = vector.extract_strided_slice %19 {offsets = [0, 128], sizes = [8, 128], strides = [1, 1]} : vector<8x512xf32> to vector<8x128xf32>
    %34 = arith.negf %33 : vector<8x128xf32>
    %35 = math.exp %34 : vector<8x128xf32>
    %cst_19 = arith.constant 1.000000e+00 : f32
    %36 = vector.broadcast %cst_19 : f32 to vector<8x128xf32>
    %37 = arith.addf %36, %35 : vector<8x128xf32>
    %38 = arith.divf %36, %37 : vector<8x128xf32>
    %39 = vector.extract_strided_slice %19 {offsets = [0, 256], sizes = [8, 128], strides = [1, 1]} : vector<8x512xf32> to vector<8x128xf32>
    %40 = math.tanh %39 : vector<8x128xf32>
    %41 = vector.extract_strided_slice %19 {offsets = [0, 384], sizes = [8, 128], strides = [1, 1]} : vector<8x512xf32> to vector<8x128xf32>
    %42 = arith.negf %41 : vector<8x128xf32>
    %43 = math.exp %42 : vector<8x128xf32>
    %cst_20 = arith.constant 1.000000e+00 : f32
    %44 = vector.broadcast %cst_20 : f32 to vector<8x128xf32>
    %45 = arith.addf %44, %43 : vector<8x128xf32>
    %46 = arith.divf %44, %45 : vector<8x128xf32>
    %47 = arith.mulf %38, %26 : vector<8x128xf32>
    %48 = arith.mulf %32, %40 : vector<8x128xf32>
    %49 = arith.addf %47, %48 : vector<8x128xf32>
    %50 = math.tanh %49 : vector<8x128xf32>
    %51 = arith.mulf %46, %50 : vector<8x128xf32>
    %52 = vector.extract_strided_slice %8 {offsets = [0, 128], sizes = [8, 128], strides = [1, 1]} : vector<8x256xf32> to vector<8x128xf32>
    %53 = vector.extract_strided_slice %25 {offsets = [0, 0], sizes = [8, 128], strides = [1, 1]} : vector<8x512xf32> to vector<8x128xf32>
    %54 = arith.negf %53 : vector<8x128xf32>
    %55 = math.exp %54 : vector<8x128xf32>
    %cst_21 = arith.constant 1.000000e+00 : f32
    %56 = vector.broadcast %cst_21 : f32 to vector<8x128xf32>
    %57 = arith.addf %56, %55 : vector<8x128xf32>
    %58 = arith.divf %56, %57 : vector<8x128xf32>
    %59 = vector.extract_strided_slice %25 {offsets = [0, 128], sizes = [8, 128], strides = [1, 1]} : vector<8x512xf32> to vector<8x128xf32>
    %60 = arith.negf %59 : vector<8x128xf32>
    %61 = math.exp %60 : vector<8x128xf32>
    %cst_22 = arith.constant 1.000000e+00 : f32
    %62 = vector.broadcast %cst_22 : f32 to vector<8x128xf32>
    %63 = arith.addf %62, %61 : vector<8x128xf32>
    %64 = arith.divf %62, %63 : vector<8x128xf32>
    %65 = vector.extract_strided_slice %25 {offsets = [0, 256], sizes = [8, 128], strides = [1, 1]} : vector<8x512xf32> to vector<8x128xf32>
    %66 = math.tanh %65 : vector<8x128xf32>
    %67 = vector.extract_strided_slice %25 {offsets = [0, 384], sizes = [8, 128], strides = [1, 1]} : vector<8x512xf32> to vector<8x128xf32>
    %68 = arith.negf %67 : vector<8x128xf32>
    %69 = math.exp %68 : vector<8x128xf32>
    %cst_23 = arith.constant 1.000000e+00 : f32
    %70 = vector.broadcast %cst_23 : f32 to vector<8x128xf32>
    %71 = arith.addf %70, %69 : vector<8x128xf32>
    %72 = arith.divf %70, %71 : vector<8x128xf32>
    %73 = arith.mulf %64, %52 : vector<8x128xf32>
    %74 = arith.mulf %58, %66 : vector<8x128xf32>
    %75 = arith.addf %73, %74 : vector<8x128xf32>
    %76 = math.tanh %75 : vector<8x128xf32>
    %77 = arith.mulf %72, %76 : vector<8x128xf32>
    %78 = tpu.concatenate %51, %77 in 1 : vector<8x128xf32>, vector<8x128xf32> -> vector<8x256xf32>
    %79 = tpu.concatenate %49, %75 in 1 : vector<8x128xf32>, vector<8x128xf32> -> vector<8x256xf32>
    %80 = arith.maximumf %9, %78 : vector<8x256xf32>
    %c1_i32 = arith.constant 1 : i32
    %c7_i32_24 = arith.constant 7 : i32
    %81 = arith.subi %c7_i32_24, %c1_i32 : i32
    %82 = arith.truncf %78 : vector<8x256xf32> to vector<8x256xbf16>
    %c0_25 = arith.constant 0 : index
    %c0_26 = arith.constant 0 : index
    %83 = vector.load %arg4[%c0_25, %c0_26] : memref<256x1024xbf16, #tpu.memory_space<vmem>>, vector<256x1024xbf16>
    %cst_27 = arith.constant dense<0.000000e+00> : vector<8x1024xf32>
    %84 = tpu.matmul %82, %83, %cst_27 {dimension_numbers = #tpu.dot_dimension_numbers<[1], [0], [0], [1], [0, 0, 1, 1], [], []>} : vector<8x256xbf16>, vector<256x1024xbf16>, vector<8x1024xf32> -> vector<8x1024xf32>
    %85 = arith.index_cast %c1_i32 : i32 to index
    %c0_28 = arith.constant 0 : index
    %c0_29 = arith.constant 0 : index
    %86 = vector.load %arg11[%85, %c0_28, %c0_29] : memref<8x8x1024xf32, #tpu.memory_space<vmem>>, vector<1x8x1024xf32>
    %87 = vector.shape_cast %86 : vector<1x8x1024xf32> to vector<8x1024xf32>
    %88 = vector.extract_strided_slice %87 {offsets = [0, 0], sizes = [8, 512], strides = [1, 1]} : vector<8x1024xf32> to vector<8x512xf32>
    %89 = vector.extract_strided_slice %84 {offsets = [0, 0], sizes = [8, 512], strides = [1, 1]} : vector<8x1024xf32> to vector<8x512xf32>
    %90 = arith.addf %88, %89 : vector<8x512xf32>
    %91 = arith.index_cast %81 : i32 to index
    %c0_30 = arith.constant 0 : index
    %c0_31 = arith.constant 0 : index
    %92 = vector.load %arg11[%91, %c0_30, %c0_31] : memref<8x8x1024xf32, #tpu.memory_space<vmem>>, vector<1x8x1024xf32>
    %93 = vector.shape_cast %92 : vector<1x8x1024xf32> to vector<8x1024xf32>
    %94 = vector.extract_strided_slice %93 {offsets = [0, 512], sizes = [8, 512], strides = [1, 1]} : vector<8x1024xf32> to vector<8x512xf32>
    %95 = vector.extract_strided_slice %84 {offsets = [0, 512], sizes = [8, 512], strides = [1, 1]} : vector<8x1024xf32> to vector<8x512xf32>
    %96 = arith.addf %94, %95 : vector<8x512xf32>
    %97 = vector.extract_strided_slice %79 {offsets = [0, 0], sizes = [8, 128], strides = [1, 1]} : vector<8x256xf32> to vector<8x128xf32>
    %98 = vector.extract_strided_slice %90 {offsets = [0, 0], sizes = [8, 128], strides = [1, 1]} : vector<8x512xf32> to vector<8x128xf32>
    %99 = arith.negf %98 : vector<8x128xf32>
    %100 = math.exp %99 : vector<8x128xf32>
    %cst_32 = arith.constant 1.000000e+00 : f32
    %101 = vector.broadcast %cst_32 : f32 to vector<8x128xf32>
    %102 = arith.addf %101, %100 : vector<8x128xf32>
    %103 = arith.divf %101, %102 : vector<8x128xf32>
    %104 = vector.extract_strided_slice %90 {offsets = [0, 128], sizes = [8, 128], strides = [1, 1]} : vector<8x512xf32> to vector<8x128xf32>
    %105 = arith.negf %104 : vector<8x128xf32>
    %106 = math.exp %105 : vector<8x128xf32>
    %cst_33 = arith.constant 1.000000e+00 : f32
    %107 = vector.broadcast %cst_33 : f32 to vector<8x128xf32>
    %108 = arith.addf %107, %106 : vector<8x128xf32>
    %109 = arith.divf %107, %108 : vector<8x128xf32>
    %110 = vector.extract_strided_slice %90 {offsets = [0, 256], sizes = [8, 128], strides = [1, 1]} : vector<8x512xf32> to vector<8x128xf32>
    %111 = math.tanh %110 : vector<8x128xf32>
    %112 = vector.extract_strided_slice %90 {offsets = [0, 384], sizes = [8, 128], strides = [1, 1]} : vector<8x512xf32> to vector<8x128xf32>
    %113 = arith.negf %112 : vector<8x128xf32>
    %114 = math.exp %113 : vector<8x128xf32>
    %cst_34 = arith.constant 1.000000e+00 : f32
    %115 = vector.broadcast %cst_34 : f32 to vector<8x128xf32>
    %116 = arith.addf %115, %114 : vector<8x128xf32>
    %117 = arith.divf %115, %116 : vector<8x128xf32>
    %118 = arith.mulf %109, %97 : vector<8x128xf32>
    %119 = arith.mulf %103, %111 : vector<8x128xf32>
    %120 = arith.addf %118, %119 : vector<8x128xf32>
    %121 = math.tanh %120 : vector<8x128xf32>
    %122 = arith.mulf %117, %121 : vector<8x128xf32>
    %123 = vector.extract_strided_slice %79 {offsets = [0, 128], sizes = [8, 128], strides = [1, 1]} : vector<8x256xf32> to vector<8x128xf32>
    %124 = vector.extract_strided_slice %96 {offsets = [0, 0], sizes = [8, 128], strides = [1, 1]} : vector<8x512xf32> to vector<8x128xf32>
    %125 = arith.negf %124 : vector<8x128xf32>
    %126 = math.exp %125 : vector<8x128xf32>
    %cst_35 = arith.constant 1.000000e+00 : f32
    %127 = vector.broadcast %cst_35 : f32 to vector<8x128xf32>
    %128 = arith.addf %127, %126 : vector<8x128xf32>
    %129 = arith.divf %127, %128 : vector<8x128xf32>
    %130 = vector.extract_strided_slice %96 {offsets = [0, 128], sizes = [8, 128], strides = [1, 1]} : vector<8x512xf32> to vector<8x128xf32>
    %131 = arith.negf %130 : vector<8x128xf32>
    %132 = math.exp %131 : vector<8x128xf32>
    %cst_36 = arith.constant 1.000000e+00 : f32
    %133 = vector.broadcast %cst_36 : f32 to vector<8x128xf32>
    %134 = arith.addf %133, %132 : vector<8x128xf32>
    %135 = arith.divf %133, %134 : vector<8x128xf32>
    %136 = vector.extract_strided_slice %96 {offsets = [0, 256], sizes = [8, 128], strides = [1, 1]} : vector<8x512xf32> to vector<8x128xf32>
    %137 = math.tanh %136 : vector<8x128xf32>
    %138 = vector.extract_strided_slice %96 {offsets = [0, 384], sizes = [8, 128], strides = [1, 1]} : vector<8x512xf32> to vector<8x128xf32>
    %139 = arith.negf %138 : vector<8x128xf32>
    %140 = math.exp %139 : vector<8x128xf32>
    %cst_37 = arith.constant 1.000000e+00 : f32
    %141 = vector.broadcast %cst_37 : f32 to vector<8x128xf32>
    %142 = arith.addf %141, %140 : vector<8x128xf32>
    %143 = arith.divf %141, %142 : vector<8x128xf32>
    %144 = arith.mulf %135, %123 : vector<8x128xf32>
    %145 = arith.mulf %129, %137 : vector<8x128xf32>
    %146 = arith.addf %144, %145 : vector<8x128xf32>
    %147 = math.tanh %146 : vector<8x128xf32>
    %148 = arith.mulf %143, %147 : vector<8x128xf32>
    %149 = tpu.concatenate %122, %148 in 1 : vector<8x128xf32>, vector<8x128xf32> -> vector<8x256xf32>
    %150 = tpu.concatenate %120, %146 in 1 : vector<8x128xf32>, vector<8x128xf32> -> vector<8x256xf32>
    %151 = arith.maximumf %80, %149 : vector<8x256xf32>
    %c2_i32 = arith.constant 2 : i32
    %c7_i32_38 = arith.constant 7 : i32
    %152 = arith.subi %c7_i32_38, %c2_i32 : i32
    %153 = arith.truncf %149 : vector<8x256xf32> to vector<8x256xbf16>
    %c0_39 = arith.constant 0 : index
    %c0_40 = arith.constant 0 : index
    %154 = vector.load %arg4[%c0_39, %c0_40] : memref<256x1024xbf16, #tpu.memory_space<vmem>>, vector<256x1024xbf16>
    %cst_41 = arith.constant dense<0.000000e+00> : vector<8x1024xf32>
    %155 = tpu.matmul %153, %154, %cst_41 {dimension_numbers = #tpu.dot_dimension_numbers<[1], [0], [0], [1], [0, 0, 1, 1], [], []>} : vector<8x256xbf16>, vector<256x1024xbf16>, vector<8x1024xf32> -> vector<8x1024xf32>
    %156 = arith.index_cast %c2_i32 : i32 to index
    %c0_42 = arith.constant 0 : index
    %c0_43 = arith.constant 0 : index
    %157 = vector.load %arg11[%156, %c0_42, %c0_43] : memref<8x8x1024xf32, #tpu.memory_space<vmem>>, vector<1x8x1024xf32>
    %158 = vector.shape_cast %157 : vector<1x8x1024xf32> to vector<8x1024xf32>
    %159 = vector.extract_strided_slice %158 {offsets = [0, 0], sizes = [8, 512], strides = [1, 1]} : vector<8x1024xf32> to vector<8x512xf32>
    %160 = vector.extract_strided_slice %155 {offsets = [0, 0], sizes = [8, 512], strides = [1, 1]} : vector<8x1024xf32> to vector<8x512xf32>
    %161 = arith.addf %159, %160 : vector<8x512xf32>
    %162 = arith.index_cast %152 : i32 to index
    %c0_44 = arith.constant 0 : index
    %c0_45 = arith.constant 0 : index
    %163 = vector.load %arg11[%162, %c0_44, %c0_45] : memref<8x8x1024xf32, #tpu.memory_space<vmem>>, vector<1x8x1024xf32>
    %164 = vector.shape_cast %163 : vector<1x8x1024xf32> to vector<8x1024xf32>
    %165 = vector.extract_strided_slice %164 {offsets = [0, 512], sizes = [8, 512], strides = [1, 1]} : vector<8x1024xf32> to vector<8x512xf32>
    %166 = vector.extract_strided_slice %155 {offsets = [0, 512], sizes = [8, 512], strides = [1, 1]} : vector<8x1024xf32> to vector<8x512xf32>
    %167 = arith.addf %165, %166 : vector<8x512xf32>
    %168 = vector.extract_strided_slice %150 {offsets = [0, 0], sizes = [8, 128], strides = [1, 1]} : vector<8x256xf32> to vector<8x128xf32>
    %169 = vector.extract_strided_slice %161 {offsets = [0, 0], sizes = [8, 128], strides = [1, 1]} : vector<8x512xf32> to vector<8x128xf32>
    %170 = arith.negf %169 : vector<8x128xf32>
    %171 = math.exp %170 : vector<8x128xf32>
    %cst_46 = arith.constant 1.000000e+00 : f32
    %172 = vector.broadcast %cst_46 : f32 to vector<8x128xf32>
    %173 = arith.addf %172, %171 : vector<8x128xf32>
    %174 = arith.divf %172, %173 : vector<8x128xf32>
    %175 = vector.extract_strided_slice %161 {offsets = [0, 128], sizes = [8, 128], strides = [1, 1]} : vector<8x512xf32> to vector<8x128xf32>
    %176 = arith.negf %175 : vector<8x128xf32>
    %177 = math.exp %176 : vector<8x128xf32>
    %cst_47 = arith.constant 1.000000e+00 : f32
    %178 = vector.broadcast %cst_47 : f32 to vector<8x128xf32>
    %179 = arith.addf %178, %177 : vector<8x128xf32>
    %180 = arith.divf %178, %179 : vector<8x128xf32>
    %181 = vector.extract_strided_slice %161 {offsets = [0, 256], sizes = [8, 128], strides = [1, 1]} : vector<8x512xf32> to vector<8x128xf32>
    %182 = math.tanh %181 : vector<8x128xf32>
    %183 = vector.extract_strided_slice %161 {offsets = [0, 384], sizes = [8, 128], strides = [1, 1]} : vector<8x512xf32> to vector<8x128xf32>
    %184 = arith.negf %183 : vector<8x128xf32>
    %185 = math.exp %184 : vector<8x128xf32>
    %cst_48 = arith.constant 1.000000e+00 : f32
    %186 = vector.broadcast %cst_48 : f32 to vector<8x128xf32>
    %187 = arith.addf %186, %185 : vector<8x128xf32>
    %188 = arith.divf %186, %187 : vector<8x128xf32>
    %189 = arith.mulf %180, %168 : vector<8x128xf32>
    %190 = arith.mulf %174, %182 : vector<8x128xf32>
    %191 = arith.addf %189, %190 : vector<8x128xf32>
    %192 = math.tanh %191 : vector<8x128xf32>
    %193 = arith.mulf %188, %192 : vector<8x128xf32>
    %194 = vector.extract_strided_slice %150 {offsets = [0, 128], sizes = [8, 128], strides = [1, 1]} : vector<8x256xf32> to vector<8x128xf32>
    %195 = vector.extract_strided_slice %167 {offsets = [0, 0], sizes = [8, 128], strides = [1, 1]} : vector<8x512xf32> to vector<8x128xf32>
    %196 = arith.negf %195 : vector<8x128xf32>
    %197 = math.exp %196 : vector<8x128xf32>
    %cst_49 = arith.constant 1.000000e+00 : f32
    %198 = vector.broadcast %cst_49 : f32 to vector<8x128xf32>
    %199 = arith.addf %198, %197 : vector<8x128xf32>
    %200 = arith.divf %198, %199 : vector<8x128xf32>
    %201 = vector.extract_strided_slice %167 {offsets = [0, 128], sizes = [8, 128], strides = [1, 1]} : vector<8x512xf32> to vector<8x128xf32>
    %202 = arith.negf %201 : vector<8x128xf32>
    %203 = math.exp %202 : vector<8x128xf32>
    %cst_50 = arith.constant 1.000000e+00 : f32
    %204 = vector.broadcast %cst_50 : f32 to vector<8x128xf32>
    %205 = arith.addf %204, %203 : vector<8x128xf32>
    %206 = arith.divf %204, %205 : vector<8x128xf32>
    %207 = vector.extract_strided_slice %167 {offsets = [0, 256], sizes = [8, 128], strides = [1, 1]} : vector<8x512xf32> to vector<8x128xf32>
    %208 = math.tanh %207 : vector<8x128xf32>
    %209 = vector.extract_strided_slice %167 {offsets = [0, 384], sizes = [8, 128], strides = [1, 1]} : vector<8x512xf32> to vector<8x128xf32>
    %210 = arith.negf %209 : vector<8x128xf32>
    %211 = math.exp %210 : vector<8x128xf32>
    %cst_51 = arith.constant 1.000000e+00 : f32
    %212 = vector.broadcast %cst_51 : f32 to vector<8x128xf32>
    %213 = arith.addf %212, %211 : vector<8x128xf32>
    %214 = arith.divf %212, %213 : vector<8x128xf32>
    %215 = arith.mulf %206, %194 : vector<8x128xf32>
    %216 = arith.mulf %200, %208 : vector<8x128xf32>
    %217 = arith.addf %215, %216 : vector<8x128xf32>
    %218 = math.tanh %217 : vector<8x128xf32>
    %219 = arith.mulf %214, %218 : vector<8x128xf32>
    %220 = tpu.concatenate %193, %219 in 1 : vector<8x128xf32>, vector<8x128xf32> -> vector<8x256xf32>
    %221 = tpu.concatenate %191, %217 in 1 : vector<8x128xf32>, vector<8x128xf32> -> vector<8x256xf32>
    %222 = arith.maximumf %151, %220 : vector<8x256xf32>
    %c3_i32 = arith.constant 3 : i32
    %c7_i32_52 = arith.constant 7 : i32
    %223 = arith.subi %c7_i32_52, %c3_i32 : i32
    %224 = arith.truncf %220 : vector<8x256xf32> to vector<8x256xbf16>
    %c0_53 = arith.constant 0 : index
    %c0_54 = arith.constant 0 : index
    %225 = vector.load %arg4[%c0_53, %c0_54] : memref<256x1024xbf16, #tpu.memory_space<vmem>>, vector<256x1024xbf16>
    %cst_55 = arith.constant dense<0.000000e+00> : vector<8x1024xf32>
    %226 = tpu.matmul %224, %225, %cst_55 {dimension_numbers = #tpu.dot_dimension_numbers<[1], [0], [0], [1], [0, 0, 1, 1], [], []>} : vector<8x256xbf16>, vector<256x1024xbf16>, vector<8x1024xf32> -> vector<8x1024xf32>
    %227 = arith.index_cast %c3_i32 : i32 to index
    %c0_56 = arith.constant 0 : index
    %c0_57 = arith.constant 0 : index
    %228 = vector.load %arg11[%227, %c0_56, %c0_57] : memref<8x8x1024xf32, #tpu.memory_space<vmem>>, vector<1x8x1024xf32>
    %229 = vector.shape_cast %228 : vector<1x8x1024xf32> to vector<8x1024xf32>
    %230 = vector.extract_strided_slice %229 {offsets = [0, 0], sizes = [8, 512], strides = [1, 1]} : vector<8x1024xf32> to vector<8x512xf32>
    %231 = vector.extract_strided_slice %226 {offsets = [0, 0], sizes = [8, 512], strides = [1, 1]} : vector<8x1024xf32> to vector<8x512xf32>
    %232 = arith.addf %230, %231 : vector<8x512xf32>
    %233 = arith.index_cast %223 : i32 to index
    %c0_58 = arith.constant 0 : index
    %c0_59 = arith.constant 0 : index
    %234 = vector.load %arg11[%233, %c0_58, %c0_59] : memref<8x8x1024xf32, #tpu.memory_space<vmem>>, vector<1x8x1024xf32>
    %235 = vector.shape_cast %234 : vector<1x8x1024xf32> to vector<8x1024xf32>
    %236 = vector.extract_strided_slice %235 {offsets = [0, 512], sizes = [8, 512], strides = [1, 1]} : vector<8x1024xf32> to vector<8x512xf32>
    %237 = vector.extract_strided_slice %226 {offsets = [0, 512], sizes = [8, 512], strides = [1, 1]} : vector<8x1024xf32> to vector<8x512xf32>
    %238 = arith.addf %236, %237 : vector<8x512xf32>
    %239 = vector.extract_strided_slice %221 {offsets = [0, 0], sizes = [8, 128], strides = [1, 1]} : vector<8x256xf32> to vector<8x128xf32>
    %240 = vector.extract_strided_slice %232 {offsets = [0, 0], sizes = [8, 128], strides = [1, 1]} : vector<8x512xf32> to vector<8x128xf32>
    %241 = arith.negf %240 : vector<8x128xf32>
    %242 = math.exp %241 : vector<8x128xf32>
    %cst_60 = arith.constant 1.000000e+00 : f32
    %243 = vector.broadcast %cst_60 : f32 to vector<8x128xf32>
    %244 = arith.addf %243, %242 : vector<8x128xf32>
    %245 = arith.divf %243, %244 : vector<8x128xf32>
    %246 = vector.extract_strided_slice %232 {offsets = [0, 128], sizes = [8, 128], strides = [1, 1]} : vector<8x512xf32> to vector<8x128xf32>
    %247 = arith.negf %246 : vector<8x128xf32>
    %248 = math.exp %247 : vector<8x128xf32>
    %cst_61 = arith.constant 1.000000e+00 : f32
    %249 = vector.broadcast %cst_61 : f32 to vector<8x128xf32>
    %250 = arith.addf %249, %248 : vector<8x128xf32>
    %251 = arith.divf %249, %250 : vector<8x128xf32>
    %252 = vector.extract_strided_slice %232 {offsets = [0, 256], sizes = [8, 128], strides = [1, 1]} : vector<8x512xf32> to vector<8x128xf32>
    %253 = math.tanh %252 : vector<8x128xf32>
    %254 = vector.extract_strided_slice %232 {offsets = [0, 384], sizes = [8, 128], strides = [1, 1]} : vector<8x512xf32> to vector<8x128xf32>
    %255 = arith.negf %254 : vector<8x128xf32>
    %256 = math.exp %255 : vector<8x128xf32>
    %cst_62 = arith.constant 1.000000e+00 : f32
    %257 = vector.broadcast %cst_62 : f32 to vector<8x128xf32>
    %258 = arith.addf %257, %256 : vector<8x128xf32>
    %259 = arith.divf %257, %258 : vector<8x128xf32>
    %260 = arith.mulf %251, %239 : vector<8x128xf32>
    %261 = arith.mulf %245, %253 : vector<8x128xf32>
    %262 = arith.addf %260, %261 : vector<8x128xf32>
    %263 = math.tanh %262 : vector<8x128xf32>
    %264 = arith.mulf %259, %263 : vector<8x128xf32>
    %265 = vector.extract_strided_slice %221 {offsets = [0, 128], sizes = [8, 128], strides = [1, 1]} : vector<8x256xf32> to vector<8x128xf32>
    %266 = vector.extract_strided_slice %238 {offsets = [0, 0], sizes = [8, 128], strides = [1, 1]} : vector<8x512xf32> to vector<8x128xf32>
    %267 = arith.negf %266 : vector<8x128xf32>
    %268 = math.exp %267 : vector<8x128xf32>
    %cst_63 = arith.constant 1.000000e+00 : f32
    %269 = vector.broadcast %cst_63 : f32 to vector<8x128xf32>
    %270 = arith.addf %269, %268 : vector<8x128xf32>
    %271 = arith.divf %269, %270 : vector<8x128xf32>
    %272 = vector.extract_strided_slice %238 {offsets = [0, 128], sizes = [8, 128], strides = [1, 1]} : vector<8x512xf32> to vector<8x128xf32>
    %273 = arith.negf %272 : vector<8x128xf32>
    %274 = math.exp %273 : vector<8x128xf32>
    %cst_64 = arith.constant 1.000000e+00 : f32
    %275 = vector.broadcast %cst_64 : f32 to vector<8x128xf32>
    %276 = arith.addf %275, %274 : vector<8x128xf32>
    %277 = arith.divf %275, %276 : vector<8x128xf32>
    %278 = vector.extract_strided_slice %238 {offsets = [0, 256], sizes = [8, 128], strides = [1, 1]} : vector<8x512xf32> to vector<8x128xf32>
    %279 = math.tanh %278 : vector<8x128xf32>
    %280 = vector.extract_strided_slice %238 {offsets = [0, 384], sizes = [8, 128], strides = [1, 1]} : vector<8x512xf32> to vector<8x128xf32>
    %281 = arith.negf %280 : vector<8x128xf32>
    %282 = math.exp %281 : vector<8x128xf32>
    %cst_65 = arith.constant 1.000000e+00 : f32
    %283 = vector.broadcast %cst_65 : f32 to vector<8x128xf32>
    %284 = arith.addf %283, %282 : vector<8x128xf32>
    %285 = arith.divf %283, %284 : vector<8x128xf32>
    %286 = arith.mulf %277, %265 : vector<8x128xf32>
    %287 = arith.mulf %271, %279 : vector<8x128xf32>
    %288 = arith.addf %286, %287 : vector<8x128xf32>
    %289 = math.tanh %288 : vector<8x128xf32>
    %290 = arith.mulf %285, %289 : vector<8x128xf32>
    %291 = tpu.concatenate %264, %290 in 1 : vector<8x128xf32>, vector<8x128xf32> -> vector<8x256xf32>
    %292 = tpu.concatenate %262, %288 in 1 : vector<8x128xf32>, vector<8x128xf32> -> vector<8x256xf32>
    %293 = arith.maximumf %222, %291 : vector<8x256xf32>
    %c4_i32 = arith.constant 4 : i32
    %c7_i32_66 = arith.constant 7 : i32
    %294 = arith.subi %c7_i32_66, %c4_i32 : i32
    %295 = arith.truncf %291 : vector<8x256xf32> to vector<8x256xbf16>
    %c0_67 = arith.constant 0 : index
    %c0_68 = arith.constant 0 : index
    %296 = vector.load %arg4[%c0_67, %c0_68] : memref<256x1024xbf16, #tpu.memory_space<vmem>>, vector<256x1024xbf16>
    %cst_69 = arith.constant dense<0.000000e+00> : vector<8x1024xf32>
    %297 = tpu.matmul %295, %296, %cst_69 {dimension_numbers = #tpu.dot_dimension_numbers<[1], [0], [0], [1], [0, 0, 1, 1], [], []>} : vector<8x256xbf16>, vector<256x1024xbf16>, vector<8x1024xf32> -> vector<8x1024xf32>
    %298 = arith.index_cast %c4_i32 : i32 to index
    %c0_70 = arith.constant 0 : index
    %c0_71 = arith.constant 0 : index
    %299 = vector.load %arg11[%298, %c0_70, %c0_71] : memref<8x8x1024xf32, #tpu.memory_space<vmem>>, vector<1x8x1024xf32>
    %300 = vector.shape_cast %299 : vector<1x8x1024xf32> to vector<8x1024xf32>
    %301 = vector.extract_strided_slice %300 {offsets = [0, 0], sizes = [8, 512], strides = [1, 1]} : vector<8x1024xf32> to vector<8x512xf32>
    %302 = vector.extract_strided_slice %297 {offsets = [0, 0], sizes = [8, 512], strides = [1, 1]} : vector<8x1024xf32> to vector<8x512xf32>
    %303 = arith.addf %301, %302 : vector<8x512xf32>
    %304 = arith.index_cast %294 : i32 to index
    %c0_72 = arith.constant 0 : index
    %c0_73 = arith.constant 0 : index
    %305 = vector.load %arg11[%304, %c0_72, %c0_73] : memref<8x8x1024xf32, #tpu.memory_space<vmem>>, vector<1x8x1024xf32>
    %306 = vector.shape_cast %305 : vector<1x8x1024xf32> to vector<8x1024xf32>
    %307 = vector.extract_strided_slice %306 {offsets = [0, 512], sizes = [8, 512], strides = [1, 1]} : vector<8x1024xf32> to vector<8x512xf32>
    %308 = vector.extract_strided_slice %297 {offsets = [0, 512], sizes = [8, 512], strides = [1, 1]} : vector<8x1024xf32> to vector<8x512xf32>
    %309 = arith.addf %307, %308 : vector<8x512xf32>
    %310 = vector.extract_strided_slice %292 {offsets = [0, 0], sizes = [8, 128], strides = [1, 1]} : vector<8x256xf32> to vector<8x128xf32>
    %311 = vector.extract_strided_slice %303 {offsets = [0, 0], sizes = [8, 128], strides = [1, 1]} : vector<8x512xf32> to vector<8x128xf32>
    %312 = arith.negf %311 : vector<8x128xf32>
    %313 = math.exp %312 : vector<8x128xf32>
    %cst_74 = arith.constant 1.000000e+00 : f32
    %314 = vector.broadcast %cst_74 : f32 to vector<8x128xf32>
    %315 = arith.addf %314, %313 : vector<8x128xf32>
    %316 = arith.divf %314, %315 : vector<8x128xf32>
    %317 = vector.extract_strided_slice %303 {offsets = [0, 128], sizes = [8, 128], strides = [1, 1]} : vector<8x512xf32> to vector<8x128xf32>
    %318 = arith.negf %317 : vector<8x128xf32>
    %319 = math.exp %318 : vector<8x128xf32>
    %cst_75 = arith.constant 1.000000e+00 : f32
    %320 = vector.broadcast %cst_75 : f32 to vector<8x128xf32>
    %321 = arith.addf %320, %319 : vector<8x128xf32>
    %322 = arith.divf %320, %321 : vector<8x128xf32>
    %323 = vector.extract_strided_slice %303 {offsets = [0, 256], sizes = [8, 128], strides = [1, 1]} : vector<8x512xf32> to vector<8x128xf32>
    %324 = math.tanh %323 : vector<8x128xf32>
    %325 = vector.extract_strided_slice %303 {offsets = [0, 384], sizes = [8, 128], strides = [1, 1]} : vector<8x512xf32> to vector<8x128xf32>
    %326 = arith.negf %325 : vector<8x128xf32>
    %327 = math.exp %326 : vector<8x128xf32>
    %cst_76 = arith.constant 1.000000e+00 : f32
    %328 = vector.broadcast %cst_76 : f32 to vector<8x128xf32>
    %329 = arith.addf %328, %327 : vector<8x128xf32>
    %330 = arith.divf %328, %329 : vector<8x128xf32>
    %331 = arith.mulf %322, %310 : vector<8x128xf32>
    %332 = arith.mulf %316, %324 : vector<8x128xf32>
    %333 = arith.addf %331, %332 : vector<8x128xf32>
    %334 = math.tanh %333 : vector<8x128xf32>
    %335 = arith.mulf %330, %334 : vector<8x128xf32>
    %336 = vector.extract_strided_slice %292 {offsets = [0, 128], sizes = [8, 128], strides = [1, 1]} : vector<8x256xf32> to vector<8x128xf32>
    %337 = vector.extract_strided_slice %309 {offsets = [0, 0], sizes = [8, 128], strides = [1, 1]} : vector<8x512xf32> to vector<8x128xf32>
    %338 = arith.negf %337 : vector<8x128xf32>
    %339 = math.exp %338 : vector<8x128xf32>
    %cst_77 = arith.constant 1.000000e+00 : f32
    %340 = vector.broadcast %cst_77 : f32 to vector<8x128xf32>
    %341 = arith.addf %340, %339 : vector<8x128xf32>
    %342 = arith.divf %340, %341 : vector<8x128xf32>
    %343 = vector.extract_strided_slice %309 {offsets = [0, 128], sizes = [8, 128], strides = [1, 1]} : vector<8x512xf32> to vector<8x128xf32>
    %344 = arith.negf %343 : vector<8x128xf32>
    %345 = math.exp %344 : vector<8x128xf32>
    %cst_78 = arith.constant 1.000000e+00 : f32
    %346 = vector.broadcast %cst_78 : f32 to vector<8x128xf32>
    %347 = arith.addf %346, %345 : vector<8x128xf32>
    %348 = arith.divf %346, %347 : vector<8x128xf32>
    %349 = vector.extract_strided_slice %309 {offsets = [0, 256], sizes = [8, 128], strides = [1, 1]} : vector<8x512xf32> to vector<8x128xf32>
    %350 = math.tanh %349 : vector<8x128xf32>
    %351 = vector.extract_strided_slice %309 {offsets = [0, 384], sizes = [8, 128], strides = [1, 1]} : vector<8x512xf32> to vector<8x128xf32>
    %352 = arith.negf %351 : vector<8x128xf32>
    %353 = math.exp %352 : vector<8x128xf32>
    %cst_79 = arith.constant 1.000000e+00 : f32
    %354 = vector.broadcast %cst_79 : f32 to vector<8x128xf32>
    %355 = arith.addf %354, %353 : vector<8x128xf32>
    %356 = arith.divf %354, %355 : vector<8x128xf32>
    %357 = arith.mulf %348, %336 : vector<8x128xf32>
    %358 = arith.mulf %342, %350 : vector<8x128xf32>
    %359 = arith.addf %357, %358 : vector<8x128xf32>
    %360 = math.tanh %359 : vector<8x128xf32>
    %361 = arith.mulf %356, %360 : vector<8x128xf32>
    %362 = tpu.concatenate %335, %361 in 1 : vector<8x128xf32>, vector<8x128xf32> -> vector<8x256xf32>
    %363 = tpu.concatenate %333, %359 in 1 : vector<8x128xf32>, vector<8x128xf32> -> vector<8x256xf32>
    %364 = arith.maximumf %293, %362 : vector<8x256xf32>
    %c5_i32 = arith.constant 5 : i32
    %c7_i32_80 = arith.constant 7 : i32
    %365 = arith.subi %c7_i32_80, %c5_i32 : i32
    %366 = arith.truncf %362 : vector<8x256xf32> to vector<8x256xbf16>
    %c0_81 = arith.constant 0 : index
    %c0_82 = arith.constant 0 : index
    %367 = vector.load %arg4[%c0_81, %c0_82] : memref<256x1024xbf16, #tpu.memory_space<vmem>>, vector<256x1024xbf16>
    %cst_83 = arith.constant dense<0.000000e+00> : vector<8x1024xf32>
    %368 = tpu.matmul %366, %367, %cst_83 {dimension_numbers = #tpu.dot_dimension_numbers<[1], [0], [0], [1], [0, 0, 1, 1], [], []>} : vector<8x256xbf16>, vector<256x1024xbf16>, vector<8x1024xf32> -> vector<8x1024xf32>
    %369 = arith.index_cast %c5_i32 : i32 to index
    %c0_84 = arith.constant 0 : index
    %c0_85 = arith.constant 0 : index
    %370 = vector.load %arg11[%369, %c0_84, %c0_85] : memref<8x8x1024xf32, #tpu.memory_space<vmem>>, vector<1x8x1024xf32>
    %371 = vector.shape_cast %370 : vector<1x8x1024xf32> to vector<8x1024xf32>
    %372 = vector.extract_strided_slice %371 {offsets = [0, 0], sizes = [8, 512], strides = [1, 1]} : vector<8x1024xf32> to vector<8x512xf32>
    %373 = vector.extract_strided_slice %368 {offsets = [0, 0], sizes = [8, 512], strides = [1, 1]} : vector<8x1024xf32> to vector<8x512xf32>
    %374 = arith.addf %372, %373 : vector<8x512xf32>
    %375 = arith.index_cast %365 : i32 to index
    %c0_86 = arith.constant 0 : index
    %c0_87 = arith.constant 0 : index
    %376 = vector.load %arg11[%375, %c0_86, %c0_87] : memref<8x8x1024xf32, #tpu.memory_space<vmem>>, vector<1x8x1024xf32>
    %377 = vector.shape_cast %376 : vector<1x8x1024xf32> to vector<8x1024xf32>
    %378 = vector.extract_strided_slice %377 {offsets = [0, 512], sizes = [8, 512], strides = [1, 1]} : vector<8x1024xf32> to vector<8x512xf32>
    %379 = vector.extract_strided_slice %368 {offsets = [0, 512], sizes = [8, 512], strides = [1, 1]} : vector<8x1024xf32> to vector<8x512xf32>
    %380 = arith.addf %378, %379 : vector<8x512xf32>
    %381 = vector.extract_strided_slice %363 {offsets = [0, 0], sizes = [8, 128], strides = [1, 1]} : vector<8x256xf32> to vector<8x128xf32>
    %382 = vector.extract_strided_slice %374 {offsets = [0, 0], sizes = [8, 128], strides = [1, 1]} : vector<8x512xf32> to vector<8x128xf32>
    %383 = arith.negf %382 : vector<8x128xf32>
    %384 = math.exp %383 : vector<8x128xf32>
    %cst_88 = arith.constant 1.000000e+00 : f32
    %385 = vector.broadcast %cst_88 : f32 to vector<8x128xf32>
    %386 = arith.addf %385, %384 : vector<8x128xf32>
    %387 = arith.divf %385, %386 : vector<8x128xf32>
    %388 = vector.extract_strided_slice %374 {offsets = [0, 128], sizes = [8, 128], strides = [1, 1]} : vector<8x512xf32> to vector<8x128xf32>
    %389 = arith.negf %388 : vector<8x128xf32>
    %390 = math.exp %389 : vector<8x128xf32>
    %cst_89 = arith.constant 1.000000e+00 : f32
    %391 = vector.broadcast %cst_89 : f32 to vector<8x128xf32>
    %392 = arith.addf %391, %390 : vector<8x128xf32>
    %393 = arith.divf %391, %392 : vector<8x128xf32>
    %394 = vector.extract_strided_slice %374 {offsets = [0, 256], sizes = [8, 128], strides = [1, 1]} : vector<8x512xf32> to vector<8x128xf32>
    %395 = math.tanh %394 : vector<8x128xf32>
    %396 = vector.extract_strided_slice %374 {offsets = [0, 384], sizes = [8, 128], strides = [1, 1]} : vector<8x512xf32> to vector<8x128xf32>
    %397 = arith.negf %396 : vector<8x128xf32>
    %398 = math.exp %397 : vector<8x128xf32>
    %cst_90 = arith.constant 1.000000e+00 : f32
    %399 = vector.broadcast %cst_90 : f32 to vector<8x128xf32>
    %400 = arith.addf %399, %398 : vector<8x128xf32>
    %401 = arith.divf %399, %400 : vector<8x128xf32>
    %402 = arith.mulf %393, %381 : vector<8x128xf32>
    %403 = arith.mulf %387, %395 : vector<8x128xf32>
    %404 = arith.addf %402, %403 : vector<8x128xf32>
    %405 = math.tanh %404 : vector<8x128xf32>
    %406 = arith.mulf %401, %405 : vector<8x128xf32>
    %407 = vector.extract_strided_slice %363 {offsets = [0, 128], sizes = [8, 128], strides = [1, 1]} : vector<8x256xf32> to vector<8x128xf32>
    %408 = vector.extract_strided_slice %380 {offsets = [0, 0], sizes = [8, 128], strides = [1, 1]} : vector<8x512xf32> to vector<8x128xf32>
    %409 = arith.negf %408 : vector<8x128xf32>
    %410 = math.exp %409 : vector<8x128xf32>
    %cst_91 = arith.constant 1.000000e+00 : f32
    %411 = vector.broadcast %cst_91 : f32 to vector<8x128xf32>
    %412 = arith.addf %411, %410 : vector<8x128xf32>
    %413 = arith.divf %411, %412 : vector<8x128xf32>
    %414 = vector.extract_strided_slice %380 {offsets = [0, 128], sizes = [8, 128], strides = [1, 1]} : vector<8x512xf32> to vector<8x128xf32>
    %415 = arith.negf %414 : vector<8x128xf32>
    %416 = math.exp %415 : vector<8x128xf32>
    %cst_92 = arith.constant 1.000000e+00 : f32
    %417 = vector.broadcast %cst_92 : f32 to vector<8x128xf32>
    %418 = arith.addf %417, %416 : vector<8x128xf32>
    %419 = arith.divf %417, %418 : vector<8x128xf32>
    %420 = vector.extract_strided_slice %380 {offsets = [0, 256], sizes = [8, 128], strides = [1, 1]} : vector<8x512xf32> to vector<8x128xf32>
    %421 = math.tanh %420 : vector<8x128xf32>
    %422 = vector.extract_strided_slice %380 {offsets = [0, 384], sizes = [8, 128], strides = [1, 1]} : vector<8x512xf32> to vector<8x128xf32>
    %423 = arith.negf %422 : vector<8x128xf32>
    %424 = math.exp %423 : vector<8x128xf32>
    %cst_93 = arith.constant 1.000000e+00 : f32
    %425 = vector.broadcast %cst_93 : f32 to vector<8x128xf32>
    %426 = arith.addf %425, %424 : vector<8x128xf32>
    %427 = arith.divf %425, %426 : vector<8x128xf32>
    %428 = arith.mulf %419, %407 : vector<8x128xf32>
    %429 = arith.mulf %413, %421 : vector<8x128xf32>
    %430 = arith.addf %428, %429 : vector<8x128xf32>
    %431 = math.tanh %430 : vector<8x128xf32>
    %432 = arith.mulf %427, %431 : vector<8x128xf32>
    %433 = tpu.concatenate %406, %432 in 1 : vector<8x128xf32>, vector<8x128xf32> -> vector<8x256xf32>
    %434 = tpu.concatenate %404, %430 in 1 : vector<8x128xf32>, vector<8x128xf32> -> vector<8x256xf32>
    %435 = arith.maximumf %364, %433 : vector<8x256xf32>
    %c6_i32 = arith.constant 6 : i32
    %c7_i32_94 = arith.constant 7 : i32
    %436 = arith.subi %c7_i32_94, %c6_i32 : i32
    %437 = arith.truncf %433 : vector<8x256xf32> to vector<8x256xbf16>
    %c0_95 = arith.constant 0 : index
    %c0_96 = arith.constant 0 : index
    %438 = vector.load %arg4[%c0_95, %c0_96] : memref<256x1024xbf16, #tpu.memory_space<vmem>>, vector<256x1024xbf16>
    %cst_97 = arith.constant dense<0.000000e+00> : vector<8x1024xf32>
    %439 = tpu.matmul %437, %438, %cst_97 {dimension_numbers = #tpu.dot_dimension_numbers<[1], [0], [0], [1], [0, 0, 1, 1], [], []>} : vector<8x256xbf16>, vector<256x1024xbf16>, vector<8x1024xf32> -> vector<8x1024xf32>
    %440 = arith.index_cast %c6_i32 : i32 to index
    %c0_98 = arith.constant 0 : index
    %c0_99 = arith.constant 0 : index
    %441 = vector.load %arg11[%440, %c0_98, %c0_99] : memref<8x8x1024xf32, #tpu.memory_space<vmem>>, vector<1x8x1024xf32>
    %442 = vector.shape_cast %441 : vector<1x8x1024xf32> to vector<8x1024xf32>
    %443 = vector.extract_strided_slice %442 {offsets = [0, 0], sizes = [8, 512], strides = [1, 1]} : vector<8x1024xf32> to vector<8x512xf32>
    %444 = vector.extract_strided_slice %439 {offsets = [0, 0], sizes = [8, 512], strides = [1, 1]} : vector<8x1024xf32> to vector<8x512xf32>
    %445 = arith.addf %443, %444 : vector<8x512xf32>
    %446 = arith.index_cast %436 : i32 to index
    %c0_100 = arith.constant 0 : index
    %c0_101 = arith.constant 0 : index
    %447 = vector.load %arg11[%446, %c0_100, %c0_101] : memref<8x8x1024xf32, #tpu.memory_space<vmem>>, vector<1x8x1024xf32>
    %448 = vector.shape_cast %447 : vector<1x8x1024xf32> to vector<8x1024xf32>
    %449 = vector.extract_strided_slice %448 {offsets = [0, 512], sizes = [8, 512], strides = [1, 1]} : vector<8x1024xf32> to vector<8x512xf32>
    %450 = vector.extract_strided_slice %439 {offsets = [0, 512], sizes = [8, 512], strides = [1, 1]} : vector<8x1024xf32> to vector<8x512xf32>
    %451 = arith.addf %449, %450 : vector<8x512xf32>
    %452 = vector.extract_strided_slice %434 {offsets = [0, 0], sizes = [8, 128], strides = [1, 1]} : vector<8x256xf32> to vector<8x128xf32>
    %453 = vector.extract_strided_slice %445 {offsets = [0, 0], sizes = [8, 128], strides = [1, 1]} : vector<8x512xf32> to vector<8x128xf32>
    %454 = arith.negf %453 : vector<8x128xf32>
    %455 = math.exp %454 : vector<8x128xf32>
    %cst_102 = arith.constant 1.000000e+00 : f32
    %456 = vector.broadcast %cst_102 : f32 to vector<8x128xf32>
    %457 = arith.addf %456, %455 : vector<8x128xf32>
    %458 = arith.divf %456, %457 : vector<8x128xf32>
    %459 = vector.extract_strided_slice %445 {offsets = [0, 128], sizes = [8, 128], strides = [1, 1]} : vector<8x512xf32> to vector<8x128xf32>
    %460 = arith.negf %459 : vector<8x128xf32>
    %461 = math.exp %460 : vector<8x128xf32>
    %cst_103 = arith.constant 1.000000e+00 : f32
    %462 = vector.broadcast %cst_103 : f32 to vector<8x128xf32>
    %463 = arith.addf %462, %461 : vector<8x128xf32>
    %464 = arith.divf %462, %463 : vector<8x128xf32>
    %465 = vector.extract_strided_slice %445 {offsets = [0, 256], sizes = [8, 128], strides = [1, 1]} : vector<8x512xf32> to vector<8x128xf32>
    %466 = math.tanh %465 : vector<8x128xf32>
    %467 = vector.extract_strided_slice %445 {offsets = [0, 384], sizes = [8, 128], strides = [1, 1]} : vector<8x512xf32> to vector<8x128xf32>
    %468 = arith.negf %467 : vector<8x128xf32>
    %469 = math.exp %468 : vector<8x128xf32>
    %cst_104 = arith.constant 1.000000e+00 : f32
    %470 = vector.broadcast %cst_104 : f32 to vector<8x128xf32>
    %471 = arith.addf %470, %469 : vector<8x128xf32>
    %472 = arith.divf %470, %471 : vector<8x128xf32>
    %473 = arith.mulf %464, %452 : vector<8x128xf32>
    %474 = arith.mulf %458, %466 : vector<8x128xf32>
    %475 = arith.addf %473, %474 : vector<8x128xf32>
    %476 = math.tanh %475 : vector<8x128xf32>
    %477 = arith.mulf %472, %476 : vector<8x128xf32>
    %478 = vector.extract_strided_slice %434 {offsets = [0, 128], sizes = [8, 128], strides = [1, 1]} : vector<8x256xf32> to vector<8x128xf32>
    %479 = vector.extract_strided_slice %451 {offsets = [0, 0], sizes = [8, 128], strides = [1, 1]} : vector<8x512xf32> to vector<8x128xf32>
    %480 = arith.negf %479 : vector<8x128xf32>
    %481 = math.exp %480 : vector<8x128xf32>
    %cst_105 = arith.constant 1.000000e+00 : f32
    %482 = vector.broadcast %cst_105 : f32 to vector<8x128xf32>
    %483 = arith.addf %482, %481 : vector<8x128xf32>
    %484 = arith.divf %482, %483 : vector<8x128xf32>
    %485 = vector.extract_strided_slice %451 {offsets = [0, 128], sizes = [8, 128], strides = [1, 1]} : vector<8x512xf32> to vector<8x128xf32>
    %486 = arith.negf %485 : vector<8x128xf32>
    %487 = math.exp %486 : vector<8x128xf32>
    %cst_106 = arith.constant 1.000000e+00 : f32
    %488 = vector.broadcast %cst_106 : f32 to vector<8x128xf32>
    %489 = arith.addf %488, %487 : vector<8x128xf32>
    %490 = arith.divf %488, %489 : vector<8x128xf32>
    %491 = vector.extract_strided_slice %451 {offsets = [0, 256], sizes = [8, 128], strides = [1, 1]} : vector<8x512xf32> to vector<8x128xf32>
    %492 = math.tanh %491 : vector<8x128xf32>
    %493 = vector.extract_strided_slice %451 {offsets = [0, 384], sizes = [8, 128], strides = [1, 1]} : vector<8x512xf32> to vector<8x128xf32>
    %494 = arith.negf %493 : vector<8x128xf32>
    %495 = math.exp %494 : vector<8x128xf32>
    %cst_107 = arith.constant 1.000000e+00 : f32
    %496 = vector.broadcast %cst_107 : f32 to vector<8x128xf32>
    %497 = arith.addf %496, %495 : vector<8x128xf32>
    %498 = arith.divf %496, %497 : vector<8x128xf32>
    %499 = arith.mulf %490, %478 : vector<8x128xf32>
    %500 = arith.mulf %484, %492 : vector<8x128xf32>
    %501 = arith.addf %499, %500 : vector<8x128xf32>
    %502 = math.tanh %501 : vector<8x128xf32>
    %503 = arith.mulf %498, %502 : vector<8x128xf32>
    %504 = tpu.concatenate %477, %503 in 1 : vector<8x128xf32>, vector<8x128xf32> -> vector<8x256xf32>
    %505 = tpu.concatenate %475, %501 in 1 : vector<8x128xf32>, vector<8x128xf32> -> vector<8x256xf32>
    %506 = arith.maximumf %435, %504 : vector<8x256xf32>
    %c7_i32_108 = arith.constant 7 : i32
    %c7_i32_109 = arith.constant 7 : i32
    %507 = arith.subi %c7_i32_109, %c7_i32_108 : i32
    %508 = arith.truncf %504 : vector<8x256xf32> to vector<8x256xbf16>
    %c0_110 = arith.constant 0 : index
    %c0_111 = arith.constant 0 : index
    %509 = vector.load %arg4[%c0_110, %c0_111] : memref<256x1024xbf16, #tpu.memory_space<vmem>>, vector<256x1024xbf16>
    %cst_112 = arith.constant dense<0.000000e+00> : vector<8x1024xf32>
    %510 = tpu.matmul %508, %509, %cst_112 {dimension_numbers = #tpu.dot_dimension_numbers<[1], [0], [0], [1], [0, 0, 1, 1], [], []>} : vector<8x256xbf16>, vector<256x1024xbf16>, vector<8x1024xf32> -> vector<8x1024xf32>
    %511 = arith.index_cast %c7_i32_108 : i32 to index
    %c0_113 = arith.constant 0 : index
    %c0_114 = arith.constant 0 : index
    %512 = vector.load %arg11[%511, %c0_113, %c0_114] : memref<8x8x1024xf32, #tpu.memory_space<vmem>>, vector<1x8x1024xf32>
    %513 = vector.shape_cast %512 : vector<1x8x1024xf32> to vector<8x1024xf32>
    %514 = vector.extract_strided_slice %513 {offsets = [0, 0], sizes = [8, 512], strides = [1, 1]} : vector<8x1024xf32> to vector<8x512xf32>
    %515 = vector.extract_strided_slice %510 {offsets = [0, 0], sizes = [8, 512], strides = [1, 1]} : vector<8x1024xf32> to vector<8x512xf32>
    %516 = arith.addf %514, %515 : vector<8x512xf32>
    %517 = arith.index_cast %507 : i32 to index
    %c0_115 = arith.constant 0 : index
    %c0_116 = arith.constant 0 : index
    %518 = vector.load %arg11[%517, %c0_115, %c0_116] : memref<8x8x1024xf32, #tpu.memory_space<vmem>>, vector<1x8x1024xf32>
    %519 = vector.shape_cast %518 : vector<1x8x1024xf32> to vector<8x1024xf32>
    %520 = vector.extract_strided_slice %519 {offsets = [0, 512], sizes = [8, 512], strides = [1, 1]} : vector<8x1024xf32> to vector<8x512xf32>
    %521 = vector.extract_strided_slice %510 {offsets = [0, 512], sizes = [8, 512], strides = [1, 1]} : vector<8x1024xf32> to vector<8x512xf32>
    %522 = arith.addf %520, %521 : vector<8x512xf32>
    %523 = vector.extract_strided_slice %505 {offsets = [0, 0], sizes = [8, 128], strides = [1, 1]} : vector<8x256xf32> to vector<8x128xf32>
    %524 = vector.extract_strided_slice %516 {offsets = [0, 0], sizes = [8, 128], strides = [1, 1]} : vector<8x512xf32> to vector<8x128xf32>
    %525 = arith.negf %524 : vector<8x128xf32>
    %526 = math.exp %525 : vector<8x128xf32>
    %cst_117 = arith.constant 1.000000e+00 : f32
    %527 = vector.broadcast %cst_117 : f32 to vector<8x128xf32>
    %528 = arith.addf %527, %526 : vector<8x128xf32>
    %529 = arith.divf %527, %528 : vector<8x128xf32>
    %530 = vector.extract_strided_slice %516 {offsets = [0, 128], sizes = [8, 128], strides = [1, 1]} : vector<8x512xf32> to vector<8x128xf32>
    %531 = arith.negf %530 : vector<8x128xf32>
    %532 = math.exp %531 : vector<8x128xf32>
    %cst_118 = arith.constant 1.000000e+00 : f32
    %533 = vector.broadcast %cst_118 : f32 to vector<8x128xf32>
    %534 = arith.addf %533, %532 : vector<8x128xf32>
    %535 = arith.divf %533, %534 : vector<8x128xf32>
    %536 = vector.extract_strided_slice %516 {offsets = [0, 256], sizes = [8, 128], strides = [1, 1]} : vector<8x512xf32> to vector<8x128xf32>
    %537 = math.tanh %536 : vector<8x128xf32>
    %538 = vector.extract_strided_slice %516 {offsets = [0, 384], sizes = [8, 128], strides = [1, 1]} : vector<8x512xf32> to vector<8x128xf32>
    %539 = arith.negf %538 : vector<8x128xf32>
    %540 = math.exp %539 : vector<8x128xf32>
    %cst_119 = arith.constant 1.000000e+00 : f32
    %541 = vector.broadcast %cst_119 : f32 to vector<8x128xf32>
    %542 = arith.addf %541, %540 : vector<8x128xf32>
    %543 = arith.divf %541, %542 : vector<8x128xf32>
    %544 = arith.mulf %535, %523 : vector<8x128xf32>
    %545 = arith.mulf %529, %537 : vector<8x128xf32>
    %546 = arith.addf %544, %545 : vector<8x128xf32>
    %547 = math.tanh %546 : vector<8x128xf32>
    %548 = arith.mulf %543, %547 : vector<8x128xf32>
    %549 = vector.extract_strided_slice %505 {offsets = [0, 128], sizes = [8, 128], strides = [1, 1]} : vector<8x256xf32> to vector<8x128xf32>
    %550 = vector.extract_strided_slice %522 {offsets = [0, 0], sizes = [8, 128], strides = [1, 1]} : vector<8x512xf32> to vector<8x128xf32>
    %551 = arith.negf %550 : vector<8x128xf32>
    %552 = math.exp %551 : vector<8x128xf32>
    %cst_120 = arith.constant 1.000000e+00 : f32
    %553 = vector.broadcast %cst_120 : f32 to vector<8x128xf32>
    %554 = arith.addf %553, %552 : vector<8x128xf32>
    %555 = arith.divf %553, %554 : vector<8x128xf32>
    %556 = vector.extract_strided_slice %522 {offsets = [0, 128], sizes = [8, 128], strides = [1, 1]} : vector<8x512xf32> to vector<8x128xf32>
    %557 = arith.negf %556 : vector<8x128xf32>
    %558 = math.exp %557 : vector<8x128xf32>
    %cst_121 = arith.constant 1.000000e+00 : f32
    %559 = vector.broadcast %cst_121 : f32 to vector<8x128xf32>
    %560 = arith.addf %559, %558 : vector<8x128xf32>
    %561 = arith.divf %559, %560 : vector<8x128xf32>
    %562 = vector.extract_strided_slice %522 {offsets = [0, 256], sizes = [8, 128], strides = [1, 1]} : vector<8x512xf32> to vector<8x128xf32>
    %563 = math.tanh %562 : vector<8x128xf32>
    %564 = vector.extract_strided_slice %522 {offsets = [0, 384], sizes = [8, 128], strides = [1, 1]} : vector<8x512xf32> to vector<8x128xf32>
    %565 = arith.negf %564 : vector<8x128xf32>
    %566 = math.exp %565 : vector<8x128xf32>
    %cst_122 = arith.constant 1.000000e+00 : f32
    %567 = vector.broadcast %cst_122 : f32 to vector<8x128xf32>
    %568 = arith.addf %567, %566 : vector<8x128xf32>
    %569 = arith.divf %567, %568 : vector<8x128xf32>
    %570 = arith.mulf %561, %549 : vector<8x128xf32>
    %571 = arith.mulf %555, %563 : vector<8x128xf32>
    %572 = arith.addf %570, %571 : vector<8x128xf32>
    %573 = math.tanh %572 : vector<8x128xf32>
    %574 = arith.mulf %569, %573 : vector<8x128xf32>
    %575 = tpu.concatenate %548, %574 in 1 : vector<8x128xf32>, vector<8x128xf32> -> vector<8x256xf32>
    %576 = tpu.concatenate %546, %572 in 1 : vector<8x128xf32>, vector<8x128xf32> -> vector<8x256xf32>
    %577 = arith.maximumf %506, %575 : vector<8x256xf32>
    %c8_i32 = arith.constant 8 : i32
    %c0_123 = arith.constant 0 : index
    %c0_124 = arith.constant 0 : index
    %578 = vector.load %arg9[%c0_123, %c0_124] : memref<8x256xf32, #tpu.memory_space<vmem>>, vector<8x256xf32>
    tpu.vector_store %arg9[%c0_123, %c0_124], %577 {strides = array<i32>} : memref<8x256xf32, #tpu.memory_space<vmem>>, vector<8x256xf32>,
    %579 = arith.truncf %577 : vector<8x256xf32> to vector<8x256xbf16>
    %c0_125 = arith.constant 0 : index
    %c0_126 = arith.constant 0 : index
    %580 = vector.load %arg5[%c0_125, %c0_126] : memref<256x512xbf16, #tpu.memory_space<vmem>>, vector<256x512xbf16>
    %cst_127 = arith.constant dense<0.000000e+00> : vector<8x512xf32>
    %581 = tpu.matmul %579, %580, %cst_127 {dimension_numbers = #tpu.dot_dimension_numbers<[1], [0], [0], [1], [0, 0, 1, 1], [], []>} : vector<8x256xbf16>, vector<256x512xbf16>, vector<8x512xf32> -> vector<8x512xf32>
    %c0_128 = arith.constant 0 : index
    %c0_129 = arith.constant 0 : index
    %582 = vector.load %arg6[%c0_128, %c0_129] : memref<1x512xf32, #tpu.memory_space<vmem>>, vector<1x512xf32>
    %583 = vector.broadcast %582 : vector<1x512xf32> to vector<8x512xf32>
    %584 = arith.addf %581, %583 : vector<8x512xf32>
    %cst_130 = arith.constant 0.000000e+00 : f32
    %585 = vector.broadcast %cst_130 : f32 to vector<8x512xf32>
    %586 = arith.maximumf %584, %585 : vector<8x512xf32>
    %587 = arith.truncf %586 : vector<8x512xf32> to vector<8x512xbf16>
    %c0_131 = arith.constant 0 : index
    %c0_132 = arith.constant 0 : index
    %588 = vector.load %arg7[%c0_131, %c0_132] : memref<512x128xbf16, #tpu.memory_space<vmem>>, vector<512x128xbf16>
    %cst_133 = arith.constant dense<0.000000e+00> : vector<8x128xf32>
    %589 = tpu.matmul %587, %588, %cst_133 {dimension_numbers = #tpu.dot_dimension_numbers<[1], [0], [0], [1], [0, 0, 1, 1], [], []>} : vector<8x512xbf16>, vector<512x128xbf16>, vector<8x128xf32> -> vector<8x128xf32>
    %c0_134 = arith.constant 0 : index
    %c0_135 = arith.constant 0 : index
    %590 = vector.load %arg8[%c0_134, %c0_135] : memref<1x128xf32, #tpu.memory_space<vmem>>, vector<1x128xf32>
    %591 = vector.broadcast %590 : vector<1x128xf32> to vector<8x128xf32>
    %592 = arith.addf %589, %591 : vector<8x128xf32>
    %c0_136 = arith.constant 0 : index
    %c0_137 = arith.constant 0 : index
    %593 = vector.load %arg10[%c0_136, %c0_137] : memref<8x128xf32, #tpu.memory_space<vmem>>, vector<8x128xf32>
    tpu.vector_store %arg10[%c0_136, %c0_137], %592 {strides = array<i32>} : memref<8x128xf32, #tpu.memory_space<vmem>>, vector<8x128xf32>,
    return
  }
  func.func @transform_0(%arg0: i32) -> (i32, i32, i32) {
    %c0_i32 = arith.constant 0 : i32
    %c0_i32_0 = arith.constant 0 : i32
    %c0_i32_1 = arith.constant 0 : i32
    return %c0_i32, %arg0, %c0_i32_0 : i32, i32, i32
  }
  func.func @transform_1(%arg0: i32) -> (i32, i32) {
    %c0_i32 = arith.constant 0 : i32
    %c0_i32_0 = arith.constant 0 : i32
    %c0_i32_1 = arith.constant 0 : i32
    return %c0_i32, %c0_i32_0 : i32, i32
  }
  func.func @transform_2(%arg0: i32) -> (i32, i32) {
    %c0_i32 = arith.constant 0 : i32
    %c0_i32_0 = arith.constant 0 : i32
    %c0_i32_1 = arith.constant 0 : i32
    return %c0_i32, %c0_i32_0 : i32, i32
  }
  func.func @transform_3(%arg0: i32) -> (i32, i32) {
    %c0_i32 = arith.constant 0 : i32
    %c0_i32_0 = arith.constant 0 : i32
    %c0_i32_1 = arith.constant 0 : i32
    return %c0_i32, %c0_i32_0 : i32, i32
  }
  func.func @transform_4(%arg0: i32) -> (i32, i32) {
    %c0_i32 = arith.constant 0 : i32
    %c0_i32_0 = arith.constant 0 : i32
    %c0_i32_1 = arith.constant 0 : i32
    return %c0_i32, %c0_i32_0 : i32, i32
  }
  func.func @transform_5(%arg0: i32) -> (i32, i32) {
    %c0_i32 = arith.constant 0 : i32
    %c0_i32_0 = arith.constant 0 : i32
    %c0_i32_1 = arith.constant 0 : i32
    return %c0_i32, %c0_i32_0 : i32, i32
  }
  func.func @transform_6(%arg0: i32) -> (i32, i32) {
    %c0_i32 = arith.constant 0 : i32
    %c0_i32_0 = arith.constant 0 : i32
    %c0_i32_1 = arith.constant 0 : i32
    return %c0_i32, %c0_i32_0 : i32, i32
  }
  func.func @transform_7(%arg0: i32) -> (i32, i32) {
    %c0_i32 = arith.constant 0 : i32
    %c0_i32_0 = arith.constant 0 : i32
    %c0_i32_1 = arith.constant 0 : i32
    return %c0_i32, %c0_i32_0 : i32, i32
  }
  func.func @transform_8(%arg0: i32) -> (i32, i32) {
    %c0_i32 = arith.constant 0 : i32
    %c0_i32_0 = arith.constant 0 : i32
    return %arg0, %c0_i32 : i32, i32
  }
  func.func @transform_9(%arg0: i32) -> (i32, i32) {
    %c0_i32 = arith.constant 0 : i32
    %c0_i32_0 = arith.constant 0 : i32
    return %arg0, %c0_i32 : i32, i32
  }
}

</mosaic_0001>

<llo_original>
// kernel: iest_classifier_forward.1
$region0: #{iest_classifier_forward.1}
  #allocation0 [shape = 'u32[]', space=smem, size = 0x4, offset = 0x4, fixed_abs, tag = 'smem constant byte address 0x4 - core index']
  #allocation1 [shape = 'u32[72,128]{1,0:T(1,128)}', space=vmem, size = 0x9000, scoped, tag = 'internal scratch']
  #allocation2 [shape = 'f32[8,8,1024]{2,1,0:T(8,128)}', space=vmem, size = 0x40000, scoped, tag = 'scratch operand']
  %s0 = inlined_call_operand.vmem [shape: bf16[8,8,32], index: 0, kind: input, shape index: {}]
  %s1 = inlined_call_operand.vmem [shape: bf16[32,1024], index: 1, kind: input, shape index: {}]
  %s2 = inlined_call_operand.vmem [shape: f32[1,1024], index: 2, kind: input, shape index: {}]
  %s3 = inlined_call_operand.hbm [shape: bf16[256,1024], index: 3, kind: input, shape index: {}]
  %s4 = inlined_call_operand.hbm [shape: bf16[256,512], index: 4, kind: input, shape index: {}]
  %s5 = inlined_call_operand.vmem [shape: f32[1,512], index: 5, kind: input, shape index: {}]
  %s6 = inlined_call_operand.hbm [shape: bf16[512,128], index: 6, kind: input, shape index: {}]
  %s7 = inlined_call_operand.vmem [shape: f32[1,128], index: 7, kind: input, shape index: {}]
  %s8 = inlined_call_operand.vmem [shape: f32[8,256], index: 8, kind: output, shape index: {0}]
  %s9 = inlined_call_operand.vmem [shape: f32[8,128], index: 9, kind: output, shape index: {1}]
  %10 = xla_tuple %s8, %s9
  %s11 = sld [smem:[#allocation0]]
  $region62: #{iest_classifier_forward.1} parent=0
    _
  %s13 = ssub.s32 1, %s11
  %s14 = scalar_select 0, %s13, %s11
  $region1: #{iest_classifier_forward.1} parent=0
    #allocation3 [shape = 'u8[524288]{0}', space=vmem, size = 0x80000, scoped, tag = 'input window, operand 3, single buffered']
    #allocation4 [shape = 's32[1]{0}', space=sflag, size = 0x4, scoped, tag = 'scoped memory for iest_classifier_forward.1']
    #allocation5 [shape = 'u8[262144]{0}', space=vmem, size = 0x40000, scoped, tag = 'input window, operand 4, single buffered']
    #allocation6 [shape = 's32[1]{0}', space=sflag, size = 0x4, scoped, tag = 'scoped memory for iest_classifier_forward.1']
    #allocation7 [shape = 'u8[131072]{0}', space=vmem, size = 0x20000, scoped, tag = 'input window, operand 6, single buffered']
    %15 = vsyncpa [#allocation4], 0
    %16 = vsyncpa [#allocation6], 0
    // Predicated region
    $region2: #{iest_classifier_forward.1} parent=1 // pred_check
      _
    $region3: #{iest_classifier_forward.1} parent=1 // pred_check_branch
      %18 = sbr.rel (0) target = $region5
    $region4: #{iest_classifier_forward.1} parent=1 // pred_region
      _
    $region5: #{iest_classifier_forward.1} parent=1 // pred_fallthru
      _
    // Predicated region
    $region6: #{iest_classifier_forward.1} parent=1 // pred_check
      _
    $region7: #{iest_classifier_forward.1} parent=1 // pred_check_branch
      %20 = sbr.rel (0) target = $region9
    $region8: #{iest_classifier_forward.1} parent=1 // pred_region
      _
    $region9: #{iest_classifier_forward.1} parent=1 // pred_fallthru
      _
    // Predicated region
    $region10: #{iest_classifier_forward.1} parent=1 // pred_check
      _
    $region11: #{iest_classifier_forward.1} parent=1 // pred_check_branch
      %22 = sbr.rel (0) target = $region13
    $region12: #{iest_classifier_forward.1} parent=1 // pred_region
      _
    $region13: #{iest_classifier_forward.1} parent=1 // pred_fallthru
      _
    // Predicated region
    $region14: #{iest_classifier_forward.1} parent=1 // pred_check
      _
    $region15: #{iest_classifier_forward.1} parent=1 // pred_check_branch
      %24 = sbr.rel (0) target = $region17
    $region16: #{iest_classifier_forward.1} parent=1 // pred_region
      %26 = vsyncadd [#allocation4], 0
      %s27 = sshll.u32 %s3, 4
      %s28 = int_to_ptr.hbm [resolvable:$true] %s27
      %s29 = sshll.u32 [#allocation3], 4
      %s30 = int_to_ptr.vmem [resolvable:$true] %s29
      %35 = dma.hbm_to_vmem [thread:$0]  %s28, 16384, %s30, [#allocation4], 512, 512, 32
    $region17: #{iest_classifier_forward.1} parent=1 // pred_fallthru
      _
    // Predicated region
    $region18: #{iest_classifier_forward.1} parent=1 // pred_check
      _
    $region19: #{iest_classifier_forward.1} parent=1 // pred_check_branch
      %37 = sbr.rel (0) target = $region21
    $region20: #{iest_classifier_forward.1} parent=1 // pred_region
      %39 = vsyncadd [#allocation6], 0
      %s40 = sshll.u32 %s4, 4
      %s41 = int_to_ptr.hbm [resolvable:$true] %s40
      %s42 = sshll.u32 [#allocation5], 4
      %s43 = int_to_ptr.vmem [resolvable:$true] %s42
      %48 = dma.hbm_to_vmem [thread:$0]  %s41, 8192, %s43, [#allocation6], 256, 256, 16
    $region21: #{iest_classifier_forward.1} parent=1 // pred_fallthru
      _
    // Predicated region
    $region22: #{iest_classifier_forward.1} parent=1 // pred_check
      _
    $region23: #{iest_classifier_forward.1} parent=1 // pred_check_branch
      %50 = sbr.rel (0) target = $region25
    $region24: #{iest_classifier_forward.1} parent=1 // pred_region
      _
    $region25: #{iest_classifier_forward.1} parent=1 // pred_fallthru
      _
    // Predicated region
    $region26: #{iest_classifier_forward.1} parent=1 // pred_check
      _
    $region27: #{iest_classifier_forward.1} parent=1 // pred_check_branch
      %52 = sbr.rel (0) target = $region29
    $region28: #{iest_classifier_forward.1} parent=1 // pred_region
      %54 = vsyncadd [#allocation6], 0
      %s55 = sshll.u32 %s6, 4
      %s56 = int_to_ptr.hbm [resolvable:$true] %s55
      %s57 = sshll.u32 [#allocation7], 4
      %s58 = int_to_ptr.vmem [resolvable:$true] %s57
      %63 = dma.hbm_to_vmem [thread:$0]  %s56, 4096, %s58, [#allocation6], 64, 64, 4
    $region29: #{iest_classifier_forward.1} parent=1 // pred_fallthru
      _
    // Predicated region
    $region30: #{iest_classifier_forward.1} parent=1 // pred_check
      _
    $region31: #{iest_classifier_forward.1} parent=1 // pred_check_branch
      %65 = sbr.rel (0) target = $region33
    $region32: #{iest_classifier_forward.1} parent=1 // pred_region
      _
    $region33: #{iest_classifier_forward.1} parent=1 // pred_fallthru
      _
    // Predicated region
    $region34: #{iest_classifier_forward.1} parent=1 // pred_check
      _
    $region35: #{iest_classifier_forward.1} parent=1 // pred_check_branch
      %67 = sbr.rel (0) target = $region37
    $region36: #{iest_classifier_forward.1} parent=1 // pred_region
      %69 = dma.done [#allocation4], 16384
    $region37: #{iest_classifier_forward.1} parent=1 // pred_fallthru
      _
    // Predicated region
    $region38: #{iest_classifier_forward.1} parent=1 // pred_check
      _
    $region39: #{iest_classifier_forward.1} parent=1 // pred_check_branch
      %71 = sbr.rel (0) target = $region41
    $region40: #{iest_classifier_forward.1} parent=1 // pred_region
      %73 = dma.done [#allocation6], 8192
    $region41: #{iest_classifier_forward.1} parent=1 // pred_fallthru
      _
    // Predicated region
    $region42: #{iest_classifier_forward.1} parent=1 // pred_check
      _
    $region43: #{iest_classifier_forward.1} parent=1 // pred_check_branch
      %75 = sbr.rel (0) target = $region45
    $region44: #{iest_classifier_forward.1} parent=1 // pred_region
      %77 = dma.done [#allocation6], 4096
    $region45: #{iest_classifier_forward.1} parent=1 // pred_fallthru
      _
    %v79 = vld [vmem:[%s0] sm:$0xf]
    %v80 = vld [vmem:[%s0 + $0x4] sm:$0xf]
    %v81 = vld [vmem:[%s0 + $0x8] sm:$0xf]
    %v82 = vld [vmem:[%s0 + $0xc] sm:$0xf]
    %v83 = vld [vmem:[%s0 + $0x10] sm:$0xf]
    %v84 = vld [vmem:[%s0 + $0x14] sm:$0xf]
    %v85 = vld [vmem:[%s0 + $0x18] sm:$0xf]
    %v86 = vld [vmem:[%s0 + $0x1c] sm:$0xf]
    %v87 = vld [vmem:[%s1] sm:$0xff]
    %v88 = vld [vmem:[%s1 + $0x8] sm:$0xff]
    %v89 = vld [vmem:[%s1 + $0x10] sm:$0xff]
    %v90 = vld [vmem:[%s1 + $0x18] sm:$0xff]
    %v91 = vld [vmem:[%s1 + $0x20] sm:$0xff]
    %v92 = vld [vmem:[%s1 + $0x28] sm:$0xff]
    %v93 = vld [vmem:[%s1 + $0x30] sm:$0xff]
    %v94 = vld [vmem:[%s1 + $0x38] sm:$0xff]
    %v95 = vld [vmem:[%s1 + $0x40] sm:$0xff]
    %v96 = vld [vmem:[%s1 + $0x48] sm:$0xff]
    %v97 = vld [vmem:[%s1 + $0x50] sm:$0xff]
    %v98 = vld [vmem:[%s1 + $0x58] sm:$0xff]
    %v99 = vld [vmem:[%s1 + $0x60] sm:$0xff]
    %v100 = vld [vmem:[%s1 + $0x68] sm:$0xff]
    %v101 = vld [vmem:[%s1 + $0x70] sm:$0xff]
    %v102 = vld [vmem:[%s1 + $0x78] sm:$0xff]
    %v103 = vld [vmem:[%s2] sm:$0xff]
    %v105 = vperm.slane %v103, 0
    %v106 = vperm.slane %v103, 1
    %v107 = vperm.slane %v103, 2
    %v108 = vperm.slane %v103, 3
    %v109 = vperm.slane %v103, 4
    %v110 = vperm.slane %v103, 5
    %v111 = vperm.slane %v103, 6
    %v112 = vperm.slane %v103, 7
    %v129 = vunpack.c.l.b16 %v79
    %v130 = vunpack.c.l.b16 %v80
    %v131 = vunpack.c.l.b16 %v81
    %v132 = vunpack.c.l.b16 %v82
    %v133 = vunpack.c.l.b16 %v83
    %v134 = vunpack.c.l.b16 %v84
    %v135 = vunpack.c.l.b16 %v85
    %v136 = vunpack.c.l.b16 %v86
    %v137 = vpack.c.b16 %v130, %v129
    %v138 = vpack.c.b16 %v132, %v131
    %v139 = vpack.c.b16 %v134, %v133
    %v140 = vpack.c.b16 %v136, %v135
    %v157 = vunpack.c.l.b16 %v87
    %v158 = vunpack.c.h.b16 %v87
    %v159 = vunpack.c.l.b16 %v88
    %v160 = vunpack.c.h.b16 %v88
    %v161 = vunpack.c.l.b16 %v89
    %v162 = vunpack.c.h.b16 %v89
    %v163 = vunpack.c.l.b16 %v90
    %v164 = vunpack.c.h.b16 %v90
    %v165 = vunpack.c.l.b16 %v91
    %v166 = vunpack.c.h.b16 %v91
    %v167 = vunpack.c.l.b16 %v92
    %v168 = vunpack.c.h.b16 %v92
    %v169 = vunpack.c.l.b16 %v93
    %v170 = vunpack.c.h.b16 %v93
    %v171 = vunpack.c.l.b16 %v94
    %v172 = vunpack.c.h.b16 %v94
    %v173 = vunpack.c.l.b16 %v95
    %v174 = vunpack.c.h.b16 %v95
    %v175 = vunpack.c.l.b16 %v96
    %v176 = vunpack.c.h.b16 %v96
    %v177 = vunpack.c.l.b16 %v97
    %v178 = vunpack.c.h.b16 %v97
    %v179 = vunpack.c.l.b16 %v98
    %v180 = vunpack.c.h.b16 %v98
    %v181 = vunpack.c.l.b16 %v99
    %v182 = vunpack.c.h.b16 %v99
    %v183 = vunpack.c.l.b16 %v100
    %v184 = vunpack.c.h.b16 %v100
    %v185 = vunpack.c.l.b16 %v101
    %v186 = vunpack.c.h.b16 %v101
    %v187 = vunpack.c.l.b16 %v102
    %v188 = vunpack.c.h.b16 %v102
    %v189 = vpack.c.b16 %v165, %v157
    %v190 = vpack.c.b16 %v166, %v158
    %v191 = vpack.c.b16 %v167, %v159
    %v192 = vpack.c.b16 %v168, %v160
    %v193 = vpack.c.b16 %v169, %v161
    %v194 = vpack.c.b16 %v170, %v162
    %v195 = vpack.c.b16 %v171, %v163
    %v196 = vpack.c.b16 %v172, %v164
    %v197 = vpack.c.b16 %v181, %v173
    %v198 = vpack.c.b16 %v182, %v174
    %v199 = vpack.c.b16 %v183, %v175
    %v200 = vpack.c.b16 %v184, %v176
    %v201 = vpack.c.b16 %v185, %v177
    %v202 = vpack.c.b16 %v186, %v178
    %v203 = vpack.c.b16 %v187, %v179
    %v204 = vpack.c.b16 %v188, %v180
    %vm221 = vcmask 261120
    %v223 = vsel %vm221, %v137, 0
    %v226 = vsel %vm221, %v138, 0
    %v229 = vsel %vm221, %v139, 0
    %v232 = vsel %vm221, %v140, 0
    %234 = vmatpush.bf16.msra.mxu0 0
    %235 = vmatpush.bf16.msra.mxu0 0
    %236 = vmatpush.bf16.msra.mxu0 0
    %237 = vmatpush.bf16.msra.mxu0 0
    %238 = vmatpush.bf16.msra.mxu0 0
    %239 = vmatpush.bf16.msra.mxu0 0
    %240 = vmatpush.bf16.msra.mxu0 %v197
    %241 = vmatpush.bf16.msra.mxu0 %v189
    %242 = vmatmul.bf16.gmra.mxu0 %v223
    %v243 = vpop.f32.mrf.mxu0
    %v244 = vadd.f32 %v105, %v243
    %v245 = vpop.f32.mrf.mxu0
    %v246 = vadd.f32 %v105, %v245
    %247 = vmatmul.bf16.gmra.mxu0 %v226
    %v248 = vpop.f32.mrf.mxu0
    %v249 = vadd.f32 %v105, %v248
    %v250 = vpop.f32.mrf.mxu0
    %v251 = vadd.f32 %v105, %v250
    %252 = vmatmul.bf16.gmra.mxu0 %v229
    %v253 = vpop.f32.mrf.mxu0
    %v254 = vadd.f32 %v105, %v253
    %v255 = vpop.f32.mrf.mxu0
    %v256 = vadd.f32 %v105, %v255
    %257 = vmatmul.bf16.gmra.mxu0 %v232
    %v258 = vpop.f32.mrf.mxu0
    %v259 = vadd.f32 %v105, %v258
    %v260 = vpop.f32.mrf.mxu0
    %v261 = vadd.f32 %v105, %v260
    %262 = vdwg.mxu0
    %263 = vmatpush.bf16.msra.mxu0 0
    %264 = vmatpush.bf16.msra.mxu0 0
    %265 = vmatpush.bf16.msra.mxu0 0
    %266 = vmatpush.bf16.msra.mxu0 0
    %267 = vmatpush.bf16.msra.mxu0 0
    %268 = vmatpush.bf16.msra.mxu0 0
    %269 = vmatpush.bf16.msra.mxu0 %v198
    %270 = vmatpush.bf16.msra.mxu0 %v190
    %271 = vmatmul.bf16.gmra.mxu0 %v223
    %v272 = vpop.f32.mrf.mxu0
    %v273 = vadd.f32 %v106, %v272
    %v274 = vpop.f32.mrf.mxu0
    %v275 = vadd.f32 %v106, %v274
    %276 = vmatmul.bf16.gmra.mxu0 %v226
    %v277 = vpop.f32.mrf.mxu0
    %v278 = vadd.f32 %v106, %v277
    %v279 = vpop.f32.mrf.mxu0
    %v280 = vadd.f32 %v106, %v279
    %281 = vmatmul.bf16.gmra.mxu0 %v229
    %v282 = vpop.f32.mrf.mxu0
    %v283 = vadd.f32 %v106, %v282
    %v284 = vpop.f32.mrf.mxu0
    %v285 = vadd.f32 %v106, %v284
    %286 = vmatmul.bf16.gmra.mxu0 %v232
    %v287 = vpop.f32.mrf.mxu0
    %v288 = vadd.f32 %v106, %v287
    %v289 = vpop.f32.mrf.mxu0
    %v290 = vadd.f32 %v106, %v289
    %291 = vdwg.mxu0
    %292 = vmatpush.bf16.msra.mxu0 0
    %293 = vmatpush.bf16.msra.mxu0 0
    %294 = vmatpush.bf16.msra.mxu0 0
    %295 = vmatpush.bf16.msra.mxu0 0
    %296 = vmatpush.bf16.msra.mxu0 0
    %297 = vmatpush.bf16.msra.mxu0 0
    %298 = vmatpush.bf16.msra.mxu0 %v199
    %299 = vmatpush.bf16.msra.mxu0 %v191
    %300 = vmatmul.bf16.gmra.mxu0 %v223
    %v301 = vpop.f32.mrf.mxu0
    %v302 = vadd.f32 %v107, %v301
    %v303 = vpop.f32.mrf.mxu0
    %v304 = vadd.f32 %v107, %v303
    %305 = vmatmul.bf16.gmra.mxu0 %v226
    %v306 = vpop.f32.mrf.mxu0
    %v307 = vadd.f32 %v107, %v306
    %v308 = vpop.f32.mrf.mxu0
    %v309 = vadd.f32 %v107, %v308
    %310 = vmatmul.bf16.gmra.mxu0 %v229
    %v311 = vpop.f32.mrf.mxu0
    %v312 = vadd.f32 %v107, %v311
    %v313 = vpop.f32.mrf.mxu0
    %v314 = vadd.f32 %v107, %v313
    %315 = vmatmul.bf16.gmra.mxu0 %v232
    %v316 = vpop.f32.mrf.mxu0
    %v317 = vadd.f32 %v107, %v316
    %v318 = vpop.f32.mrf.mxu0
    %v319 = vadd.f32 %v107, %v318
    %320 = vdwg.mxu0
    %321 = vmatpush.bf16.msra.mxu0 0
    %322 = vmatpush.bf16.msra.mxu0 0
    %323 = vmatpush.bf16.msra.mxu0 0
    %324 = vmatpush.bf16.msra.mxu0 0
    %325 = vmatpush.bf16.msra.mxu0 0
    %326 = vmatpush.bf16.msra.mxu0 0
    %327 = vmatpush.bf16.msra.mxu0 %v200
    %328 = vmatpush.bf16.msra.mxu0 %v192
    %329 = vmatmul.bf16.gmra.mxu0 %v223
    %v330 = vpop.f32.mrf.mxu0
    %v331 = vadd.f32 %v108, %v330
    %v332 = vpop.f32.mrf.mxu0
    %v333 = vadd.f32 %v108, %v332
    %334 = vmatmul.bf16.gmra.mxu0 %v226
    %v335 = vpop.f32.mrf.mxu0
    %v336 = vadd.f32 %v108, %v335
    %v337 = vpop.f32.mrf.mxu0
    %v338 = vadd.f32 %v108, %v337
    %339 = vmatmul.bf16.gmra.mxu0 %v229
    %v340 = vpop.f32.mrf.mxu0
    %v341 = vadd.f32 %v108, %v340
    %v342 = vpop.f32.mrf.mxu0
    %v343 = vadd.f32 %v108, %v342
    %344 = vmatmul.bf16.gmra.mxu0 %v232
    %v345 = vpop.f32.mrf.mxu0
    %v346 = vadd.f32 %v108, %v345
    %v347 = vpop.f32.mrf.mxu0
    %v348 = vadd.f32 %v108, %v347
    %349 = vdwg.mxu0
    %350 = vmatpush.bf16.msra.mxu0 0
    %351 = vmatpush.bf16.msra.mxu0 0
    %352 = vmatpush.bf16.msra.mxu0 0
    %353 = vmatpush.bf16.msra.mxu0 0
    %354 = vmatpush.bf16.msra.mxu0 0
    %355 = vmatpush.bf16.msra.mxu0 0
    %356 = vmatpush.bf16.msra.mxu0 %v201
    %357 = vmatpush.bf16.msra.mxu0 %v193
    %358 = vmatmul.bf16.gmra.mxu0 %v223
    %v359 = vpop.f32.mrf.mxu0
    %v360 = vadd.f32 %v109, %v359
    %v361 = vpop.f32.mrf.mxu0
    %v362 = vadd.f32 %v109, %v361
    %363 = vmatmul.bf16.gmra.mxu0 %v226
    %v364 = vpop.f32.mrf.mxu0
    %v365 = vadd.f32 %v109, %v364
    %v366 = vpop.f32.mrf.mxu0
    %v367 = vadd.f32 %v109, %v366
    %368 = vmatmul.bf16.gmra.mxu0 %v229
    %v369 = vpop.f32.mrf.mxu0
    %v370 = vadd.f32 %v109, %v369
    %v371 = vpop.f32.mrf.mxu0
    %v372 = vadd.f32 %v109, %v371
    %373 = vmatmul.bf16.gmra.mxu0 %v232
    %v374 = vpop.f32.mrf.mxu0
    %v375 = vadd.f32 %v109, %v374
    %v376 = vpop.f32.mrf.mxu0
    %v377 = vadd.f32 %v109, %v376
    %378 = vdwg.mxu0
    %379 = vmatpush.bf16.msra.mxu0 0
    %380 = vmatpush.bf16.msra.mxu0 0
    %381 = vmatpush.bf16.msra.mxu0 0
    %382 = vmatpush.bf16.msra.mxu0 0
    %383 = vmatpush.bf16.msra.mxu0 0
    %384 = vmatpush.bf16.msra.mxu0 0
    %385 = vmatpush.bf16.msra.mxu0 %v202
    %386 = vmatpush.bf16.msra.mxu0 %v194
    %387 = vmatmul.bf16.gmra.mxu0 %v223
    %v388 = vpop.f32.mrf.mxu0
    %v389 = vadd.f32 %v110, %v388
    %v390 = vpop.f32.mrf.mxu0
    %v391 = vadd.f32 %v110, %v390
    %392 = vmatmul.bf16.gmra.mxu0 %v226
    %v393 = vpop.f32.mrf.mxu0
    %v394 = vadd.f32 %v110, %v393
    %v395 = vpop.f32.mrf.mxu0
    %v396 = vadd.f32 %v110, %v395
    %397 = vmatmul.bf16.gmra.mxu0 %v229
    %v398 = vpop.f32.mrf.mxu0
    %v399 = vadd.f32 %v110, %v398
    %v400 = vpop.f32.mrf.mxu0
    %v401 = vadd.f32 %v110, %v400
    %402 = vmatmul.bf16.gmra.mxu0 %v232
    %v403 = vpop.f32.mrf.mxu0
    %v404 = vadd.f32 %v110, %v403
    %v405 = vpop.f32.mrf.mxu0
    %v406 = vadd.f32 %v110, %v405
    %407 = vdwg.mxu0
    %408 = vmatpush.bf16.msra.mxu0 0
    %409 = vmatpush.bf16.msra.mxu0 0
    %410 = vmatpush.bf16.msra.mxu0 0
    %411 = vmatpush.bf16.msra.mxu0 0
    %412 = vmatpush.bf16.msra.mxu0 0
    %413 = vmatpush.bf16.msra.mxu0 0
    %414 = vmatpush.bf16.msra.mxu0 %v203
    %415 = vmatpush.bf16.msra.mxu0 %v195
    %416 = vmatmul.bf16.gmra.mxu0 %v223
    %v417 = vpop.f32.mrf.mxu0
    %v418 = vadd.f32 %v111, %v417
    %v419 = vpop.f32.mrf.mxu0
    %v420 = vadd.f32 %v111, %v419
    %421 = vmatmul.bf16.gmra.mxu0 %v226
    %v422 = vpop.f32.mrf.mxu0
    %v423 = vadd.f32 %v111, %v422
    %v424 = vpop.f32.mrf.mxu0
    %v425 = vadd.f32 %v111, %v424
    %426 = vmatmul.bf16.gmra.mxu0 %v229
    %v427 = vpop.f32.mrf.mxu0
    %v428 = vadd.f32 %v111, %v427
    %v429 = vpop.f32.mrf.mxu0
    %v430 = vadd.f32 %v111, %v429
    %431 = vmatmul.bf16.gmra.mxu0 %v232
    %v432 = vpop.f32.mrf.mxu0
    %v433 = vadd.f32 %v111, %v432
    %v434 = vpop.f32.mrf.mxu0
    %v435 = vadd.f32 %v111, %v434
    %436 = vdwg.mxu0
    %437 = vmatpush.bf16.msra.mxu0 0
    %438 = vmatpush.bf16.msra.mxu0 0
    %439 = vmatpush.bf16.msra.mxu0 0
    %440 = vmatpush.bf16.msra.mxu0 0
    %441 = vmatpush.bf16.msra.mxu0 0
    %442 = vmatpush.bf16.msra.mxu0 0
    %443 = vmatpush.bf16.msra.mxu0 %v204
    %444 = vmatpush.bf16.msra.mxu0 %v196
    %445 = vmatmul.bf16.gmra.mxu0 %v223
    %v446 = vpop.f32.mrf.mxu0
    %v447 = vadd.f32 %v112, %v446
    %v448 = vpop.f32.mrf.mxu0
    %v449 = vadd.f32 %v112, %v448
    %450 = vmatmul.bf16.gmra.mxu0 %v226
    %v451 = vpop.f32.mrf.mxu0
    %v452 = vadd.f32 %v112, %v451
    %v453 = vpop.f32.mrf.mxu0
    %v454 = vadd.f32 %v112, %v453
    %455 = vmatmul.bf16.gmra.mxu0 %v229
    %v456 = vpop.f32.mrf.mxu0
    %v457 = vadd.f32 %v112, %v456
    %v458 = vpop.f32.mrf.mxu0
    %v459 = vadd.f32 %v112, %v458
    %460 = vmatmul.bf16.gmra.mxu0 %v232
    %v461 = vpop.f32.mrf.mxu0
    %v462 = vadd.f32 %v112, %v461
    %v463 = vpop.f32.mrf.mxu0
    %v464 = vadd.f32 %v112, %v463
    %465 = vdwg.mxu0
    %466 = vst [vmem:[#allocation2] sm:$0xff] %v244
    %467 = vst [vmem:[#allocation2 + $0x8] sm:$0xff] %v273
    %468 = vst [vmem:[#allocation2 + $0x10] sm:$0xff] %v302
    %469 = vst [vmem:[#allocation2 + $0x18] sm:$0xff] %v331
    %470 = vst [vmem:[#allocation2 + $0x20] sm:$0xff] %v360
    %471 = vst [vmem:[#allocation2 + $0x28] sm:$0xff] %v389
    %472 = vst [vmem:[#allocation2 + $0x30] sm:$0xff] %v418
    %473 = vst [vmem:[#allocation2 + $0x38] sm:$0xff] %v447
    %474 = vst [vmem:[#allocation2 + $0x40] sm:$0xff] %v246
    %475 = vst [vmem:[#allocation2 + $0x48] sm:$0xff] %v275
    %476 = vst [vmem:[#allocation2 + $0x50] sm:$0xff] %v304
    %477 = vst [vmem:[#allocation2 + $0x58] sm:$0xff] %v333
    %478 = vst [vmem:[#allocation2 + $0x60] sm:$0xff] %v362
    %479 = vst [vmem:[#allocation2 + $0x68] sm:$0xff] %v391
    %480 = vst [vmem:[#allocation2 + $0x70] sm:$0xff] %v420
    %481 = vst [vmem:[#allocation2 + $0x78] sm:$0xff] %v449
    %482 = vst [vmem:[#allocation2 + $0x80] sm:$0xff] %v249
    %483 = vst [vmem:[#allocation2 + $0x88] sm:$0xff] %v278
    %484 = vst [vmem:[#allocation2 + $0x90] sm:$0xff] %v307
    %485 = vst [vmem:[#allocation2 + $0x98] sm:$0xff] %v336
    %486 = vst [vmem:[#allocation2 + $0xa0] sm:$0xff] %v365
    %487 = vst [vmem:[#allocation2 + $0xa8] sm:$0xff] %v394
    %488 = vst [vmem:[#allocation2 + $0xb0] sm:$0xff] %v423
    %489 = vst [vmem:[#allocation2 + $0xb8] sm:$0xff] %v452
    %490 = vst [vmem:[#allocation2 + $0xc0] sm:$0xff] %v251
    %491 = vst [vmem:[#allocation2 + $0xc8] sm:$0xff] %v280
    %492 = vst [vmem:[#allocation2 + $0xd0] sm:$0xff] %v309
    %493 = vst [vmem:[#allocation2 + $0xd8] sm:$0xff] %v338
    %494 = vst [vmem:[#allocation2 + $0xe0] sm:$0xff] %v367
    %495 = vst [vmem:[#allocation2 + $0xe8] sm:$0xff] %v396
    %496 = vst [vmem:[#allocation2 + $0xf0] sm:$0xff] %v425
    %497 = vst [vmem:[#allocation2 + $0xf8] sm:$0xff] %v454
    %498 = vst [vmem:[#allocation2 + $0x100] sm:$0xff] %v254
    %499 = vst [vmem:[#allocation2 + $0x108] sm:$0xff] %v283
    %500 = vst [vmem:[#allocation2 + $0x110] sm:$0xff] %v312
    %501 = vst [vmem:[#allocation2 + $0x118] sm:$0xff] %v341
    %502 = vst [vmem:[#allocation2 + $0x120] sm:$0xff] %v370
    %503 = vst [vmem:[#allocation2 + $0x128] sm:$0xff] %v399
    %504 = vst [vmem:[#allocation2 + $0x130] sm:$0xff] %v428
    %505 = vst [vmem:[#allocation2 + $0x138] sm:$0xff] %v457
    %506 = vst [vmem:[#allocation2 + $0x140] sm:$0xff] %v256
    %507 = vst [vmem:[#allocation2 + $0x148] sm:$0xff] %v285
    %508 = vst [vmem:[#allocation2 + $0x150] sm:$0xff] %v314
    %509 = vst [vmem:[#allocation2 + $0x158] sm:$0xff] %v343
    %510 = vst [vmem:[#allocation2 + $0x160] sm:$0xff] %v372
    %511 = vst [vmem:[#allocation2 + $0x168] sm:$0xff] %v401
    %512 = vst [vmem:[#allocation2 + $0x170] sm:$0xff] %v430
    %513 = vst [vmem:[#allocation2 + $0x178] sm:$0xff] %v459
    %514 = vst [vmem:[#allocation2 + $0x180] sm:$0xff] %v259
    %515 = vst [vmem:[#allocation2 + $0x188] sm:$0xff] %v288
    %516 = vst [vmem:[#allocation2 + $0x190] sm:$0xff] %v317
    %517 = vst [vmem:[#allocation2 + $0x198] sm:$0xff] %v346
    %518 = vst [vmem:[#allocation2 + $0x1a0] sm:$0xff] %v375
    %519 = vst [vmem:[#allocation2 + $0x1a8] sm:$0xff] %v404
    %520 = vst [vmem:[#allocation2 + $0x1b0] sm:$0xff] %v433
    %521 = vst [vmem:[#allocation2 + $0x1b8] sm:$0xff] %v462
    %522 = vst [vmem:[#allocation2 + $0x1c0] sm:$0xff] %v261
    %523 = vst [vmem:[#allocation2 + $0x1c8] sm:$0xff] %v290
    %524 = vst [vmem:[#allocation2 + $0x1d0] sm:$0xff] %v319
    %525 = vst [vmem:[#allocation2 + $0x1d8] sm:$0xff] %v348
    %526 = vst [vmem:[#allocation2 + $0x1e0] sm:$0xff] %v377
    %527 = vst [vmem:[#allocation2 + $0x1e8] sm:$0xff] %v406
    %528 = vst [vmem:[#allocation2 + $0x1f0] sm:$0xff] %v435
    %529 = vst [vmem:[#allocation2 + $0x1f8] sm:$0xff] %v464
    %v530 = vld [vmem:[#allocation3] sm:$0xff]
    %v531 = vld [vmem:[#allocation3 + $0x8] sm:$0xff]
    %v532 = vld [vmem:[#allocation3 + $0x10] sm:$0xff]
    %v533 = vld [vmem:[#allocation3 + $0x18] sm:$0xff]
    %v534 = vld [vmem:[#allocation3 + $0x20] sm:$0xff]
    %v535 = vld [vmem:[#allocation3 + $0x28] sm:$0xff]
    %v536 = vld [vmem:[#allocation3 + $0x30] sm:$0xff]
    %v537 = vld [vmem:[#allocation3 + $0x38] sm:$0xff]
    %v538 = vld [vmem:[#allocation3 + $0x40] sm:$0xff]
    %v539 = vld [vmem:[#allocation3 + $0x48] sm:$0xff]
    %v540 = vld [vmem:[#allocation3 + $0x50] sm:$0xff]
    %v541 = vld [vmem:[#allocation3 + $0x58] sm:$0xff]
    %v542 = vld [vmem:[#allocation3 + $0x60] sm:$0xff]
    %v543 = vld [vmem:[#allocation3 + $0x68] sm:$0xff]
    %v544 = vld [vmem:[#allocation3 + $0x70] sm:$0xff]
    %v545 = vld [vmem:[#allocation3 + $0x78] sm:$0xff]
    %v546 = vld [vmem:[#allocation3 + $0x80] sm:$0xff]
    %v547 = vld [vmem:[#allocation3 + $0x88] sm:$0xff]
    %v548 = vld [vmem:[#allocation3 + $0x90] sm:$0xff]
    %v549 = vld [vmem:[#allocation3 + $0x98] sm:$0xff]
    %v550 = vld [vmem:[#allocation3 + $0xa0] sm:$0xff]
    %v551 = vld [vmem:[#allocation3 + $0xa8] sm:$0xff]
    %v552 = vld [vmem:[#allocation3 + $0xb0] sm:$0xff]
    %v553 = vld [vmem:[#allocation3 + $0xb8] sm:$0xff]
    %v554 = vld [vmem:[#allocation3 + $0xc0] sm:$0xff]
    %v555 = vld [vmem:[#allocation3 + $0xc8] sm:$0xff]
    %v556 = vld [vmem:[#allocation3 + $0xd0] sm:$0xff]
    %v557 = vld [vmem:[#allocation3 + $0xd8] sm:$0xff]
    %v558 = vld [vmem:[#allocation3 + $0xe0] sm:$0xff]
    %v559 = vld [vmem:[#allocation3 + $0xe8] sm:$0xff]
    %v560 = vld [vmem:[#allocation3 + $0xf0] sm:$0xff]
    %v561 = vld [vmem:[#allocation3 + $0xf8] sm:$0xff]
    %v562 = vld [vmem:[#allocation3 + $0x100] sm:$0xff]
    %v563 = vld [vmem:[#allocation3 + $0x108] sm:$0xff]
    %v564 = vld [vmem:[#allocation3 + $0x110] sm:$0xff]
    %v565 = vld [vmem:[#allocation3 + $0x118] sm:$0xff]
    %v566 = vld [vmem:[#allocation3 + $0x120] sm:$0xff]
    %v567 = vld [vmem:[#allocation3 + $0x128] sm:$0xff]
    %v568 = vld [vmem:[#allocation3 + $0x130] sm:$0xff]
    %v569 = vld [vmem:[#allocation3 + $0x138] sm:$0xff]
    %v570 = vld [vmem:[#allocation3 + $0x140] sm:$0xff]
    %v571 = vld [vmem:[#allocation3 + $0x148] sm:$0xff]
    %v572 = vld [vmem:[#allocation3 + $0x150] sm:$0xff]
    %v573 = vld [vmem:[#allocation3 + $0x158] sm:$0xff]
    %v574 = vld [vmem:[#allocation3 + $0x160] sm:$0xff]
    %v575 = vld [vmem:[#allocation3 + $0x168] sm:$0xff]
    %v576 = vld [vmem:[#allocation3 + $0x170] sm:$0xff]
    %v577 = vld [vmem:[#allocation3 + $0x178] sm:$0xff]
    %v578 = vld [vmem:[#allocation3 + $0x180] sm:$0xff]
    %v579 = vld [vmem:[#allocation3 + $0x188] sm:$0xff]
    %v580 = vld [vmem:[#allocation3 + $0x190] sm:$0xff]
    %v581 = vld [vmem:[#allocation3 + $0x198] sm:$0xff]
    %v582 = vld [vmem:[#allocation3 + $0x1a0] sm:$0xff]
    %v583 = vld [vmem:[#allocation3 + $0x1a8] sm:$0xff]
    %v584 = vld [vmem:[#allocation3 + $0x1b0] sm:$0xff]
    %v585 = vld [vmem:[#allocation3 + $0x1b8] sm:$0xff]
    %v586 = vld [vmem:[#allocation3 + $0x1c0] sm:$0xff]
    %v587 = vld [vmem:[#allocation3 + $0x1c8] sm:$0xff]
    %v588 = vld [vmem:[#allocation3 + $0x1d0] sm:$0xff]
    %v589 = vld [vmem:[#allocation3 + $0x1d8] sm:$0xff]
    %v590 = vld [vmem:[#allocation3 + $0x1e0] sm:$0xff]
    %v591 = vld [vmem:[#allocation3 + $0x1e8] sm:$0xff]
    %v592 = vld [vmem:[#allocation3 + $0x1f0] sm:$0xff]
    %v593 = vld [vmem:[#allocation3 + $0x1f8] sm:$0xff]
    %v594 = vld [vmem:[#allocation3 + $0x200] sm:$0xff]
    %v595 = vld [vmem:[#allocation3 + $0x208] sm:$0xff]
    %v596 = vld [vmem:[#allocation3 + $0x210] sm:$0xff]
    %v597 = vld [vmem:[#allocation3 + $0x218] sm:$0xff]
    %v598 = vld [vmem:[#allocation3 + $0x220] sm:$0xff]
    %v599 = vld [vmem:[#allocation3 + $0x228] sm:$0xff]
    %v600 = vld [vmem:[#allocation3 + $0x230] sm:$0xff]
    %v601 = vld [vmem:[#allocation3 + $0x238] sm:$0xff]
    %v602 = vld [vmem:[#allocation3 + $0x240] sm:$0xff]
    %v603 = vld [vmem:[#allocation3 + $0x248] sm:$0xff]
    %v604 = vld [vmem:[#allocation3 + $0x250] sm:$0xff]
    %v605 = vld [vmem:[#allocation3 + $0x258] sm:$0xff]
    %v606 = vld [vmem:[#allocation3 + $0x260] sm:$0xff]
    %v607 = vld [vmem:[#allocation3 + $0x268] sm:$0xff]
    %v608 = vld [vmem:[#allocation3 + $0x270] sm:$0xff]
    %v609 = vld [vmem:[#allocation3 + $0x278] sm:$0xff]
    %v610 = vld [vmem:[#allocation3 + $0x280] sm:$0xff]
    %v611 = vld [vmem:[#allocation3 + $0x288] sm:$0xff]
    %v612 = vld [vmem:[#allocation3 + $0x290] sm:$0xff]
    %v613 = vld [vmem:[#allocation3 + $0x298] sm:$0xff]
    %v614 = vld [vmem:[#allocation3 + $0x2a0] sm:$0xff]
    %v615 = vld [vmem:[#allocation3 + $0x2a8] sm:$0xff]
    %v616 = vld [vmem:[#allocation3 + $0x2b0] sm:$0xff]
    %v617 = vld [vmem:[#allocation3 + $0x2b8] sm:$0xff]
    %v618 = vld [vmem:[#allocation3 + $0x2c0] sm:$0xff]
    %v619 = vld [vmem:[#allocation3 + $0x2c8] sm:$0xff]
    %v620 = vld [vmem:[#allocation3 + $0x2d0] sm:$0xff]
    %v621 = vld [vmem:[#allocation3 + $0x2d8] sm:$0xff]
    %v622 = vld [vmem:[#allocation3 + $0x2e0] sm:$0xff]
    %v623 = vld [vmem:[#allocation3 + $0x2e8] sm:$0xff]
    %v624 = vld [vmem:[#allocation3 + $0x2f0] sm:$0xff]
    %v625 = vld [vmem:[#allocation3 + $0x2f8] sm:$0xff]
    %v626 = vld [vmem:[#allocation3 + $0x300] sm:$0xff]
    %v627 = vld [vmem:[#allocation3 + $0x308] sm:$0xff]
    %v628 = vld [vmem:[#allocation3 + $0x310] sm:$0xff]
    %v629 = vld [vmem:[#allocation3 + $0x318] sm:$0xff]
    %v630 = vld [vmem:[#allocation3 + $0x320] sm:$0xff]
    %v631 = vld [vmem:[#allocation3 + $0x328] sm:$0xff]
    %v632 = vld [vmem:[#allocation3 + $0x330] sm:$0xff]
    %v633 = vld [vmem:[#allocation3 + $0x338] sm:$0xff]
    %v634 = vld [vmem:[#allocation3 + $0x340] sm:$0xff]
    %v635 = vld [vmem:[#allocation3 + $0x348] sm:$0xff]
    %v636 = vld [vmem:[#allocation3 + $0x350] sm:$0xff]
    %v637 = vld [vmem:[#allocation3 + $0x358] sm:$0xff]
    %v638 = vld [vmem:[#allocation3 + $0x360] sm:$0xff]
    %v639 = vld [vmem:[#allocation3 + $0x368] sm:$0xff]
    %v640 = vld [vmem:[#allocation3 + $0x370] sm:$0xff]
    %v641 = vld [vmem:[#allocation3 + $0x378] sm:$0xff]
    %v642 = vld [vmem:[#allocation3 + $0x380] sm:$0xff]
    %v643 = vld [vmem:[#allocation3 + $0x388] sm:$0xff]
    %v644 = vld [vmem:[#allocation3 + $0x390] sm:$0xff]
    %v645 = vld [vmem:[#allocation3 + $0x398] sm:$0xff]
    %v646 = vld [vmem:[#allocation3 + $0x3a0] sm:$0xff]
    %v647 = vld [vmem:[#allocation3 + $0x3a8] sm:$0xff]
    %v648 = vld [vmem:[#allocation3 + $0x3b0] sm:$0xff]
    %v649 = vld [vmem:[#allocation3 + $0x3b8] sm:$0xff]
    %v650 = vld [vmem:[#allocation3 + $0x3c0] sm:$0xff]
    %v651 = vld [vmem:[#allocation3 + $0x3c8] sm:$0xff]
    %v652 = vld [vmem:[#allocation3 + $0x3d0] sm:$0xff]
    %v653 = vld [vmem:[#allocation3 + $0x3d8] sm:$0xff]
    %v654 = vld [vmem:[#allocation3 + $0x3e0] sm:$0xff]
    %v655 = vld [vmem:[#allocation3 + $0x3e8] sm:$0xff]
    %v656 = vld [vmem:[#allocation3 + $0x3f0] sm:$0xff]
    %v657 = vld [vmem:[#allocation3 + $0x3f8] sm:$0xff]
    %v786 = vunpack.c.l.b16 %v530
    %v787 = vunpack.c.h.b16 %v530
    %v788 = vunpack.c.l.b16 %v531
    %v789 = vunpack.c.h.b16 %v531
    %v790 = vunpack.c.l.b16 %v532
    %v791 = vunpack.c.h.b16 %v532
    %v792 = vunpack.c.l.b16 %v533
    %v793 = vunpack.c.h.b16 %v533
    %v794 = vunpack.c.l.b16 %v534
    %v795 = vunpack.c.h.b16 %v534
    %v796 = vunpack.c.l.b16 %v535
    %v797 = vunpack.c.h.b16 %v535
    %v798 = vunpack.c.l.b16 %v536
    %v799 = vunpack.c.h.b16 %v536
    %v800 = vunpack.c.l.b16 %v537
    %v801 = vunpack.c.h.b16 %v537
    %v802 = vunpack.c.l.b16 %v538
    %v803 = vunpack.c.h.b16 %v538
    %v804 = vunpack.c.l.b16 %v539
    %v805 = vunpack.c.h.b16 %v539
    %v806 = vunpack.c.l.b16 %v540
    %v807 = vunpack.c.h.b16 %v540
    %v808 = vunpack.c.l.b16 %v541
    %v809 = vunpack.c.h.b16 %v541
    %v810 = vunpack.c.l.b16 %v542
    %v811 = vunpack.c.h.b16 %v542
    %v812 = vunpack.c.l.b16 %v543
    %v813 = vunpack.c.h.b16 %v543
    %v814 = vunpack.c.l.b16 %v544
    %v815 = vunpack.c.h.b16 %v544
    %v816 = vunpack.c.l.b16 %v545
    %v817 = vunpack.c.h.b16 %v545
    %v818 = vunpack.c.l.b16 %v546
    %v819 = vunpack.c.h.b16 %v546
    %v820 = vunpack.c.l.b16 %v547
    %v821 = vunpack.c.h.b16 %v547
    %v822 = vunpack.c.l.b16 %v548
    %v823 = vunpack.c.h.b16 %v548
    %v824 = vunpack.c.l.b16 %v549
    %v825 = vunpack.c.h.b16 %v549
    %v826 = vunpack.c.l.b16 %v550
    %v827 = vunpack.c.h.b16 %v550
    %v828 = vunpack.c.l.b16 %v551
    %v829 = vunpack.c.h.b16 %v551
    %v830 = vunpack.c.l.b16 %v552
    %v831 = vunpack.c.h.b16 %v552
    %v832 = vunpack.c.l.b16 %v553
    %v833 = vunpack.c.h.b16 %v553
    %v834 = vunpack.c.l.b16 %v554
    %v835 = vunpack.c.h.b16 %v554
    %v836 = vunpack.c.l.b16 %v555
    %v837 = vunpack.c.h.b16 %v555
    %v838 = vunpack.c.l.b16 %v556
    %v839 = vunpack.c.h.b16 %v556
    %v840 = vunpack.c.l.b16 %v557
    %v841 = vunpack.c.h.b16 %v557
    %v842 = vunpack.c.l.b16 %v558
    %v843 = vunpack.c.h.b16 %v558
    %v844 = vunpack.c.l.b16 %v559
    %v845 = vunpack.c.h.b16 %v559
    %v846 = vunpack.c.l.b16 %v560
    %v847 = vunpack.c.h.b16 %v560
    %v848 = vunpack.c.l.b16 %v561
    %v849 = vunpack.c.h.b16 %v561
    %v850 = vunpack.c.l.b16 %v562
    %v851 = vunpack.c.h.b16 %v562
    %v852 = vunpack.c.l.b16 %v563
    %v853 = vunpack.c.h.b16 %v563
    %v854 = vunpack.c.l.b16 %v564
    %v855 = vunpack.c.h.b16 %v564
    %v856 = vunpack.c.l.b16 %v565
    %v857 = vunpack.c.h.b16 %v565
    %v858 = vunpack.c.l.b16 %v566
    %v859 = vunpack.c.h.b16 %v566
    %v860 = vunpack.c.l.b16 %v567
    %v861 = vunpack.c.h.b16 %v567
    %v862 = vunpack.c.l.b16 %v568
    %v863 = vunpack.c.h.b16 %v568
    %v864 = vunpack.c.l.b16 %v569
    %v865 = vunpack.c.h.b16 %v569
    %v866 = vunpack.c.l.b16 %v570
    %v867 = vunpack.c.h.b16 %v570
    %v868 = vunpack.c.l.b16 %v571
    %v869 = vunpack.c.h.b16 %v571
    %v870 = vunpack.c.l.b16 %v572
    %v871 = vunpack.c.h.b16 %v572
    %v872 = vunpack.c.l.b16 %v573
    %v873 = vunpack.c.h.b16 %v573
    %v874 = vunpack.c.l.b16 %v574
    %v875 = vunpack.c.h.b16 %v574
    %v876 = vunpack.c.l.b16 %v575
    %v877 = vunpack.c.h.b16 %v575
    %v878 = vunpack.c.l.b16 %v576
    %v879 = vunpack.c.h.b16 %v576
    %v880 = vunpack.c.l.b16 %v577
    %v881 = vunpack.c.h.b16 %v577
    %v882 = vunpack.c.l.b16 %v578
    %v883 = vunpack.c.h.b16 %v578
    %v884 = vunpack.c.l.b16 %v579
    %v885 = vunpack.c.h.b16 %v579
    %v886 = vunpack.c.l.b16 %v580
    %v887 = vunpack.c.h.b16 %v580
    %v888 = vunpack.c.l.b16 %v581
    %v889 = vunpack.c.h.b16 %v581
    %v890 = vunpack.c.l.b16 %v582
    %v891 = vunpack.c.h.b16 %v582
    %v892 = vunpack.c.l.b16 %v583
    %v893 = vunpack.c.h.b16 %v583
    %v894 = vunpack.c.l.b16 %v584
    %v895 = vunpack.c.h.b16 %v584
    %v896 = vunpack.c.l.b16 %v585
    %v897 = vunpack.c.h.b16 %v585
    %v898 = vunpack.c.l.b16 %v586
    %v899 = vunpack.c.h.b16 %v586
    %v900 = vunpack.c.l.b16 %v587
    %v901 = vunpack.c.h.b16 %v587
    %v902 = vunpack.c.l.b16 %v588
    %v903 = vunpack.c.h.b16 %v588
    %v904 = vunpack.c.l.b16 %v589
    %v905 = vunpack.c.h.b16 %v589
    %v906 = vunpack.c.l.b16 %v590
    %v907 = vunpack.c.h.b16 %v590
    %v908 = vunpack.c.l.b16 %v591
    %v909 = vunpack.c.h.b16 %v591
    %v910 = vunpack.c.l.b16 %v592
    %v911 = vunpack.c.h.b16 %v592
    %v912 = vunpack.c.l.b16 %v593
    %v913 = vunpack.c.h.b16 %v593
    %v914 = vunpack.c.l.b16 %v594
    %v915 = vunpack.c.h.b16 %v594
    %v916 = vunpack.c.l.b16 %v595
    %v917 = vunpack.c.h.b16 %v595
    %v918 = vunpack.c.l.b16 %v596
    %v919 = vunpack.c.h.b16 %v596
    %v920 = vunpack.c.l.b16 %v597
    %v921 = vunpack.c.h.b16 %v597
    %v922 = vunpack.c.l.b16 %v598
    %v923 = vunpack.c.h.b16 %v598
    %v924 = vunpack.c.l.b16 %v599
    %v925 = vunpack.c.h.b16 %v599
    %v926 = vunpack.c.l.b16 %v600
    %v927 = vunpack.c.h.b16 %v600
    %v928 = vunpack.c.l.b16 %v601
    %v929 = vunpack.c.h.b16 %v601
    %v930 = vunpack.c.l.b16 %v602
    %v931 = vunpack.c.h.b16 %v602
    %v932 = vunpack.c.l.b16 %v603
    %v933 = vunpack.c.h.b16 %v603
    %v934 = vunpack.c.l.b16 %v604
    %v935 = vunpack.c.h.b16 %v604
    %v936 = vunpack.c.l.b16 %v605
    %v937 = vunpack.c.h.b16 %v605
    %v938 = vunpack.c.l.b16 %v606
    %v939 = vunpack.c.h.b16 %v606
    %v940 = vunpack.c.l.b16 %v607
    %v941 = vunpack.c.h.b16 %v607
    %v942 = vunpack.c.l.b16 %v608
    %v943 = vunpack.c.h.b16 %v608
    %v944 = vunpack.c.l.b16 %v609
    %v945 = vunpack.c.h.b16 %v609
    %v946 = vunpack.c.l.b16 %v610
    %v947 = vunpack.c.h.b16 %v610
    %v948 = vunpack.c.l.b16 %v611
    %v949 = vunpack.c.h.b16 %v611
    %v950 = vunpack.c.l.b16 %v612
    %v951 = vunpack.c.h.b16 %v612
    %v952 = vunpack.c.l.b16 %v613
    %v953 = vunpack.c.h.b16 %v613
    %v954 = vunpack.c.l.b16 %v614
    %v955 = vunpack.c.h.b16 %v614
    %v956 = vunpack.c.l.b16 %v615
    %v957 = vunpack.c.h.b16 %v615
    %v958 = vunpack.c.l.b16 %v616
    %v959 = vunpack.c.h.b16 %v616
    %v960 = vunpack.c.l.b16 %v617
    %v961 = vunpack.c.h.b16 %v617
    %v962 = vunpack.c.l.b16 %v618
    %v963 = vunpack.c.h.b16 %v618
    %v964 = vunpack.c.l.b16 %v619
    %v965 = vunpack.c.h.b16 %v619
    %v966 = vunpack.c.l.b16 %v620
    %v967 = vunpack.c.h.b16 %v620
    %v968 = vunpack.c.l.b16 %v621
    %v969 = vunpack.c.h.b16 %v621
    %v970 = vunpack.c.l.b16 %v622
    %v971 = vunpack.c.h.b16 %v622
    %v972 = vunpack.c.l.b16 %v623
    %v973 = vunpack.c.h.b16 %v623
    %v974 = vunpack.c.l.b16 %v624
    %v975 = vunpack.c.h.b16 %v624
    %v976 = vunpack.c.l.b16 %v625
    %v977 = vunpack.c.h.b16 %v625
    %v978 = vunpack.c.l.b16 %v626
    %v979 = vunpack.c.h.b16 %v626
    %v980 = vunpack.c.l.b16 %v627
    %v981 = vunpack.c.h.b16 %v627
    %v982 = vunpack.c.l.b16 %v628
    %v983 = vunpack.c.h.b16 %v628
    %v984 = vunpack.c.l.b16 %v629
    %v985 = vunpack.c.h.b16 %v629
    %v986 = vunpack.c.l.b16 %v630
    %v987 = vunpack.c.h.b16 %v630
    %v988 = vunpack.c.l.b16 %v631
    %v989 = vunpack.c.h.b16 %v631
    %v990 = vunpack.c.l.b16 %v632
    %v991 = vunpack.c.h.b16 %v632
    %v992 = vunpack.c.l.b16 %v633
    %v993 = vunpack.c.h.b16 %v633
    %v994 = vunpack.c.l.b16 %v634
    %v995 = vunpack.c.h.b16 %v634
    %v996 = vunpack.c.l.b16 %v635
    %v997 = vunpack.c.h.b16 %v635
    %v998 = vunpack.c.l.b16 %v636
    %v999 = vunpack.c.h.b16 %v636
    %v1000 = vunpack.c.l.b16 %v637
    %v1001 = vunpack.c.h.b16 %v637
    %v1002 = vunpack.c.l.b16 %v638
    %v1003 = vunpack.c.h.b16 %v638
    %v1004 = vunpack.c.l.b16 %v639
    %v1005 = vunpack.c.h.b16 %v639
    %v1006 = vunpack.c.l.b16 %v640
    %v1007 = vunpack.c.h.b16 %v640
    %v1008 = vunpack.c.l.b16 %v641
    %v1009 = vunpack.c.h.b16 %v641
    %v1010 = vunpack.c.l.b16 %v642
    %v1011 = vunpack.c.h.b16 %v642
    %v1012 = vunpack.c.l.b16 %v643
    %v1013 = vunpack.c.h.b16 %v643
    %v1014 = vunpack.c.l.b16 %v644
    %v1015 = vunpack.c.h.b16 %v644
    %v1016 = vunpack.c.l.b16 %v645
    %v1017 = vunpack.c.h.b16 %v645
    %v1018 = vunpack.c.l.b16 %v646
    %v1019 = vunpack.c.h.b16 %v646
    %v1020 = vunpack.c.l.b16 %v647
    %v1021 = vunpack.c.h.b16 %v647
    %v1022 = vunpack.c.l.b16 %v648
    %v1023 = vunpack.c.h.b16 %v648
    %v1024 = vunpack.c.l.b16 %v649
    %v1025 = vunpack.c.h.b16 %v649
    %v1026 = vunpack.c.l.b16 %v650
    %v1027 = vunpack.c.h.b16 %v650
    %v1028 = vunpack.c.l.b16 %v651
    %v1029 = vunpack.c.h.b16 %v651
    %v1030 = vunpack.c.l.b16 %v652
    %v1031 = vunpack.c.h.b16 %v652
    %v1032 = vunpack.c.l.b16 %v653
    %v1033 = vunpack.c.h.b16 %v653
    %v1034 = vunpack.c.l.b16 %v654
    %v1035 = vunpack.c.h.b16 %v654
    %v1036 = vunpack.c.l.b16 %v655
    %v1037 = vunpack.c.h.b16 %v655
    %v1038 = vunpack.c.l.b16 %v656
    %v1039 = vunpack.c.h.b16 %v656
    %v1040 = vunpack.c.l.b16 %v657
    %v1041 = vunpack.c.h.b16 %v657
    %v1042 = vpack.c.b16 %v794, %v786
    %v1043 = vpack.c.b16 %v795, %v787
    %v1044 = vpack.c.b16 %v796, %v788
    %v1045 = vpack.c.b16 %v797, %v789
    %v1046 = vpack.c.b16 %v798, %v790
    %v1047 = vpack.c.b16 %v799, %v791
    %v1048 = vpack.c.b16 %v800, %v792
    %v1049 = vpack.c.b16 %v801, %v793
    %v1050 = vpack.c.b16 %v810, %v802
    %v1051 = vpack.c.b16 %v811, %v803
    %v1052 = vpack.c.b16 %v812, %v804
    %v1053 = vpack.c.b16 %v813, %v805
    %v1054 = vpack.c.b16 %v814, %v806
    %v1055 = vpack.c.b16 %v815, %v807
    %v1056 = vpack.c.b16 %v816, %v808
    %v1057 = vpack.c.b16 %v817, %v809
    %v1058 = vpack.c.b16 %v826, %v818
    %v1059 = vpack.c.b16 %v827, %v819
    %v1060 = vpack.c.b16 %v828, %v820
    %v1061 = vpack.c.b16 %v829, %v821
    %v1062 = vpack.c.b16 %v830, %v822
    %v1063 = vpack.c.b16 %v831, %v823
    %v1064 = vpack.c.b16 %v832, %v824
    %v1065 = vpack.c.b16 %v833, %v825
    %v1066 = vpack.c.b16 %v842, %v834
    %v1067 = vpack.c.b16 %v843, %v835
    %v1068 = vpack.c.b16 %v844, %v836
    %v1069 = vpack.c.b16 %v845, %v837
    %v1070 = vpack.c.b16 %v846, %v838
    %v1071 = vpack.c.b16 %v847, %v839
    %v1072 = vpack.c.b16 %v848, %v840
    %v1073 = vpack.c.b16 %v849, %v841
    %v1074 = vpack.c.b16 %v858, %v850
    %v1075 = vpack.c.b16 %v859, %v851
    %v1076 = vpack.c.b16 %v860, %v852
    %v1077 = vpack.c.b16 %v861, %v853
    %v1078 = vpack.c.b16 %v862, %v854
    %v1079 = vpack.c.b16 %v863, %v855
    %v1080 = vpack.c.b16 %v864, %v856
    %v1081 = vpack.c.b16 %v865, %v857
    %v1082 = vpack.c.b16 %v874, %v866
    %v1083 = vpack.c.b16 %v875, %v867
    %v1084 = vpack.c.b16 %v876, %v868
    %v1085 = vpack.c.b16 %v877, %v869
    %v1086 = vpack.c.b16 %v878, %v870
    %v1087 = vpack.c.b16 %v879, %v871
    %v1088 = vpack.c.b16 %v880, %v872
    %v1089 = vpack.c.b16 %v881, %v873
    %v1090 = vpack.c.b16 %v890, %v882
    %v1091 = vpack.c.b16 %v891, %v883
    %v1092 = vpack.c.b16 %v892, %v884
    %v1093 = vpack.c.b16 %v893, %v885
    %v1094 = vpack.c.b16 %v894, %v886
    %v1095 = vpack.c.b16 %v895, %v887
    %v1096 = vpack.c.b16 %v896, %v888
    %v1097 = vpack.c.b16 %v897, %v889
    %v1098 = vpack.c.b16 %v906, %v898
    %v1099 = vpack.c.b16 %v907, %v899
    %v1100 = vpack.c.b16 %v908, %v900
    %v1101 = vpack.c.b16 %v909, %v901
    %v1102 = vpack.c.b16 %v910, %v902
    %v1103 = vpack.c.b16 %v911, %v903
    %v1104 = vpack.c.b16 %v912, %v904
    %v1105 = vpack.c.b16 %v913, %v905
    %v1106 = vpack.c.b16 %v922, %v914
    %v1107 = vpack.c.b16 %v923, %v915
    %v1108 = vpack.c.b16 %v924, %v916
    %v1109 = vpack.c.b16 %v925, %v917
    %v1110 = vpack.c.b16 %v926, %v918
    %v1111 = vpack.c.b16 %v927, %v919
    %v1112 = vpack.c.b16 %v928, %v920
    %v1113 = vpack.c.b16 %v929, %v921
    %v1114 = vpack.c.b16 %v938, %v930
    %v1115 = vpack.c.b16 %v939, %v931
    %v1116 = vpack.c.b16 %v940, %v932
    %v1117 = vpack.c.b16 %v941, %v933
    %v1118 = vpack.c.b16 %v942, %v934
    %v1119 = vpack.c.b16 %v943, %v935
    %v1120 = vpack.c.b16 %v944, %v936
    %v1121 = vpack.c.b16 %v945, %v937
    %v1122 = vpack.c.b16 %v954, %v946
    %v1123 = vpack.c.b16 %v955, %v947
    %v1124 = vpack.c.b16 %v956, %v948
    %v1125 = vpack.c.b16 %v957, %v949
    %v1126 = vpack.c.b16 %v958, %v950
    %v1127 = vpack.c.b16 %v959, %v951
    %v1128 = vpack.c.b16 %v960, %v952
    %v1129 = vpack.c.b16 %v961, %v953
    %v1130 = vpack.c.b16 %v970, %v962
    %v1131 = vpack.c.b16 %v971, %v963
    %v1132 = vpack.c.b16 %v972, %v964
    %v1133 = vpack.c.b16 %v973, %v965
    %v1134 = vpack.c.b16 %v974, %v966
    %v1135 = vpack.c.b16 %v975, %v967
    %v1136 = vpack.c.b16 %v976, %v968
    %v1137 = vpack.c.b16 %v977, %v969
    %v1138 = vpack.c.b16 %v986, %v978
    %v1139 = vpack.c.b16 %v987, %v979
    %v1140 = vpack.c.b16 %v988, %v980
    %v1141 = vpack.c.b16 %v989, %v981
    %v1142 = vpack.c.b16 %v990, %v982
    %v1143 = vpack.c.b16 %v991, %v983
    %v1144 = vpack.c.b16 %v992, %v984
    %v1145 = vpack.c.b16 %v993, %v985
    %v1146 = vpack.c.b16 %v1002, %v994
    %v1147 = vpack.c.b16 %v1003, %v995
    %v1148 = vpack.c.b16 %v1004, %v996
    %v1149 = vpack.c.b16 %v1005, %v997
    %v1150 = vpack.c.b16 %v1006, %v998
    %v1151 = vpack.c.b16 %v1007, %v999
    %v1152 = vpack.c.b16 %v1008, %v1000
    %v1153 = vpack.c.b16 %v1009, %v1001
    %v1154 = vpack.c.b16 %v1018, %v1010
    %v1155 = vpack.c.b16 %v1019, %v1011
    %v1156 = vpack.c.b16 %v1020, %v1012
    %v1157 = vpack.c.b16 %v1021, %v1013
    %v1158 = vpack.c.b16 %v1022, %v1014
    %v1159 = vpack.c.b16 %v1023, %v1015
    %v1160 = vpack.c.b16 %v1024, %v1016
    %v1161 = vpack.c.b16 %v1025, %v1017
    %v1162 = vpack.c.b16 %v1034, %v1026
    %v1163 = vpack.c.b16 %v1035, %v1027
    %v1164 = vpack.c.b16 %v1036, %v1028
    %v1165 = vpack.c.b16 %v1037, %v1029
    %v1166 = vpack.c.b16 %v1038, %v1030
    %v1167 = vpack.c.b16 %v1039, %v1031
    %v1168 = vpack.c.b16 %v1040, %v1032
    %v1169 = vpack.c.b16 %v1041, %v1033
    %1298 = vmatpush.bf16.msra.mxu0 %v1098
    %1299 = vmatpush.bf16.msra.mxu0 %v1090
    %1300 = vmatpush.bf16.msra.mxu0 %v1082
    %1301 = vmatpush.bf16.msra.mxu0 %v1074
    %1302 = vmatpush.bf16.msra.mxu0 %v1066
    %1303 = vmatpush.bf16.msra.mxu0 %v1058
    %1304 = vmatpush.bf16.msra.mxu0 %v1050
    %1305 = vmatpush.bf16.msra.mxu0 %v1042
    %1306 = vmatmul.bf16.gmra.mxu0 0
    %v1307 = vpop.f32.mrf.mxu0
    %v1308 = vadd.f32 0.0, %v1307
    %v1309 = vpop.f32.mrf.mxu0
    %1310 = vdwg.mxu0
    %1311 = vmatpush.bf16.msra.mxu0 %v1162
    %1312 = vmatpush.bf16.msra.mxu0 %v1154
    %1313 = vmatpush.bf16.msra.mxu0 %v1146
    %1314 = vmatpush.bf16.msra.mxu0 %v1138
    %1315 = vmatpush.bf16.msra.mxu0 %v1130
    %1316 = vmatpush.bf16.msra.mxu0 %v1122
    %1317 = vmatpush.bf16.msra.mxu0 %v1114
    %1318 = vmatpush.bf16.msra.mxu0 %v1106
    %1319 = vmatmul.bf16.gmra.mxu0 0
    %v1320 = vpop.f32.mrf.mxu0
    %v1321 = vadd.f32 %v1308, %v1320
    %v1322 = vpop.f32.mrf.mxu0
    %1323 = vdwg.mxu0
    %1324 = vmatpush.bf16.msra.mxu0 %v1099
    %1325 = vmatpush.bf16.msra.mxu0 %v1091
    %1326 = vmatpush.bf16.msra.mxu0 %v1083
    %1327 = vmatpush.bf16.msra.mxu0 %v1075
    %1328 = vmatpush.bf16.msra.mxu0 %v1067
    %1329 = vmatpush.bf16.msra.mxu0 %v1059
    %1330 = vmatpush.bf16.msra.mxu0 %v1051
    %1331 = vmatpush.bf16.msra.mxu0 %v1043
    %1332 = vmatmul.bf16.gmra.mxu0 0
    %v1333 = vpop.f32.mrf.mxu0
    %v1334 = vadd.f32 0.0, %v1333
    %v1335 = vpop.f32.mrf.mxu0
    %1336 = vdwg.mxu0
    %1337 = vmatpush.bf16.msra.mxu0 %v1163
    %1338 = vmatpush.bf16.msra.mxu0 %v1155
    %1339 = vmatpush.bf16.msra.mxu0 %v1147
    %1340 = vmatpush.bf16.msra.mxu0 %v1139
    %1341 = vmatpush.bf16.msra.mxu0 %v1131
    %1342 = vmatpush.bf16.msra.mxu0 %v1123
    %1343 = vmatpush.bf16.msra.mxu0 %v1115
    %1344 = vmatpush.bf16.msra.mxu0 %v1107
    %1345 = vmatmul.bf16.gmra.mxu0 0
    %v1346 = vpop.f32.mrf.mxu0
    %v1347 = vadd.f32 %v1334, %v1346
    %v1348 = vpop.f32.mrf.mxu0
    %1349 = vdwg.mxu0
    %1350 = vmatpush.bf16.msra.mxu0 %v1100
    %1351 = vmatpush.bf16.msra.mxu0 %v1092
    %1352 = vmatpush.bf16.msra.mxu0 %v1084
    %1353 = vmatpush.bf16.msra.mxu0 %v1076
    %1354 = vmatpush.bf16.msra.mxu0 %v1068
    %1355 = vmatpush.bf16.msra.mxu0 %v1060
    %1356 = vmatpush.bf16.msra.mxu0 %v1052
    %1357 = vmatpush.bf16.msra.mxu0 %v1044
    %1358 = vmatmul.bf16.gmra.mxu0 0
    %v1359 = vpop.f32.mrf.mxu0
    %v1360 = vadd.f32 0.0, %v1359
    %v1361 = vpop.f32.mrf.mxu0
    %1362 = vdwg.mxu0
    %1363 = vmatpush.bf16.msra.mxu0 %v1164
    %1364 = vmatpush.bf16.msra.mxu0 %v1156
    %1365 = vmatpush.bf16.msra.mxu0 %v1148
    %1366 = vmatpush.bf16.msra.mxu0 %v1140
    %1367 = vmatpush.bf16.msra.mxu0 %v1132
    %1368 = vmatpush.bf16.msra.mxu0 %v1124
    %1369 = vmatpush.bf16.msra.mxu0 %v1116
    %1370 = vmatpush.bf16.msra.mxu0 %v1108
    %1371 = vmatmul.bf16.gmra.mxu0 0
    %v1372 = vpop.f32.mrf.mxu0
    %v1373 = vadd.f32 %v1360, %v1372
    %v1374 = vpop.f32.mrf.mxu0
    %1375 = vdwg.mxu0
    %1376 = vmatpush.bf16.msra.mxu0 %v1101
    %1377 = vmatpush.bf16.msra.mxu0 %v1093
    %1378 = vmatpush.bf16.msra.mxu0 %v1085
    %1379 = vmatpush.bf16.msra.mxu0 %v1077
    %1380 = vmatpush.bf16.msra.mxu0 %v1069
    %1381 = vmatpush.bf16.msra.mxu0 %v1061
    %1382 = vmatpush.bf16.msra.mxu0 %v1053
    %1383 = vmatpush.bf16.msra.mxu0 %v1045
    %1384 = vmatmul.bf16.gmra.mxu0 0
    %v1385 = vpop.f32.mrf.mxu0
    %v1386 = vadd.f32 0.0, %v1385
    %v1387 = vpop.f32.mrf.mxu0
    %1388 = vdwg.mxu0
    %1389 = vmatpush.bf16.msra.mxu0 %v1165
    %1390 = vmatpush.bf16.msra.mxu0 %v1157
    %1391 = vmatpush.bf16.msra.mxu0 %v1149
    %1392 = vmatpush.bf16.msra.mxu0 %v1141
    %1393 = vmatpush.bf16.msra.mxu0 %v1133
    %1394 = vmatpush.bf16.msra.mxu0 %v1125
    %1395 = vmatpush.bf16.msra.mxu0 %v1117
    %1396 = vmatpush.bf16.msra.mxu0 %v1109
    %1397 = vmatmul.bf16.gmra.mxu0 0
    %v1398 = vpop.f32.mrf.mxu0
    %v1399 = vadd.f32 %v1386, %v1398
    %v1400 = vpop.f32.mrf.mxu0
    %1401 = vdwg.mxu0
    %1402 = vmatpush.bf16.msra.mxu0 %v1102
    %1403 = vmatpush.bf16.msra.mxu0 %v1094
    %1404 = vmatpush.bf16.msra.mxu0 %v1086
    %1405 = vmatpush.bf16.msra.mxu0 %v1078
    %1406 = vmatpush.bf16.msra.mxu0 %v1070
    %1407 = vmatpush.bf16.msra.mxu0 %v1062
    %1408 = vmatpush.bf16.msra.mxu0 %v1054
    %1409 = vmatpush.bf16.msra.mxu0 %v1046
    %1410 = vmatmul.bf16.gmra.mxu0 0
    %v1411 = vpop.f32.mrf.mxu0
    %v1412 = vadd.f32 0.0, %v1411
    %v1413 = vpop.f32.mrf.mxu0
    %1414 = vdwg.mxu0
    %1415 = vmatpush.bf16.msra.mxu0 %v1166
    %1416 = vmatpush.bf16.msra.mxu0 %v1158
    %1417 = vmatpush.bf16.msra.mxu0 %v1150
    %1418 = vmatpush.bf16.msra.mxu0 %v1142
    %1419 = vmatpush.bf16.msra.mxu0 %v1134
    %1420 = vmatpush.bf16.msra.mxu0 %v1126
    %1421 = vmatpush.bf16.msra.mxu0 %v1118
    %1422 = vmatpush.bf16.msra.mxu0 %v1110
    %1423 = vmatmul.bf16.gmra.mxu0 0
    %v1424 = vpop.f32.mrf.mxu0
    %v1425 = vadd.f32 %v1412, %v1424
    %v1426 = vpop.f32.mrf.mxu0
    %1427 = vdwg.mxu0
    %1428 = vmatpush.bf16.msra.mxu0 %v1103
    %1429 = vmatpush.bf16.msra.mxu0 %v1095
    %1430 = vmatpush.bf16.msra.mxu0 %v1087
    %1431 = vmatpush.bf16.msra.mxu0 %v1079
    %1432 = vmatpush.bf16.msra.mxu0 %v1071
    %1433 = vmatpush.bf16.msra.mxu0 %v1063
    %1434 = vmatpush.bf16.msra.mxu0 %v1055
    %1435 = vmatpush.bf16.msra.mxu0 %v1047
    %1436 = vmatmul.bf16.gmra.mxu0 0
    %v1437 = vpop.f32.mrf.mxu0
    %v1438 = vadd.f32 0.0, %v1437
    %v1439 = vpop.f32.mrf.mxu0
    %1440 = vdwg.mxu0
    %1441 = vmatpush.bf16.msra.mxu0 %v1167
    %1442 = vmatpush.bf16.msra.mxu0 %v1159
    %1443 = vmatpush.bf16.msra.mxu0 %v1151
    %1444 = vmatpush.bf16.msra.mxu0 %v1143
    %1445 = vmatpush.bf16.msra.mxu0 %v1135
    %1446 = vmatpush.bf16.msra.mxu0 %v1127
    %1447 = vmatpush.bf16.msra.mxu0 %v1119
    %1448 = vmatpush.bf16.msra.mxu0 %v1111
    %1449 = vmatmul.bf16.gmra.mxu0 0
    %v1450 = vpop.f32.mrf.mxu0
    %v1451 = vadd.f32 %v1438, %v1450
    %v1452 = vpop.f32.mrf.mxu0
    %1453 = vdwg.mxu0
    %1454 = vmatpush.bf16.msra.mxu0 %v1104
    %1455 = vmatpush.bf16.msra.mxu0 %v1096
    %1456 = vmatpush.bf16.msra.mxu0 %v1088
    %1457 = vmatpush.bf16.msra.mxu0 %v1080
    %1458 = vmatpush.bf16.msra.mxu0 %v1072
    %1459 = vmatpush.bf16.msra.mxu0 %v1064
    %1460 = vmatpush.bf16.msra.mxu0 %v1056
    %1461 = vmatpush.bf16.msra.mxu0 %v1048
    %1462 = vmatmul.bf16.gmra.mxu0 0
    %v1463 = vpop.f32.mrf.mxu0
    %v1464 = vadd.f32 0.0, %v1463
    %v1465 = vpop.f32.mrf.mxu0
    %1466 = vdwg.mxu0
    %1467 = vmatpush.bf16.msra.mxu0 %v1168
    %1468 = vmatpush.bf16.msra.mxu0 %v1160
    %1469 = vmatpush.bf16.msra.mxu0 %v1152
    %1470 = vmatpush.bf16.msra.mxu0 %v1144
    %1471 = vmatpush.bf16.msra.mxu0 %v1136
    %1472 = vmatpush.bf16.msra.mxu0 %v1128
    %1473 = vmatpush.bf16.msra.mxu0 %v1120
    %1474 = vmatpush.bf16.msra.mxu0 %v1112
    %1475 = vmatmul.bf16.gmra.mxu0 0
    %v1476 = vpop.f32.mrf.mxu0
    %v1477 = vadd.f32 %v1464, %v1476
    %v1478 = vpop.f32.mrf.mxu0
    %1479 = vdwg.mxu0
    %1480 = vmatpush.bf16.msra.mxu0 %v1105
    %1481 = vmatpush.bf16.msra.mxu0 %v1097
    %1482 = vmatpush.bf16.msra.mxu0 %v1089
    %1483 = vmatpush.bf16.msra.mxu0 %v1081
    %1484 = vmatpush.bf16.msra.mxu0 %v1073
    %1485 = vmatpush.bf16.msra.mxu0 %v1065
    %1486 = vmatpush.bf16.msra.mxu0 %v1057
    %1487 = vmatpush.bf16.msra.mxu0 %v1049
    %1488 = vmatmul.bf16.gmra.mxu0 0
    %v1489 = vpop.f32.mrf.mxu0
    %v1490 = vadd.f32 0.0, %v1489
    %v1491 = vpop.f32.mrf.mxu0
    %1492 = vdwg.mxu0
    %1493 = vmatpush.bf16.msra.mxu0 %v1169
    %1494 = vmatpush.bf16.msra.mxu0 %v1161
    %1495 = vmatpush.bf16.msra.mxu0 %v1153
    %1496 = vmatpush.bf16.msra.mxu0 %v1145
    %1497 = vmatpush.bf16.msra.mxu0 %v1137
    %1498 = vmatpush.bf16.msra.mxu0 %v1129
    %1499 = vmatpush.bf16.msra.mxu0 %v1121
    %1500 = vmatpush.bf16.msra.mxu0 %v1113
    %1501 = vmatmul.bf16.gmra.mxu0 0
    %v1502 = vpop.f32.mrf.mxu0
    %v1503 = vadd.f32 %v1490, %v1502
    %v1504 = vpop.f32.mrf.mxu0
    %1505 = vdwg.mxu0
    %v1506 = vld [vmem:[#allocation2] sm:$0xff]
    %v1507 = vld [vmem:[#allocation2 + $0x8] sm:$0xff]
    %v1508 = vld [vmem:[#allocation2 + $0x10] sm:$0xff]
    %v1509 = vld [vmem:[#allocation2 + $0x18] sm:$0xff]
    %v1510 = vld [vmem:[#allocation2 + $0x20] sm:$0xff]
    %v1511 = vld [vmem:[#allocation2 + $0x28] sm:$0xff]
    %v1512 = vld [vmem:[#allocation2 + $0x30] sm:$0xff]
    %v1513 = vld [vmem:[#allocation2 + $0x38] sm:$0xff]
    %v1514 = vadd.f32 %v1506, %v1321
    %v1515 = vadd.f32 %v1507, %v1347
    %v1516 = vadd.f32 %v1508, %v1373
    %v1517 = vadd.f32 %v1509, %v1399
    %s1518 = scalar_lea.vmem [#allocation2], 448
    %v1519 = vld [vmem:[%s1518] sm:$0xff]
    %v1520 = vld [vmem:[%s1518 + $0x8] sm:$0xff]
    %v1521 = vld [vmem:[%s1518 + $0x10] sm:$0xff]
    %v1522 = vld [vmem:[%s1518 + $0x18] sm:$0xff]
    %v1523 = vld [vmem:[%s1518 + $0x20] sm:$0xff]
    %v1524 = vld [vmem:[%s1518 + $0x28] sm:$0xff]
    %v1525 = vld [vmem:[%s1518 + $0x30] sm:$0xff]
    %v1526 = vld [vmem:[%s1518 + $0x38] sm:$0xff]
    %v1527 = vadd.f32 %v1523, %v1425
    %v1528 = vadd.f32 %v1524, %v1451
    %v1529 = vadd.f32 %v1525, %v1477
    %v1530 = vadd.f32 %v1526, %v1503
    %v1531 = vxor.u32 %v1514, 2147483648
    %v1532 = vmul.f32 %v1531, 1.442695
    %v1533 = vpow.pop %v1532
    %v1534 = vadd.f32 %v1533, 1.0
    %v1535 = vrcp.pop %v1534
    %v1536 = vmul.f32 %v1534, %v1535
    %v1537 = vsub.f32 1.0, %v1536
    %v1538 = vmul.f32 %v1535, %v1537
    %v1539 = vadd.f32 %v1535, %v1538
    %vm1540 = vweird.f32 %v1534
    %vm1541 = vweird.f32 %v1535
    %vm1542 = vmor %vm1540, %vm1541
    %v1543 = vsel %vm1542, %v1535, %v1539
    %v1544 = vand.u32 2147483647, %v1534
    %vm1545 = vcmp.eq.f32.partialorder %v1544, 8.507059e+37
    %v1546 = vand.u32 %v1534, 2147483648
    %v1547 = vor.u32 1.1754944e-38, %v1546
    %v1548 = vsel %vm1545, %v1547, %v1543
    %v1549 = vmul.f32 1.0, %v1548
    %v1550 = vxor.u32 %v1515, 2147483648
    %v1551 = vmul.f32 %v1550, 1.442695
    %v1552 = vpow.pop %v1551
    %v1553 = vadd.f32 %v1552, 1.0
    %v1554 = vrcp.pop %v1553
    %v1555 = vmul.f32 %v1553, %v1554
    %v1556 = vsub.f32 1.0, %v1555
    %v1557 = vmul.f32 %v1554, %v1556
    %v1558 = vadd.f32 %v1554, %v1557
    %vm1559 = vweird.f32 %v1553
    %vm1560 = vweird.f32 %v1554
    %vm1561 = vmor %vm1559, %vm1560
    %v1562 = vsel %vm1561, %v1554, %v1558
    %v1563 = vand.u32 2147483647, %v1553
    %vm1564 = vcmp.eq.f32.partialorder %v1563, 8.507059e+37
    %v1565 = vand.u32 %v1553, 2147483648
    %v1566 = vor.u32 1.1754944e-38, %v1565
    %v1567 = vsel %vm1564, %v1566, %v1562
    %v1568 = vmul.f32 1.0, %v1567
    %v1569 = vtanh.pop %v1516
    %v1570 = vxor.u32 %v1517, 2147483648
    %v1571 = vmul.f32 %v1570, 1.442695
    %v1572 = vpow.pop %v1571
    %v1573 = vadd.f32 %v1572, 1.0
    %v1574 = vrcp.pop %v1573
    %v1575 = vmul.f32 %v1573, %v1574
    %v1576 = vsub.f32 1.0, %v1575
    %v1577 = vmul.f32 %v1574, %v1576
    %v1578 = vadd.f32 %v1574, %v1577
    %vm1579 = vweird.f32 %v1573
    %vm1580 = vweird.f32 %v1574
    %vm1581 = vmor %vm1579, %vm1580
    %v1582 = vsel %vm1581, %v1574, %v1578
    %v1583 = vand.u32 2147483647, %v1573
    %vm1584 = vcmp.eq.f32.partialorder %v1583, 8.507059e+37
    %v1585 = vand.u32 %v1573, 2147483648
    %v1586 = vor.u32 1.1754944e-38, %v1585
    %v1587 = vsel %vm1584, %v1586, %v1582
    %v1588 = vmul.f32 1.0, %v1587
    %v1589 = vmul.f32 %v1568, 0.0
    %v1590 = vmul.f32 %v1549, %v1569
    %v1591 = vadd.f32 %v1589, %v1590
    %v1592 = vtanh.pop %v1591
    %v1593 = vmul.f32 %v1588, %v1592
    %v1594 = vxor.u32 %v1527, 2147483648
    %v1595 = vmul.f32 %v1594, 1.442695
    %v1596 = vpow.pop %v1595
    %v1597 = vadd.f32 %v1596, 1.0
    %v1598 = vrcp.pop %v1597
    %v1599 = vmul.f32 %v1597, %v1598
    %v1600 = vsub.f32 1.0, %v1599
    %v1601 = vmul.f32 %v1598, %v1600
    %v1602 = vadd.f32 %v1598, %v1601
    %vm1603 = vweird.f32 %v1597
    %vm1604 = vweird.f32 %v1598
    %vm1605 = vmor %vm1603, %vm1604
    %v1606 = vsel %vm1605, %v1598, %v1602
    %v1607 = vand.u32 2147483647, %v1597
    %vm1608 = vcmp.eq.f32.partialorder %v1607, 8.507059e+37
    %v1609 = vand.u32 %v1597, 2147483648
    %v1610 = vor.u32 1.1754944e-38, %v1609
    %v1611 = vsel %vm1608, %v1610, %v1606
    %v1612 = vmul.f32 1.0, %v1611
    %v1613 = vxor.u32 %v1528, 2147483648
    %v1614 = vmul.f32 %v1613, 1.442695
    %v1615 = vpow.pop %v1614
    %v1616 = vadd.f32 %v1615, 1.0
    %v1617 = vrcp.pop %v1616
    %v1618 = vmul.f32 %v1616, %v1617
    %v1619 = vsub.f32 1.0, %v1618
    %v1620 = vmul.f32 %v1617, %v1619
    %v1621 = vadd.f32 %v1617, %v1620
    %vm1622 = vweird.f32 %v1616
    %vm1623 = vweird.f32 %v1617
    %vm1624 = vmor %vm1622, %vm1623
    %v1625 = vsel %vm1624, %v1617, %v1621
    %v1626 = vand.u32 2147483647, %v1616
    %vm1627 = vcmp.eq.f32.partialorder %v1626, 8.507059e+37
    %v1628 = vand.u32 %v1616, 2147483648
    %v1629 = vor.u32 1.1754944e-38, %v1628
    %v1630 = vsel %vm1627, %v1629, %v1625
    %v1631 = vmul.f32 1.0, %v1630
    %v1632 = vtanh.pop %v1529
    %v1633 = vxor.u32 %v1530, 2147483648
    %v1634 = vmul.f32 %v1633, 1.442695
    %v1635 = vpow.pop %v1634
    %v1636 = vadd.f32 %v1635, 1.0
    %v1637 = vrcp.pop %v1636
    %v1638 = vmul.f32 %v1636, %v1637
    %v1639 = vsub.f32 1.0, %v1638
    %v1640 = vmul.f32 %v1637, %v1639
    %v1641 = vadd.f32 %v1637, %v1640
    %vm1642 = vweird.f32 %v1636
    %vm1643 = vweird.f32 %v1637
    %vm1644 = vmor %vm1642, %vm1643
    %v1645 = vsel %vm1644, %v1637, %v1641
    %v1646 = vand.u32 2147483647, %v1636
    %vm1647 = vcmp.eq.f32.partialorder %v1646, 8.507059e+37
    %v1648 = vand.u32 %v1636, 2147483648
    %v1649 = vor.u32 1.1754944e-38, %v1648
    %v1650 = vsel %vm1647, %v1649, %v1645
    %v1651 = vmul.f32 1.0, %v1650
    %v1652 = vmul.f32 %v1631, 0.0
    %v1653 = vmul.f32 %v1612, %v1632
    %v1654 = vadd.f32 %v1652, %v1653
    %v1655 = vtanh.pop %v1654
    %v1656 = vmul.f32 %v1651, %v1655
    %v1657 = vpack.c.bf16 %v1593, %v1593
    %v1658 = vpack.c.bf16 %v1656, %v1656
    %1659 = vmatpush.bf16.msra.mxu0 %v1098
    %1660 = vmatpush.bf16.msra.mxu0 %v1090
    %1661 = vmatpush.bf16.msra.mxu0 %v1082
    %1662 = vmatpush.bf16.msra.mxu0 %v1074
    %1663 = vmatpush.bf16.msra.mxu0 %v1066
    %1664 = vmatpush.bf16.msra.mxu0 %v1058
    %1665 = vmatpush.bf16.msra.mxu0 %v1050
    %1666 = vmatpush.bf16.msra.mxu0 %v1042
    %1667 = vmatmul.bf16.gmra.mxu0 %v1657
    %v1668 = vpop.f32.mrf.mxu0
    %v1669 = vadd.f32 0.0, %v1668
    %v1670 = vpop.f32.mrf.mxu0
    %1671 = vdwg.mxu0
    %1672 = vmatpush.bf16.msra.mxu0 %v1162
    %1673 = vmatpush.bf16.msra.mxu0 %v1154
    %1674 = vmatpush.bf16.msra.mxu0 %v1146
    %1675 = vmatpush.bf16.msra.mxu0 %v1138
    %1676 = vmatpush.bf16.msra.mxu0 %v1130
    %1677 = vmatpush.bf16.msra.mxu0 %v1122
    %1678 = vmatpush.bf16.msra.mxu0 %v1114
    %1679 = vmatpush.bf16.msra.mxu0 %v1106
    %1680 = vmatmul.bf16.gmra.mxu0 %v1658
    %v1681 = vpop.f32.mrf.mxu0
    %v1682 = vadd.f32 %v1669, %v1681
    %v1683 = vpop.f32.mrf.mxu0
    %1684 = vdwg.mxu0
    %1685 = vmatpush.bf16.msra.mxu0 %v1099
    %1686 = vmatpush.bf16.msra.mxu0 %v1091
    %1687 = vmatpush.bf16.msra.mxu0 %v1083
    %1688 = vmatpush.bf16.msra.mxu0 %v1075
    %1689 = vmatpush.bf16.msra.mxu0 %v1067
    %1690 = vmatpush.bf16.msra.mxu0 %v1059
    %1691 = vmatpush.bf16.msra.mxu0 %v1051
    %1692 = vmatpush.bf16.msra.mxu0 %v1043
    %1693 = vmatmul.bf16.gmra.mxu0 %v1657
    %v1694 = vpop.f32.mrf.mxu0
    %v1695 = vadd.f32 0.0, %v1694
    %v1696 = vpop.f32.mrf.mxu0
    %1697 = vdwg.mxu0
    %1698 = vmatpush.bf16.msra.mxu0 %v1163
    %1699 = vmatpush.bf16.msra.mxu0 %v1155
    %1700 = vmatpush.bf16.msra.mxu0 %v1147
    %1701 = vmatpush.bf16.msra.mxu0 %v1139
    %1702 = vmatpush.bf16.msra.mxu0 %v1131
    %1703 = vmatpush.bf16.msra.mxu0 %v1123
    %1704 = vmatpush.bf16.msra.mxu0 %v1115
    %1705 = vmatpush.bf16.msra.mxu0 %v1107
    %1706 = vmatmul.bf16.gmra.mxu0 %v1658
    %v1707 = vpop.f32.mrf.mxu0
    %v1708 = vadd.f32 %v1695, %v1707
    %v1709 = vpop.f32.mrf.mxu0
    %1710 = vdwg.mxu0
    %1711 = vmatpush.bf16.msra.mxu0 %v1100
    %1712 = vmatpush.bf16.msra.mxu0 %v1092
    %1713 = vmatpush.bf16.msra.mxu0 %v1084
    %1714 = vmatpush.bf16.msra.mxu0 %v1076
    %1715 = vmatpush.bf16.msra.mxu0 %v1068
    %1716 = vmatpush.bf16.msra.mxu0 %v1060
    %1717 = vmatpush.bf16.msra.mxu0 %v1052
    %1718 = vmatpush.bf16.msra.mxu0 %v1044
    %1719 = vmatmul.bf16.gmra.mxu0 %v1657
    %v1720 = vpop.f32.mrf.mxu0
    %v1721 = vadd.f32 0.0, %v1720
    %v1722 = vpop.f32.mrf.mxu0
    %1723 = vdwg.mxu0
    %1724 = vmatpush.bf16.msra.mxu0 %v1164
    %1725 = vmatpush.bf16.msra.mxu0 %v1156
    %1726 = vmatpush.bf16.msra.mxu0 %v1148
    %1727 = vmatpush.bf16.msra.mxu0 %v1140
    %1728 = vmatpush.bf16.msra.mxu0 %v1132
    %1729 = vmatpush.bf16.msra.mxu0 %v1124
    %1730 = vmatpush.bf16.msra.mxu0 %v1116
    %1731 = vmatpush.bf16.msra.mxu0 %v1108
    %1732 = vmatmul.bf16.gmra.mxu0 %v1658
    %v1733 = vpop.f32.mrf.mxu0
    %v1734 = vadd.f32 %v1721, %v1733
    %v1735 = vpop.f32.mrf.mxu0
    %1736 = vdwg.mxu0
    %1737 = vmatpush.bf16.msra.mxu0 %v1101
    %1738 = vmatpush.bf16.msra.mxu0 %v1093
    %1739 = vmatpush.bf16.msra.mxu0 %v1085
    %1740 = vmatpush.bf16.msra.mxu0 %v1077
    %1741 = vmatpush.bf16.msra.mxu0 %v1069
    %1742 = vmatpush.bf16.msra.mxu0 %v1061
    %1743 = vmatpush.bf16.msra.mxu0 %v1053
    %1744 = vmatpush.bf16.msra.mxu0 %v1045
    %1745 = vmatmul.bf16.gmra.mxu0 %v1657
    %v1746 = vpop.f32.mrf.mxu0
    %v1747 = vadd.f32 0.0, %v1746
    %v1748 = vpop.f32.mrf.mxu0
    %1749 = vdwg.mxu0
    %1750 = vmatpush.bf16.msra.mxu0 %v1165
    %1751 = vmatpush.bf16.msra.mxu0 %v1157
    %1752 = vmatpush.bf16.msra.mxu0 %v1149
    %1753 = vmatpush.bf16.msra.mxu0 %v1141
    %1754 = vmatpush.bf16.msra.mxu0 %v1133
    %1755 = vmatpush.bf16.msra.mxu0 %v1125
    %1756 = vmatpush.bf16.msra.mxu0 %v1117
    %1757 = vmatpush.bf16.msra.mxu0 %v1109
    %1758 = vmatmul.bf16.gmra.mxu0 %v1658
    %v1759 = vpop.f32.mrf.mxu0
    %v1760 = vadd.f32 %v1747, %v1759
    %v1761 = vpop.f32.mrf.mxu0
    %1762 = vdwg.mxu0
    %1763 = vmatpush.bf16.msra.mxu0 %v1102
    %1764 = vmatpush.bf16.msra.mxu0 %v1094
    %1765 = vmatpush.bf16.msra.mxu0 %v1086
    %1766 = vmatpush.bf16.msra.mxu0 %v1078
    %1767 = vmatpush.bf16.msra.mxu0 %v1070
    %1768 = vmatpush.bf16.msra.mxu0 %v1062
    %1769 = vmatpush.bf16.msra.mxu0 %v1054
    %1770 = vmatpush.bf16.msra.mxu0 %v1046
    %1771 = vmatmul.bf16.gmra.mxu0 %v1657
    %v1772 = vpop.f32.mrf.mxu0
    %v1773 = vadd.f32 0.0, %v1772
    %v1774 = vpop.f32.mrf.mxu0
    %1775 = vdwg.mxu0
    %1776 = vmatpush.bf16.msra.mxu0 %v1166
    %1777 = vmatpush.bf16.msra.mxu0 %v1158
    %1778 = vmatpush.bf16.msra.mxu0 %v1150
    %1779 = vmatpush.bf16.msra.mxu0 %v1142
    %1780 = vmatpush.bf16.msra.mxu0 %v1134
    %1781 = vmatpush.bf16.msra.mxu0 %v1126
    %1782 = vmatpush.bf16.msra.mxu0 %v1118
    %1783 = vmatpush.bf16.msra.mxu0 %v1110
    %1784 = vmatmul.bf16.gmra.mxu0 %v1658
    %v1785 = vpop.f32.mrf.mxu0
    %v1786 = vadd.f32 %v1773, %v1785
    %v1787 = vpop.f32.mrf.mxu0
    %1788 = vdwg.mxu0
    %1789 = vmatpush.bf16.msra.mxu0 %v1103
    %1790 = vmatpush.bf16.msra.mxu0 %v1095
    %1791 = vmatpush.bf16.msra.mxu0 %v1087
    %1792 = vmatpush.bf16.msra.mxu0 %v1079
    %1793 = vmatpush.bf16.msra.mxu0 %v1071
    %1794 = vmatpush.bf16.msra.mxu0 %v1063
    %1795 = vmatpush.bf16.msra.mxu0 %v1055
    %1796 = vmatpush.bf16.msra.mxu0 %v1047
    %1797 = vmatmul.bf16.gmra.mxu0 %v1657
    %v1798 = vpop.f32.mrf.mxu0
    %v1799 = vadd.f32 0.0, %v1798
    %v1800 = vpop.f32.mrf.mxu0
    %1801 = vdwg.mxu0
    %1802 = vmatpush.bf16.msra.mxu0 %v1167
    %1803 = vmatpush.bf16.msra.mxu0 %v1159
    %1804 = vmatpush.bf16.msra.mxu0 %v1151
    %1805 = vmatpush.bf16.msra.mxu0 %v1143
    %1806 = vmatpush.bf16.msra.mxu0 %v1135
    %1807 = vmatpush.bf16.msra.mxu0 %v1127
    %1808 = vmatpush.bf16.msra.mxu0 %v1119
    %1809 = vmatpush.bf16.msra.mxu0 %v1111
    %1810 = vmatmul.bf16.gmra.mxu0 %v1658
    %v1811 = vpop.f32.mrf.mxu0
    %v1812 = vadd.f32 %v1799, %v1811
    %v1813 = vpop.f32.mrf.mxu0
    %1814 = vdwg.mxu0
    %1815 = vmatpush.bf16.msra.mxu0 %v1104
    %1816 = vmatpush.bf16.msra.mxu0 %v1096
    %1817 = vmatpush.bf16.msra.mxu0 %v1088
    %1818 = vmatpush.bf16.msra.mxu0 %v1080
    %1819 = vmatpush.bf16.msra.mxu0 %v1072
    %1820 = vmatpush.bf16.msra.mxu0 %v1064
    %1821 = vmatpush.bf16.msra.mxu0 %v1056
    %1822 = vmatpush.bf16.msra.mxu0 %v1048
    %1823 = vmatmul.bf16.gmra.mxu0 %v1657
    %v1824 = vpop.f32.mrf.mxu0
    %v1825 = vadd.f32 0.0, %v1824
    %v1826 = vpop.f32.mrf.mxu0
    %1827 = vdwg.mxu0
    %1828 = vmatpush.bf16.msra.mxu0 %v1168
    %1829 = vmatpush.bf16.msra.mxu0 %v1160
    %1830 = vmatpush.bf16.msra.mxu0 %v1152
    %1831 = vmatpush.bf16.msra.mxu0 %v1144
    %1832 = vmatpush.bf16.msra.mxu0 %v1136
    %1833 = vmatpush.bf16.msra.mxu0 %v1128
    %1834 = vmatpush.bf16.msra.mxu0 %v1120
    %1835 = vmatpush.bf16.msra.mxu0 %v1112
    %1836 = vmatmul.bf16.gmra.mxu0 %v1658
    %v1837 = vpop.f32.mrf.mxu0
    %v1838 = vadd.f32 %v1825, %v1837
    %v1839 = vpop.f32.mrf.mxu0
    %1840 = vdwg.mxu0
    %1841 = vmatpush.bf16.msra.mxu0 %v1105
    %1842 = vmatpush.bf16.msra.mxu0 %v1097
    %1843 = vmatpush.bf16.msra.mxu0 %v1089
    %1844 = vmatpush.bf16.msra.mxu0 %v1081
    %1845 = vmatpush.bf16.msra.mxu0 %v1073
    %1846 = vmatpush.bf16.msra.mxu0 %v1065
    %1847 = vmatpush.bf16.msra.mxu0 %v1057
    %1848 = vmatpush.bf16.msra.mxu0 %v1049
    %1849 = vmatmul.bf16.gmra.mxu0 %v1657
    %v1850 = vpop.f32.mrf.mxu0
    %v1851 = vadd.f32 0.0, %v1850
    %v1852 = vpop.f32.mrf.mxu0
    %1853 = vdwg.mxu0
    %1854 = vmatpush.bf16.msra.mxu0 %v1169
    %1855 = vmatpush.bf16.msra.mxu0 %v1161
    %1856 = vmatpush.bf16.msra.mxu0 %v1153
    %1857 = vmatpush.bf16.msra.mxu0 %v1145
    %1858 = vmatpush.bf16.msra.mxu0 %v1137
    %1859 = vmatpush.bf16.msra.mxu0 %v1129
    %1860 = vmatpush.bf16.msra.mxu0 %v1121
    %1861 = vmatpush.bf16.msra.mxu0 %v1113
    %1862 = vmatmul.bf16.gmra.mxu0 %v1658
    %v1863 = vpop.f32.mrf.mxu0
    %v1864 = vadd.f32 %v1851, %v1863
    %v1865 = vpop.f32.mrf.mxu0
    %1866 = vdwg.mxu0
    %s1867 = scalar_lea.vmem [#allocation2], 64
    %v1868 = vld [vmem:[%s1867] sm:$0xff]
    %v1869 = vld [vmem:[%s1867 + $0x8] sm:$0xff]
    %v1870 = vld [vmem:[%s1867 + $0x10] sm:$0xff]
    %v1871 = vld [vmem:[%s1867 + $0x18] sm:$0xff]
    %v1872 = vld [vmem:[%s1867 + $0x20] sm:$0xff]
    %v1873 = vld [vmem:[%s1867 + $0x28] sm:$0xff]
    %v1874 = vld [vmem:[%s1867 + $0x30] sm:$0xff]
    %v1875 = vld [vmem:[%s1867 + $0x38] sm:$0xff]
    %v1876 = vadd.f32 %v1868, %v1682
    %v1877 = vadd.f32 %v1869, %v1708
    %v1878 = vadd.f32 %v1870, %v1734
    %v1879 = vadd.f32 %v1871, %v1760
    %s1880 = scalar_lea.vmem [#allocation2], 384
    %v1881 = vld [vmem:[%s1880] sm:$0xff]
    %v1882 = vld [vmem:[%s1880 + $0x8] sm:$0xff]
    %v1883 = vld [vmem:[%s1880 + $0x10] sm:$0xff]
    %v1884 = vld [vmem:[%s1880 + $0x18] sm:$0xff]
    %v1885 = vld [vmem:[%s1880 + $0x20] sm:$0xff]
    %v1886 = vld [vmem:[%s1880 + $0x28] sm:$0xff]
    %v1887 = vld [vmem:[%s1880 + $0x30] sm:$0xff]
    %v1888 = vld [vmem:[%s1880 + $0x38] sm:$0xff]
    %v1889 = vadd.f32 %v1885, %v1786
    %v1890 = vadd.f32 %v1886, %v1812
    %v1891 = vadd.f32 %v1887, %v1838
    %v1892 = vadd.f32 %v1888, %v1864
    %v1893 = vxor.u32 %v1876, 2147483648
    %v1894 = vmul.f32 %v1893, 1.442695
    %v1895 = vpow.pop %v1894
    %v1896 = vadd.f32 %v1895, 1.0
    %v1897 = vrcp.pop %v1896
    %v1898 = vmul.f32 %v1896, %v1897
    %v1899 = vsub.f32 1.0, %v1898
    %v1900 = vmul.f32 %v1897, %v1899
    %v1901 = vadd.f32 %v1897, %v1900
    %vm1902 = vweird.f32 %v1896
    %vm1903 = vweird.f32 %v1897
    %vm1904 = vmor %vm1902, %vm1903
    %v1905 = vsel %vm1904, %v1897, %v1901
    %v1906 = vand.u32 2147483647, %v1896
    %vm1907 = vcmp.eq.f32.partialorder %v1906, 8.507059e+37
    %v1908 = vand.u32 %v1896, 2147483648
    %v1909 = vor.u32 1.1754944e-38, %v1908
    %v1910 = vsel %vm1907, %v1909, %v1905
    %v1911 = vmul.f32 1.0, %v1910
    %v1912 = vxor.u32 %v1877, 2147483648
    %v1913 = vmul.f32 %v1912, 1.442695
    %v1914 = vpow.pop %v1913
    %v1915 = vadd.f32 %v1914, 1.0
    %v1916 = vrcp.pop %v1915
    %v1917 = vmul.f32 %v1915, %v1916
    %v1918 = vsub.f32 1.0, %v1917
    %v1919 = vmul.f32 %v1916, %v1918
    %v1920 = vadd.f32 %v1916, %v1919
    %vm1921 = vweird.f32 %v1915
    %vm1922 = vweird.f32 %v1916
    %vm1923 = vmor %vm1921, %vm1922
    %v1924 = vsel %vm1923, %v1916, %v1920
    %v1925 = vand.u32 2147483647, %v1915
    %vm1926 = vcmp.eq.f32.partialorder %v1925, 8.507059e+37
    %v1927 = vand.u32 %v1915, 2147483648
    %v1928 = vor.u32 1.1754944e-38, %v1927
    %v1929 = vsel %vm1926, %v1928, %v1924
    %v1930 = vmul.f32 1.0, %v1929
    %v1931 = vtanh.pop %v1878
    %v1932 = vxor.u32 %v1879, 2147483648
    %v1933 = vmul.f32 %v1932, 1.442695
    %v1934 = vpow.pop %v1933
    %v1935 = vadd.f32 %v1934, 1.0
    %v1936 = vrcp.pop %v1935
    %v1937 = vmul.f32 %v1935, %v1936
    %v1938 = vsub.f32 1.0, %v1937
    %v1939 = vmul.f32 %v1936, %v1938
    %v1940 = vadd.f32 %v1936, %v1939
    %vm1941 = vweird.f32 %v1935
    %vm1942 = vweird.f32 %v1936
    %vm1943 = vmor %vm1941, %vm1942
    %v1944 = vsel %vm1943, %v1936, %v1940
    %v1945 = vand.u32 2147483647, %v1935
    %vm1946 = vcmp.eq.f32.partialorder %v1945, 8.507059e+37
    %v1947 = vand.u32 %v1935, 2147483648
    %v1948 = vor.u32 1.1754944e-38, %v1947
    %v1949 = vsel %vm1946, %v1948, %v1944
    %v1950 = vmul.f32 1.0, %v1949
    %v1951 = vmul.f32 %v1930, %v1591
    %v1952 = vmul.f32 %v1911, %v1931
    %v1953 = vadd.f32 %v1951, %v1952
    %v1954 = vtanh.pop %v1953
    %v1955 = vmul.f32 %v1950, %v1954
    %v1956 = vxor.u32 %v1889, 2147483648
    %v1957 = vmul.f32 %v1956, 1.442695
    %v1958 = vpow.pop %v1957
    %v1959 = vadd.f32 %v1958, 1.0
    %v1960 = vrcp.pop %v1959
    %v1961 = vmul.f32 %v1959, %v1960
    %v1962 = vsub.f32 1.0, %v1961
    %v1963 = vmul.f32 %v1960, %v1962
    %v1964 = vadd.f32 %v1960, %v1963
    %vm1965 = vweird.f32 %v1959
    %vm1966 = vweird.f32 %v1960
    %vm1967 = vmor %vm1965, %vm1966
    %v1968 = vsel %vm1967, %v1960, %v1964
    %v1969 = vand.u32 2147483647, %v1959
    %vm1970 = vcmp.eq.f32.partialorder %v1969, 8.507059e+37
    %v1971 = vand.u32 %v1959, 2147483648
    %v1972 = vor.u32 1.1754944e-38, %v1971
    %v1973 = vsel %vm1970, %v1972, %v1968
    %v1974 = vmul.f32 1.0, %v1973
    %v1975 = vxor.u32 %v1890, 2147483648
    %v1976 = vmul.f32 %v1975, 1.442695
    %v1977 = vpow.pop %v1976
    %v1978 = vadd.f32 %v1977, 1.0
    %v1979 = vrcp.pop %v1978
    %v1980 = vmul.f32 %v1978, %v1979
    %v1981 = vsub.f32 1.0, %v1980
    %v1982 = vmul.f32 %v1979, %v1981
    %v1983 = vadd.f32 %v1979, %v1982
    %vm1984 = vweird.f32 %v1978
    %vm1985 = vweird.f32 %v1979
    %vm1986 = vmor %vm1984, %vm1985
    %v1987 = vsel %vm1986, %v1979, %v1983
    %v1988 = vand.u32 2147483647, %v1978
    %vm1989 = vcmp.eq.f32.partialorder %v1988, 8.507059e+37
    %v1990 = vand.u32 %v1978, 2147483648
    %v1991 = vor.u32 1.1754944e-38, %v1990
    %v1992 = vsel %vm1989, %v1991, %v1987
    %v1993 = vmul.f32 1.0, %v1992
    %v1994 = vtanh.pop %v1891
    %v1995 = vxor.u32 %v1892, 2147483648
    %v1996 = vmul.f32 %v1995, 1.442695
    %v1997 = vpow.pop %v1996
    %v1998 = vadd.f32 %v1997, 1.0
    %v1999 = vrcp.pop %v1998
    %v2000 = vmul.f32 %v1998, %v1999
    %v2001 = vsub.f32 1.0, %v2000
    %v2002 = vmul.f32 %v1999, %v2001
    %v2003 = vadd.f32 %v1999, %v2002
    %vm2004 = vweird.f32 %v1998
    %vm2005 = vweird.f32 %v1999
    %vm2006 = vmor %vm2004, %vm2005
    %v2007 = vsel %vm2006, %v1999, %v2003
    %v2008 = vand.u32 2147483647, %v1998
    %vm2009 = vcmp.eq.f32.partialorder %v2008, 8.507059e+37
    %v2010 = vand.u32 %v1998, 2147483648
    %v2011 = vor.u32 1.1754944e-38, %v2010
    %v2012 = vsel %vm2009, %v2011, %v2007
    %v2013 = vmul.f32 1.0, %v2012
    %v2014 = vmul.f32 %v1993, %v1654
    %v2015 = vmul.f32 %v1974, %v1994
    %v2016 = vadd.f32 %v2014, %v2015
    %v2017 = vtanh.pop %v2016
    %v2018 = vmul.f32 %v2013, %v2017
    %v2019 = vmax.f32 %v1593, %v1955
    %v2020 = vmax.f32 %v1656, %v2018
    %v2021 = vpack.c.bf16 %v1955, %v1955
    %v2022 = vpack.c.bf16 %v2018, %v2018
    %2023 = vmatpush.bf16.msra.mxu0 %v1098
    %2024 = vmatpush.bf16.msra.mxu0 %v1090
    %2025 = vmatpush.bf16.msra.mxu0 %v1082
    %2026 = vmatpush.bf16.msra.mxu0 %v1074
    %2027 = vmatpush.bf16.msra.mxu0 %v1066
    %2028 = vmatpush.bf16.msra.mxu0 %v1058
    %2029 = vmatpush.bf16.msra.mxu0 %v1050
    %2030 = vmatpush.bf16.msra.mxu0 %v1042
    %2031 = vmatmul.bf16.gmra.mxu0 %v2021
    %v2032 = vpop.f32.mrf.mxu0
    %v2033 = vadd.f32 0.0, %v2032
    %v2034 = vpop.f32.mrf.mxu0
    %2035 = vdwg.mxu0
    %2036 = vmatpush.bf16.msra.mxu0 %v1162
    %2037 = vmatpush.bf16.msra.mxu0 %v1154
    %2038 = vmatpush.bf16.msra.mxu0 %v1146
    %2039 = vmatpush.bf16.msra.mxu0 %v1138
    %2040 = vmatpush.bf16.msra.mxu0 %v1130
    %2041 = vmatpush.bf16.msra.mxu0 %v1122
    %2042 = vmatpush.bf16.msra.mxu0 %v1114
    %2043 = vmatpush.bf16.msra.mxu0 %v1106
    %2044 = vmatmul.bf16.gmra.mxu0 %v2022
    %v2045 = vpop.f32.mrf.mxu0
    %v2046 = vadd.f32 %v2033, %v2045
    %v2047 = vpop.f32.mrf.mxu0
    %2048 = vdwg.mxu0
    %2049 = vmatpush.bf16.msra.mxu0 %v1099
    %2050 = vmatpush.bf16.msra.mxu0 %v1091
    %2051 = vmatpush.bf16.msra.mxu0 %v1083
    %2052 = vmatpush.bf16.msra.mxu0 %v1075
    %2053 = vmatpush.bf16.msra.mxu0 %v1067
    %2054 = vmatpush.bf16.msra.mxu0 %v1059
    %2055 = vmatpush.bf16.msra.mxu0 %v1051
    %2056 = vmatpush.bf16.msra.mxu0 %v1043
    %2057 = vmatmul.bf16.gmra.mxu0 %v2021
    %v2058 = vpop.f32.mrf.mxu0
    %v2059 = vadd.f32 0.0, %v2058
    %v2060 = vpop.f32.mrf.mxu0
    %2061 = vdwg.mxu0
    %2062 = vmatpush.bf16.msra.mxu0 %v1163
    %2063 = vmatpush.bf16.msra.mxu0 %v1155
    %2064 = vmatpush.bf16.msra.mxu0 %v1147
    %2065 = vmatpush.bf16.msra.mxu0 %v1139
    %2066 = vmatpush.bf16.msra.mxu0 %v1131
    %2067 = vmatpush.bf16.msra.mxu0 %v1123
    %2068 = vmatpush.bf16.msra.mxu0 %v1115
    %2069 = vmatpush.bf16.msra.mxu0 %v1107
    %2070 = vmatmul.bf16.gmra.mxu0 %v2022
    %v2071 = vpop.f32.mrf.mxu0
    %v2072 = vadd.f32 %v2059, %v2071
    %v2073 = vpop.f32.mrf.mxu0
    %2074 = vdwg.mxu0
    %2075 = vmatpush.bf16.msra.mxu0 %v1100
    %2076 = vmatpush.bf16.msra.mxu0 %v1092
    %2077 = vmatpush.bf16.msra.mxu0 %v1084
    %2078 = vmatpush.bf16.msra.mxu0 %v1076
    %2079 = vmatpush.bf16.msra.mxu0 %v1068
    %2080 = vmatpush.bf16.msra.mxu0 %v1060
    %2081 = vmatpush.bf16.msra.mxu0 %v1052
    %2082 = vmatpush.bf16.msra.mxu0 %v1044
    %2083 = vmatmul.bf16.gmra.mxu0 %v2021
    %v2084 = vpop.f32.mrf.mxu0
    %v2085 = vadd.f32 0.0, %v2084
    %v2086 = vpop.f32.mrf.mxu0
    %2087 = vdwg.mxu0
    %2088 = vmatpush.bf16.msra.mxu0 %v1164
    %2089 = vmatpush.bf16.msra.mxu0 %v1156
    %2090 = vmatpush.bf16.msra.mxu0 %v1148
    %2091 = vmatpush.bf16.msra.mxu0 %v1140
    %2092 = vmatpush.bf16.msra.mxu0 %v1132
    %2093 = vmatpush.bf16.msra.mxu0 %v1124
    %2094 = vmatpush.bf16.msra.mxu0 %v1116
    %2095 = vmatpush.bf16.msra.mxu0 %v1108
    %2096 = vmatmul.bf16.gmra.mxu0 %v2022
    %v2097 = vpop.f32.mrf.mxu0
    %v2098 = vadd.f32 %v2085, %v2097
    %v2099 = vpop.f32.mrf.mxu0
    %2100 = vdwg.mxu0
    %2101 = vmatpush.bf16.msra.mxu0 %v1101
    %2102 = vmatpush.bf16.msra.mxu0 %v1093
    %2103 = vmatpush.bf16.msra.mxu0 %v1085
    %2104 = vmatpush.bf16.msra.mxu0 %v1077
    %2105 = vmatpush.bf16.msra.mxu0 %v1069
    %2106 = vmatpush.bf16.msra.mxu0 %v1061
    %2107 = vmatpush.bf16.msra.mxu0 %v1053
    %2108 = vmatpush.bf16.msra.mxu0 %v1045
    %2109 = vmatmul.bf16.gmra.mxu0 %v2021
    %v2110 = vpop.f32.mrf.mxu0
    %v2111 = vadd.f32 0.0, %v2110
    %v2112 = vpop.f32.mrf.mxu0
    %2113 = vdwg.mxu0
    %2114 = vmatpush.bf16.msra.mxu0 %v1165
    %2115 = vmatpush.bf16.msra.mxu0 %v1157
    %2116 = vmatpush.bf16.msra.mxu0 %v1149
    %2117 = vmatpush.bf16.msra.mxu0 %v1141
    %2118 = vmatpush.bf16.msra.mxu0 %v1133
    %2119 = vmatpush.bf16.msra.mxu0 %v1125
    %2120 = vmatpush.bf16.msra.mxu0 %v1117
    %2121 = vmatpush.bf16.msra.mxu0 %v1109
    %2122 = vmatmul.bf16.gmra.mxu0 %v2022
    %v2123 = vpop.f32.mrf.mxu0
    %v2124 = vadd.f32 %v2111, %v2123
    %v2125 = vpop.f32.mrf.mxu0
    %2126 = vdwg.mxu0
    %2127 = vmatpush.bf16.msra.mxu0 %v1102
    %2128 = vmatpush.bf16.msra.mxu0 %v1094
    %2129 = vmatpush.bf16.msra.mxu0 %v1086
    %2130 = vmatpush.bf16.msra.mxu0 %v1078
    %2131 = vmatpush.bf16.msra.mxu0 %v1070
    %2132 = vmatpush.bf16.msra.mxu0 %v1062
    %2133 = vmatpush.bf16.msra.mxu0 %v1054
    %2134 = vmatpush.bf16.msra.mxu0 %v1046
    %2135 = vmatmul.bf16.gmra.mxu0 %v2021
    %v2136 = vpop.f32.mrf.mxu0
    %v2137 = vadd.f32 0.0, %v2136
    %v2138 = vpop.f32.mrf.mxu0
    %2139 = vdwg.mxu0
    %2140 = vmatpush.bf16.msra.mxu0 %v1166
    %2141 = vmatpush.bf16.msra.mxu0 %v1158
    %2142 = vmatpush.bf16.msra.mxu0 %v1150
    %2143 = vmatpush.bf16.msra.mxu0 %v1142
    %2144 = vmatpush.bf16.msra.mxu0 %v1134
    %2145 = vmatpush.bf16.msra.mxu0 %v1126
    %2146 = vmatpush.bf16.msra.mxu0 %v1118
    %2147 = vmatpush.bf16.msra.mxu0 %v1110
    %2148 = vmatmul.bf16.gmra.mxu0 %v2022
    %v2149 = vpop.f32.mrf.mxu0
    %v2150 = vadd.f32 %v2137, %v2149
    %v2151 = vpop.f32.mrf.mxu0
    %2152 = vdwg.mxu0
    %2153 = vmatpush.bf16.msra.mxu0 %v1103
    %2154 = vmatpush.bf16.msra.mxu0 %v1095
    %2155 = vmatpush.bf16.msra.mxu0 %v1087
    %2156 = vmatpush.bf16.msra.mxu0 %v1079
    %2157 = vmatpush.bf16.msra.mxu0 %v1071
    %2158 = vmatpush.bf16.msra.mxu0 %v1063
    %2159 = vmatpush.bf16.msra.mxu0 %v1055
    %2160 = vmatpush.bf16.msra.mxu0 %v1047
    %2161 = vmatmul.bf16.gmra.mxu0 %v2021
    %v2162 = vpop.f32.mrf.mxu0
    %v2163 = vadd.f32 0.0, %v2162
    %v2164 = vpop.f32.mrf.mxu0
    %2165 = vdwg.mxu0
    %2166 = vmatpush.bf16.msra.mxu0 %v1167
    %2167 = vmatpush.bf16.msra.mxu0 %v1159
    %2168 = vmatpush.bf16.msra.mxu0 %v1151
    %2169 = vmatpush.bf16.msra.mxu0 %v1143
    %2170 = vmatpush.bf16.msra.mxu0 %v1135
    %2171 = vmatpush.bf16.msra.mxu0 %v1127
    %2172 = vmatpush.bf16.msra.mxu0 %v1119
    %2173 = vmatpush.bf16.msra.mxu0 %v1111
    %2174 = vmatmul.bf16.gmra.mxu0 %v2022
    %v2175 = vpop.f32.mrf.mxu0
    %v2176 = vadd.f32 %v2163, %v2175
    %v2177 = vpop.f32.mrf.mxu0
    %2178 = vdwg.mxu0
    %2179 = vmatpush.bf16.msra.mxu0 %v1104
    %2180 = vmatpush.bf16.msra.mxu0 %v1096
    %2181 = vmatpush.bf16.msra.mxu0 %v1088
    %2182 = vmatpush.bf16.msra.mxu0 %v1080
    %2183 = vmatpush.bf16.msra.mxu0 %v1072
    %2184 = vmatpush.bf16.msra.mxu0 %v1064
    %2185 = vmatpush.bf16.msra.mxu0 %v1056
    %2186 = vmatpush.bf16.msra.mxu0 %v1048
    %2187 = vmatmul.bf16.gmra.mxu0 %v2021
    %v2188 = vpop.f32.mrf.mxu0
    %v2189 = vadd.f32 0.0, %v2188
    %v2190 = vpop.f32.mrf.mxu0
    %2191 = vdwg.mxu0
    %2192 = vmatpush.bf16.msra.mxu0 %v1168
    %2193 = vmatpush.bf16.msra.mxu0 %v1160
    %2194 = vmatpush.bf16.msra.mxu0 %v1152
    %2195 = vmatpush.bf16.msra.mxu0 %v1144
    %2196 = vmatpush.bf16.msra.mxu0 %v1136
    %2197 = vmatpush.bf16.msra.mxu0 %v1128
    %2198 = vmatpush.bf16.msra.mxu0 %v1120
    %2199 = vmatpush.bf16.msra.mxu0 %v1112
    %2200 = vmatmul.bf16.gmra.mxu0 %v2022
    %v2201 = vpop.f32.mrf.mxu0
    %v2202 = vadd.f32 %v2189, %v2201
    %v2203 = vpop.f32.mrf.mxu0
    %2204 = vdwg.mxu0
    %2205 = vmatpush.bf16.msra.mxu0 %v1105
    %2206 = vmatpush.bf16.msra.mxu0 %v1097
    %2207 = vmatpush.bf16.msra.mxu0 %v1089
    %2208 = vmatpush.bf16.msra.mxu0 %v1081
    %2209 = vmatpush.bf16.msra.mxu0 %v1073
    %2210 = vmatpush.bf16.msra.mxu0 %v1065
    %2211 = vmatpush.bf16.msra.mxu0 %v1057
    %2212 = vmatpush.bf16.msra.mxu0 %v1049
    %2213 = vmatmul.bf16.gmra.mxu0 %v2021
    %v2214 = vpop.f32.mrf.mxu0
    %v2215 = vadd.f32 0.0, %v2214
    %v2216 = vpop.f32.mrf.mxu0
    %2217 = vdwg.mxu0
    %2218 = vmatpush.bf16.msra.mxu0 %v1169
    %2219 = vmatpush.bf16.msra.mxu0 %v1161
    %2220 = vmatpush.bf16.msra.mxu0 %v1153
    %2221 = vmatpush.bf16.msra.mxu0 %v1145
    %2222 = vmatpush.bf16.msra.mxu0 %v1137
    %2223 = vmatpush.bf16.msra.mxu0 %v1129
    %2224 = vmatpush.bf16.msra.mxu0 %v1121
    %2225 = vmatpush.bf16.msra.mxu0 %v1113
    %2226 = vmatmul.bf16.gmra.mxu0 %v2022
    %v2227 = vpop.f32.mrf.mxu0
    %v2228 = vadd.f32 %v2215, %v2227
    %v2229 = vpop.f32.mrf.mxu0
    %2230 = vdwg.mxu0
    %s2231 = scalar_lea.vmem [#allocation2], 128
    %v2232 = vld [vmem:[%s2231] sm:$0xff]
    %v2233 = vld [vmem:[%s2231 + $0x8] sm:$0xff]
    %v2234 = vld [vmem:[%s2231 + $0x10] sm:$0xff]
    %v2235 = vld [vmem:[%s2231 + $0x18] sm:$0xff]
    %v2236 = vld [vmem:[%s2231 + $0x20] sm:$0xff]
    %v2237 = vld [vmem:[%s2231 + $0x28] sm:$0xff]
    %v2238 = vld [vmem:[%s2231 + $0x30] sm:$0xff]
    %v2239 = vld [vmem:[%s2231 + $0x38] sm:$0xff]
    %v2240 = vadd.f32 %v2232, %v2046
    %v2241 = vadd.f32 %v2233, %v2072
    %v2242 = vadd.f32 %v2234, %v2098
    %v2243 = vadd.f32 %v2235, %v2124
    %s2244 = scalar_lea.vmem [#allocation2], 320
    %v2245 = vld [vmem:[%s2244] sm:$0xff]
    %v2246 = vld [vmem:[%s2244 + $0x8] sm:$0xff]
    %v2247 = vld [vmem:[%s2244 + $0x10] sm:$0xff]
    %v2248 = vld [vmem:[%s2244 + $0x18] sm:$0xff]
    %v2249 = vld [vmem:[%s2244 + $0x20] sm:$0xff]
    %v2250 = vld [vmem:[%s2244 + $0x28] sm:$0xff]
    %v2251 = vld [vmem:[%s2244 + $0x30] sm:$0xff]
    %v2252 = vld [vmem:[%s2244 + $0x38] sm:$0xff]
    %v2253 = vadd.f32 %v2249, %v2150
    %v2254 = vadd.f32 %v2250, %v2176
    %v2255 = vadd.f32 %v2251, %v2202
    %v2256 = vadd.f32 %v2252, %v2228
    %v2257 = vxor.u32 %v2240, 2147483648
    %v2258 = vmul.f32 %v2257, 1.442695
    %v2259 = vpow.pop %v2258
    %v2260 = vadd.f32 %v2259, 1.0
    %v2261 = vrcp.pop %v2260
    %v2262 = vmul.f32 %v2260, %v2261
    %v2263 = vsub.f32 1.0, %v2262
    %v2264 = vmul.f32 %v2261, %v2263
    %v2265 = vadd.f32 %v2261, %v2264
    %vm2266 = vweird.f32 %v2260
    %vm2267 = vweird.f32 %v2261
    %vm2268 = vmor %vm2266, %vm2267
    %v2269 = vsel %vm2268, %v2261, %v2265
    %v2270 = vand.u32 2147483647, %v2260
    %vm2271 = vcmp.eq.f32.partialorder %v2270, 8.507059e+37
    %v2272 = vand.u32 %v2260, 2147483648
    %v2273 = vor.u32 1.1754944e-38, %v2272
    %v2274 = vsel %vm2271, %v2273, %v2269
    %v2275 = vmul.f32 1.0, %v2274
    %v2276 = vxor.u32 %v2241, 2147483648
    %v2277 = vmul.f32 %v2276, 1.442695
    %v2278 = vpow.pop %v2277
    %v2279 = vadd.f32 %v2278, 1.0
    %v2280 = vrcp.pop %v2279
    %v2281 = vmul.f32 %v2279, %v2280
    %v2282 = vsub.f32 1.0, %v2281
    %v2283 = vmul.f32 %v2280, %v2282
    %v2284 = vadd.f32 %v2280, %v2283
    %vm2285 = vweird.f32 %v2279
    %vm2286 = vweird.f32 %v2280
    %vm2287 = vmor %vm2285, %vm2286
    %v2288 = vsel %vm2287, %v2280, %v2284
    %v2289 = vand.u32 2147483647, %v2279
    %vm2290 = vcmp.eq.f32.partialorder %v2289, 8.507059e+37
    %v2291 = vand.u32 %v2279, 2147483648
    %v2292 = vor.u32 1.1754944e-38, %v2291
    %v2293 = vsel %vm2290, %v2292, %v2288
    %v2294 = vmul.f32 1.0, %v2293
    %v2295 = vtanh.pop %v2242
    %v2296 = vxor.u32 %v2243, 2147483648
    %v2297 = vmul.f32 %v2296, 1.442695
    %v2298 = vpow.pop %v2297
    %v2299 = vadd.f32 %v2298, 1.0
    %v2300 = vrcp.pop %v2299
    %v2301 = vmul.f32 %v2299, %v2300
    %v2302 = vsub.f32 1.0, %v2301
    %v2303 = vmul.f32 %v2300, %v2302
    %v2304 = vadd.f32 %v2300, %v2303
    %vm2305 = vweird.f32 %v2299
    %vm2306 = vweird.f32 %v2300
    %vm2307 = vmor %vm2305, %vm2306
    %v2308 = vsel %vm2307, %v2300, %v2304
    %v2309 = vand.u32 2147483647, %v2299
    %vm2310 = vcmp.eq.f32.partialorder %v2309, 8.507059e+37
    %v2311 = vand.u32 %v2299, 2147483648
    %v2312 = vor.u32 1.1754944e-38, %v2311
    %v2313 = vsel %vm2310, %v2312, %v2308
    %v2314 = vmul.f32 1.0, %v2313
    %v2315 = vmul.f32 %v2294, %v1953
    %v2316 = vmul.f32 %v2275, %v2295
    %v2317 = vadd.f32 %v2315, %v2316
    %v2318 = vtanh.pop %v2317
    %v2319 = vmul.f32 %v2314, %v2318
    %v2320 = vxor.u32 %v2253, 2147483648
    %v2321 = vmul.f32 %v2320, 1.442695
    %v2322 = vpow.pop %v2321
    %v2323 = vadd.f32 %v2322, 1.0
    %v2324 = vrcp.pop %v2323
    %v2325 = vmul.f32 %v2323, %v2324
    %v2326 = vsub.f32 1.0, %v2325
    %v2327 = vmul.f32 %v2324, %v2326
    %v2328 = vadd.f32 %v2324, %v2327
    %vm2329 = vweird.f32 %v2323
    %vm2330 = vweird.f32 %v2324
    %vm2331 = vmor %vm2329, %vm2330
    %v2332 = vsel %vm2331, %v2324, %v2328
    %v2333 = vand.u32 2147483647, %v2323
    %vm2334 = vcmp.eq.f32.partialorder %v2333, 8.507059e+37
    %v2335 = vand.u32 %v2323, 2147483648
    %v2336 = vor.u32 1.1754944e-38, %v2335
    %v2337 = vsel %vm2334, %v2336, %v2332
    %v2338 = vmul.f32 1.0, %v2337
    %v2339 = vxor.u32 %v2254, 2147483648
    %v2340 = vmul.f32 %v2339, 1.442695
    %v2341 = vpow.pop %v2340
    %v2342 = vadd.f32 %v2341, 1.0
    %v2343 = vrcp.pop %v2342
    %v2344 = vmul.f32 %v2342, %v2343
    %v2345 = vsub.f32 1.0, %v2344
    %v2346 = vmul.f32 %v2343, %v2345
    %v2347 = vadd.f32 %v2343, %v2346
    %vm2348 = vweird.f32 %v2342
    %vm2349 = vweird.f32 %v2343
    %vm2350 = vmor %vm2348, %vm2349
    %v2351 = vsel %vm2350, %v2343, %v2347
    %v2352 = vand.u32 2147483647, %v2342
    %vm2353 = vcmp.eq.f32.partialorder %v2352, 8.507059e+37
    %v2354 = vand.u32 %v2342, 2147483648
    %v2355 = vor.u32 1.1754944e-38, %v2354
    %v2356 = vsel %vm2353, %v2355, %v2351
    %v2357 = vmul.f32 1.0, %v2356
    %v2358 = vtanh.pop %v2255
    %v2359 = vxor.u32 %v2256, 2147483648
    %v2360 = vmul.f32 %v2359, 1.442695
    %v2361 = vpow.pop %v2360
    %v2362 = vadd.f32 %v2361, 1.0
    %v2363 = vrcp.pop %v2362
    %v2364 = vmul.f32 %v2362, %v2363
    %v2365 = vsub.f32 1.0, %v2364
    %v2366 = vmul.f32 %v2363, %v2365
    %v2367 = vadd.f32 %v2363, %v2366
    %vm2368 = vweird.f32 %v2362
    %vm2369 = vweird.f32 %v2363
    %vm2370 = vmor %vm2368, %vm2369
    %v2371 = vsel %vm2370, %v2363, %v2367
    %v2372 = vand.u32 2147483647, %v2362
    %vm2373 = vcmp.eq.f32.partialorder %v2372, 8.507059e+37
    %v2374 = vand.u32 %v2362, 2147483648
    %v2375 = vor.u32 1.1754944e-38, %v2374
    %v2376 = vsel %vm2373, %v2375, %v2371
    %v2377 = vmul.f32 1.0, %v2376
    %v2378 = vmul.f32 %v2357, %v2016
    %v2379 = vmul.f32 %v2338, %v2358
    %v2380 = vadd.f32 %v2378, %v2379
    %v2381 = vtanh.pop %v2380
    %v2382 = vmul.f32 %v2377, %v2381
    %v2383 = vmax.f32 %v2019, %v2319
    %v2384 = vmax.f32 %v2020, %v2382
    %v2385 = vpack.c.bf16 %v2319, %v2319
    %v2386 = vpack.c.bf16 %v2382, %v2382
    %2387 = vmatpush.bf16.msra.mxu0 %v1098
    %2388 = vmatpush.bf16.msra.mxu0 %v1090
    %2389 = vmatpush.bf16.msra.mxu0 %v1082
    %2390 = vmatpush.bf16.msra.mxu0 %v1074
    %2391 = vmatpush.bf16.msra.mxu0 %v1066
    %2392 = vmatpush.bf16.msra.mxu0 %v1058
    %2393 = vmatpush.bf16.msra.mxu0 %v1050
    %2394 = vmatpush.bf16.msra.mxu0 %v1042
    %2395 = vmatmul.bf16.gmra.mxu0 %v2385
    %v2396 = vpop.f32.mrf.mxu0
    %v2397 = vadd.f32 0.0, %v2396
    %v2398 = vpop.f32.mrf.mxu0
    %2399 = vdwg.mxu0
    %2400 = vmatpush.bf16.msra.mxu0 %v1162
    %2401 = vmatpush.bf16.msra.mxu0 %v1154
    %2402 = vmatpush.bf16.msra.mxu0 %v1146
    %2403 = vmatpush.bf16.msra.mxu0 %v1138
    %2404 = vmatpush.bf16.msra.mxu0 %v1130
    %2405 = vmatpush.bf16.msra.mxu0 %v1122
    %2406 = vmatpush.bf16.msra.mxu0 %v1114
    %2407 = vmatpush.bf16.msra.mxu0 %v1106
    %2408 = vmatmul.bf16.gmra.mxu0 %v2386
    %v2409 = vpop.f32.mrf.mxu0
    %v2410 = vadd.f32 %v2397, %v2409
    %v2411 = vpop.f32.mrf.mxu0
    %2412 = vdwg.mxu0
    %2413 = vmatpush.bf16.msra.mxu0 %v1099
    %2414 = vmatpush.bf16.msra.mxu0 %v1091
    %2415 = vmatpush.bf16.msra.mxu0 %v1083
    %2416 = vmatpush.bf16.msra.mxu0 %v1075
    %2417 = vmatpush.bf16.msra.mxu0 %v1067
    %2418 = vmatpush.bf16.msra.mxu0 %v1059
    %2419 = vmatpush.bf16.msra.mxu0 %v1051
    %2420 = vmatpush.bf16.msra.mxu0 %v1043
    %2421 = vmatmul.bf16.gmra.mxu0 %v2385
    %v2422 = vpop.f32.mrf.mxu0
    %v2423 = vadd.f32 0.0, %v2422
    %v2424 = vpop.f32.mrf.mxu0
    %2425 = vdwg.mxu0
    %2426 = vmatpush.bf16.msra.mxu0 %v1163
    %2427 = vmatpush.bf16.msra.mxu0 %v1155
    %2428 = vmatpush.bf16.msra.mxu0 %v1147
    %2429 = vmatpush.bf16.msra.mxu0 %v1139
    %2430 = vmatpush.bf16.msra.mxu0 %v1131
    %2431 = vmatpush.bf16.msra.mxu0 %v1123
    %2432 = vmatpush.bf16.msra.mxu0 %v1115
    %2433 = vmatpush.bf16.msra.mxu0 %v1107
    %2434 = vmatmul.bf16.gmra.mxu0 %v2386
    %v2435 = vpop.f32.mrf.mxu0
    %v2436 = vadd.f32 %v2423, %v2435
    %v2437 = vpop.f32.mrf.mxu0
    %2438 = vdwg.mxu0
    %2439 = vmatpush.bf16.msra.mxu0 %v1100
    %2440 = vmatpush.bf16.msra.mxu0 %v1092
    %2441 = vmatpush.bf16.msra.mxu0 %v1084
    %2442 = vmatpush.bf16.msra.mxu0 %v1076
    %2443 = vmatpush.bf16.msra.mxu0 %v1068
    %2444 = vmatpush.bf16.msra.mxu0 %v1060
    %2445 = vmatpush.bf16.msra.mxu0 %v1052
    %2446 = vmatpush.bf16.msra.mxu0 %v1044
    %2447 = vmatmul.bf16.gmra.mxu0 %v2385
    %v2448 = vpop.f32.mrf.mxu0
    %v2449 = vadd.f32 0.0, %v2448
    %v2450 = vpop.f32.mrf.mxu0
    %2451 = vdwg.mxu0
    %2452 = vmatpush.bf16.msra.mxu0 %v1164
    %2453 = vmatpush.bf16.msra.mxu0 %v1156
    %2454 = vmatpush.bf16.msra.mxu0 %v1148
    %2455 = vmatpush.bf16.msra.mxu0 %v1140
    %2456 = vmatpush.bf16.msra.mxu0 %v1132
    %2457 = vmatpush.bf16.msra.mxu0 %v1124
    %2458 = vmatpush.bf16.msra.mxu0 %v1116
    %2459 = vmatpush.bf16.msra.mxu0 %v1108
    %2460 = vmatmul.bf16.gmra.mxu0 %v2386
    %v2461 = vpop.f32.mrf.mxu0
    %v2462 = vadd.f32 %v2449, %v2461
    %v2463 = vpop.f32.mrf.mxu0
    %2464 = vdwg.mxu0
    %2465 = vmatpush.bf16.msra.mxu0 %v1101
    %2466 = vmatpush.bf16.msra.mxu0 %v1093
    %2467 = vmatpush.bf16.msra.mxu0 %v1085
    %2468 = vmatpush.bf16.msra.mxu0 %v1077
    %2469 = vmatpush.bf16.msra.mxu0 %v1069
    %2470 = vmatpush.bf16.msra.mxu0 %v1061
    %2471 = vmatpush.bf16.msra.mxu0 %v1053
    %2472 = vmatpush.bf16.msra.mxu0 %v1045
    %2473 = vmatmul.bf16.gmra.mxu0 %v2385
    %v2474 = vpop.f32.mrf.mxu0
    %v2475 = vadd.f32 0.0, %v2474
    %v2476 = vpop.f32.mrf.mxu0
    %2477 = vdwg.mxu0
    %2478 = vmatpush.bf16.msra.mxu0 %v1165
    %2479 = vmatpush.bf16.msra.mxu0 %v1157
    %2480 = vmatpush.bf16.msra.mxu0 %v1149
    %2481 = vmatpush.bf16.msra.mxu0 %v1141
    %2482 = vmatpush.bf16.msra.mxu0 %v1133
    %2483 = vmatpush.bf16.msra.mxu0 %v1125
    %2484 = vmatpush.bf16.msra.mxu0 %v1117
    %2485 = vmatpush.bf16.msra.mxu0 %v1109
    %2486 = vmatmul.bf16.gmra.mxu0 %v2386
    %v2487 = vpop.f32.mrf.mxu0
    %v2488 = vadd.f32 %v2475, %v2487
    %v2489 = vpop.f32.mrf.mxu0
    %2490 = vdwg.mxu0
    %2491 = vmatpush.bf16.msra.mxu0 %v1102
    %2492 = vmatpush.bf16.msra.mxu0 %v1094
    %2493 = vmatpush.bf16.msra.mxu0 %v1086
    %2494 = vmatpush.bf16.msra.mxu0 %v1078
    %2495 = vmatpush.bf16.msra.mxu0 %v1070
    %2496 = vmatpush.bf16.msra.mxu0 %v1062
    %2497 = vmatpush.bf16.msra.mxu0 %v1054
    %2498 = vmatpush.bf16.msra.mxu0 %v1046
    %2499 = vmatmul.bf16.gmra.mxu0 %v2385
    %v2500 = vpop.f32.mrf.mxu0
    %v2501 = vadd.f32 0.0, %v2500
    %v2502 = vpop.f32.mrf.mxu0
    %2503 = vdwg.mxu0
    %2504 = vmatpush.bf16.msra.mxu0 %v1166
    %2505 = vmatpush.bf16.msra.mxu0 %v1158
    %2506 = vmatpush.bf16.msra.mxu0 %v1150
    %2507 = vmatpush.bf16.msra.mxu0 %v1142
    %2508 = vmatpush.bf16.msra.mxu0 %v1134
    %2509 = vmatpush.bf16.msra.mxu0 %v1126
    %2510 = vmatpush.bf16.msra.mxu0 %v1118
    %2511 = vmatpush.bf16.msra.mxu0 %v1110
    %2512 = vmatmul.bf16.gmra.mxu0 %v2386
    %v2513 = vpop.f32.mrf.mxu0
    %v2514 = vadd.f32 %v2501, %v2513
    %v2515 = vpop.f32.mrf.mxu0
    %2516 = vdwg.mxu0
    %2517 = vmatpush.bf16.msra.mxu0 %v1103
    %2518 = vmatpush.bf16.msra.mxu0 %v1095
    %2519 = vmatpush.bf16.msra.mxu0 %v1087
    %2520 = vmatpush.bf16.msra.mxu0 %v1079
    %2521 = vmatpush.bf16.msra.mxu0 %v1071
    %2522 = vmatpush.bf16.msra.mxu0 %v1063
    %2523 = vmatpush.bf16.msra.mxu0 %v1055
    %2524 = vmatpush.bf16.msra.mxu0 %v1047
    %2525 = vmatmul.bf16.gmra.mxu0 %v2385
    %v2526 = vpop.f32.mrf.mxu0
    %v2527 = vadd.f32 0.0, %v2526
    %v2528 = vpop.f32.mrf.mxu0
    %2529 = vdwg.mxu0
    %2530 = vmatpush.bf16.msra.mxu0 %v1167
    %2531 = vmatpush.bf16.msra.mxu0 %v1159
    %2532 = vmatpush.bf16.msra.mxu0 %v1151
    %2533 = vmatpush.bf16.msra.mxu0 %v1143
    %2534 = vmatpush.bf16.msra.mxu0 %v1135
    %2535 = vmatpush.bf16.msra.mxu0 %v1127
    %2536 = vmatpush.bf16.msra.mxu0 %v1119
    %2537 = vmatpush.bf16.msra.mxu0 %v1111
    %2538 = vmatmul.bf16.gmra.mxu0 %v2386
    %v2539 = vpop.f32.mrf.mxu0
    %v2540 = vadd.f32 %v2527, %v2539
    %v2541 = vpop.f32.mrf.mxu0
    %2542 = vdwg.mxu0
    %2543 = vmatpush.bf16.msra.mxu0 %v1104
    %2544 = vmatpush.bf16.msra.mxu0 %v1096
    %2545 = vmatpush.bf16.msra.mxu0 %v1088
    %2546 = vmatpush.bf16.msra.mxu0 %v1080
    %2547 = vmatpush.bf16.msra.mxu0 %v1072
    %2548 = vmatpush.bf16.msra.mxu0 %v1064
    %2549 = vmatpush.bf16.msra.mxu0 %v1056
    %2550 = vmatpush.bf16.msra.mxu0 %v1048
    %2551 = vmatmul.bf16.gmra.mxu0 %v2385
    %v2552 = vpop.f32.mrf.mxu0
    %v2553 = vadd.f32 0.0, %v2552
    %v2554 = vpop.f32.mrf.mxu0
    %2555 = vdwg.mxu0
    %2556 = vmatpush.bf16.msra.mxu0 %v1168
    %2557 = vmatpush.bf16.msra.mxu0 %v1160
    %2558 = vmatpush.bf16.msra.mxu0 %v1152
    %2559 = vmatpush.bf16.msra.mxu0 %v1144
    %2560 = vmatpush.bf16.msra.mxu0 %v1136
    %2561 = vmatpush.bf16.msra.mxu0 %v1128
    %2562 = vmatpush.bf16.msra.mxu0 %v1120
    %2563 = vmatpush.bf16.msra.mxu0 %v1112
    %2564 = vmatmul.bf16.gmra.mxu0 %v2386
    %v2565 = vpop.f32.mrf.mxu0
    %v2566 = vadd.f32 %v2553, %v2565
    %v2567 = vpop.f32.mrf.mxu0
    %2568 = vdwg.mxu0
    %2569 = vmatpush.bf16.msra.mxu0 %v1105
    %2570 = vmatpush.bf16.msra.mxu0 %v1097
    %2571 = vmatpush.bf16.msra.mxu0 %v1089
    %2572 = vmatpush.bf16.msra.mxu0 %v1081
    %2573 = vmatpush.bf16.msra.mxu0 %v1073
    %2574 = vmatpush.bf16.msra.mxu0 %v1065
    %2575 = vmatpush.bf16.msra.mxu0 %v1057
    %2576 = vmatpush.bf16.msra.mxu0 %v1049
    %2577 = vmatmul.bf16.gmra.mxu0 %v2385
    %v2578 = vpop.f32.mrf.mxu0
    %v2579 = vadd.f32 0.0, %v2578
    %v2580 = vpop.f32.mrf.mxu0
    %2581 = vdwg.mxu0
    %2582 = vmatpush.bf16.msra.mxu0 %v1169
    %2583 = vmatpush.bf16.msra.mxu0 %v1161
    %2584 = vmatpush.bf16.msra.mxu0 %v1153
    %2585 = vmatpush.bf16.msra.mxu0 %v1145
    %2586 = vmatpush.bf16.msra.mxu0 %v1137
    %2587 = vmatpush.bf16.msra.mxu0 %v1129
    %2588 = vmatpush.bf16.msra.mxu0 %v1121
    %2589 = vmatpush.bf16.msra.mxu0 %v1113
    %2590 = vmatmul.bf16.gmra.mxu0 %v2386
    %v2591 = vpop.f32.mrf.mxu0
    %v2592 = vadd.f32 %v2579, %v2591
    %v2593 = vpop.f32.mrf.mxu0
    %2594 = vdwg.mxu0
    %s2595 = scalar_lea.vmem [#allocation2], 192
    %v2596 = vld [vmem:[%s2595] sm:$0xff]
    %v2597 = vld [vmem:[%s2595 + $0x8] sm:$0xff]
    %v2598 = vld [vmem:[%s2595 + $0x10] sm:$0xff]
    %v2599 = vld [vmem:[%s2595 + $0x18] sm:$0xff]
    %v2600 = vld [vmem:[%s2595 + $0x20] sm:$0xff]
    %v2601 = vld [vmem:[%s2595 + $0x28] sm:$0xff]
    %v2602 = vld [vmem:[%s2595 + $0x30] sm:$0xff]
    %v2603 = vld [vmem:[%s2595 + $0x38] sm:$0xff]
    %v2604 = vadd.f32 %v2596, %v2410
    %v2605 = vadd.f32 %v2597, %v2436
    %v2606 = vadd.f32 %v2598, %v2462
    %v2607 = vadd.f32 %v2599, %v2488
    %s2608 = scalar_lea.vmem [#allocation2], 256
    %v2609 = vld [vmem:[%s2608] sm:$0xff]
    %v2610 = vld [vmem:[%s2608 + $0x8] sm:$0xff]
    %v2611 = vld [vmem:[%s2608 + $0x10] sm:$0xff]
    %v2612 = vld [vmem:[%s2608 + $0x18] sm:$0xff]
    %v2613 = vld [vmem:[%s2608 + $0x20] sm:$0xff]
    %v2614 = vld [vmem:[%s2608 + $0x28] sm:$0xff]
    %v2615 = vld [vmem:[%s2608 + $0x30] sm:$0xff]
    %v2616 = vld [vmem:[%s2608 + $0x38] sm:$0xff]
    %v2617 = vadd.f32 %v2613, %v2514
    %v2618 = vadd.f32 %v2614, %v2540
    %v2619 = vadd.f32 %v2615, %v2566
    %v2620 = vadd.f32 %v2616, %v2592
    %v2621 = vxor.u32 %v2604, 2147483648
    %v2622 = vmul.f32 %v2621, 1.442695
    %v2623 = vpow.pop %v2622
    %v2624 = vadd.f32 %v2623, 1.0
    %v2625 = vrcp.pop %v2624
    %v2626 = vmul.f32 %v2624, %v2625
    %v2627 = vsub.f32 1.0, %v2626
    %v2628 = vmul.f32 %v2625, %v2627
    %v2629 = vadd.f32 %v2625, %v2628
    %vm2630 = vweird.f32 %v2624
    %vm2631 = vweird.f32 %v2625
    %vm2632 = vmor %vm2630, %vm2631
    %v2633 = vsel %vm2632, %v2625, %v2629
    %v2634 = vand.u32 2147483647, %v2624
    %vm2635 = vcmp.eq.f32.partialorder %v2634, 8.507059e+37
    %v2636 = vand.u32 %v2624, 2147483648
    %v2637 = vor.u32 1.1754944e-38, %v2636
    %v2638 = vsel %vm2635, %v2637, %v2633
    %v2639 = vmul.f32 1.0, %v2638
    %v2640 = vxor.u32 %v2605, 2147483648
    %v2641 = vmul.f32 %v2640, 1.442695
    %v2642 = vpow.pop %v2641
    %v2643 = vadd.f32 %v2642, 1.0
    %v2644 = vrcp.pop %v2643
    %v2645 = vmul.f32 %v2643, %v2644
    %v2646 = vsub.f32 1.0, %v2645
    %v2647 = vmul.f32 %v2644, %v2646
    %v2648 = vadd.f32 %v2644, %v2647
    %vm2649 = vweird.f32 %v2643
    %vm2650 = vweird.f32 %v2644
    %vm2651 = vmor %vm2649, %vm2650
    %v2652 = vsel %vm2651, %v2644, %v2648
    %v2653 = vand.u32 2147483647, %v2643
    %vm2654 = vcmp.eq.f32.partialorder %v2653, 8.507059e+37
    %v2655 = vand.u32 %v2643, 2147483648
    %v2656 = vor.u32 1.1754944e-38, %v2655
    %v2657 = vsel %vm2654, %v2656, %v2652
    %v2658 = vmul.f32 1.0, %v2657
    %v2659 = vtanh.pop %v2606
    %v2660 = vxor.u32 %v2607, 2147483648
    %v2661 = vmul.f32 %v2660, 1.442695
    %v2662 = vpow.pop %v2661
    %v2663 = vadd.f32 %v2662, 1.0
    %v2664 = vrcp.pop %v2663
    %v2665 = vmul.f32 %v2663, %v2664
    %v2666 = vsub.f32 1.0, %v2665
    %v2667 = vmul.f32 %v2664, %v2666
    %v2668 = vadd.f32 %v2664, %v2667
    %vm2669 = vweird.f32 %v2663
    %vm2670 = vweird.f32 %v2664
    %vm2671 = vmor %vm2669, %vm2670
    %v2672 = vsel %vm2671, %v2664, %v2668
    %v2673 = vand.u32 2147483647, %v2663
    %vm2674 = vcmp.eq.f32.partialorder %v2673, 8.507059e+37
    %v2675 = vand.u32 %v2663, 2147483648
    %v2676 = vor.u32 1.1754944e-38, %v2675
    %v2677 = vsel %vm2674, %v2676, %v2672
    %v2678 = vmul.f32 1.0, %v2677
    %v2679 = vmul.f32 %v2658, %v2317
    %v2680 = vmul.f32 %v2639, %v2659
    %v2681 = vadd.f32 %v2679, %v2680
    %v2682 = vtanh.pop %v2681
    %v2683 = vmul.f32 %v2678, %v2682
    %v2684 = vxor.u32 %v2617, 2147483648
    %v2685 = vmul.f32 %v2684, 1.442695
    %v2686 = vpow.pop %v2685
    %v2687 = vadd.f32 %v2686, 1.0
    %v2688 = vrcp.pop %v2687
    %v2689 = vmul.f32 %v2687, %v2688
    %v2690 = vsub.f32 1.0, %v2689
    %v2691 = vmul.f32 %v2688, %v2690
    %v2692 = vadd.f32 %v2688, %v2691
    %vm2693 = vweird.f32 %v2687
    %vm2694 = vweird.f32 %v2688
    %vm2695 = vmor %vm2693, %vm2694
    %v2696 = vsel %vm2695, %v2688, %v2692
    %v2697 = vand.u32 2147483647, %v2687
    %vm2698 = vcmp.eq.f32.partialorder %v2697, 8.507059e+37
    %v2699 = vand.u32 %v2687, 2147483648
    %v2700 = vor.u32 1.1754944e-38, %v2699
    %v2701 = vsel %vm2698, %v2700, %v2696
    %v2702 = vmul.f32 1.0, %v2701
    %v2703 = vxor.u32 %v2618, 2147483648
    %v2704 = vmul.f32 %v2703, 1.442695
    %v2705 = vpow.pop %v2704
    %v2706 = vadd.f32 %v2705, 1.0
    %v2707 = vrcp.pop %v2706
    %v2708 = vmul.f32 %v2706, %v2707
    %v2709 = vsub.f32 1.0, %v2708
    %v2710 = vmul.f32 %v2707, %v2709
    %v2711 = vadd.f32 %v2707, %v2710
    %vm2712 = vweird.f32 %v2706
    %vm2713 = vweird.f32 %v2707
    %vm2714 = vmor %vm2712, %vm2713
    %v2715 = vsel %vm2714, %v2707, %v2711
    %v2716 = vand.u32 2147483647, %v2706
    %vm2717 = vcmp.eq.f32.partialorder %v2716, 8.507059e+37
    %v2718 = vand.u32 %v2706, 2147483648
    %v2719 = vor.u32 1.1754944e-38, %v2718
    %v2720 = vsel %vm2717, %v2719, %v2715
    %v2721 = vmul.f32 1.0, %v2720
    %v2722 = vtanh.pop %v2619
    %v2723 = vxor.u32 %v2620, 2147483648
    %v2724 = vmul.f32 %v2723, 1.442695
    %v2725 = vpow.pop %v2724
    %v2726 = vadd.f32 %v2725, 1.0
    %v2727 = vrcp.pop %v2726
    %v2728 = vmul.f32 %v2726, %v2727
    %v2729 = vsub.f32 1.0, %v2728
    %v2730 = vmul.f32 %v2727, %v2729
    %v2731 = vadd.f32 %v2727, %v2730
    %vm2732 = vweird.f32 %v2726
    %vm2733 = vweird.f32 %v2727
    %vm2734 = vmor %vm2732, %vm2733
    %v2735 = vsel %vm2734, %v2727, %v2731
    %v2736 = vand.u32 2147483647, %v2726
    %vm2737 = vcmp.eq.f32.partialorder %v2736, 8.507059e+37
    %v2738 = vand.u32 %v2726, 2147483648
    %v2739 = vor.u32 1.1754944e-38, %v2738
    %v2740 = vsel %vm2737, %v2739, %v2735
    %v2741 = vmul.f32 1.0, %v2740
    %v2742 = vmul.f32 %v2721, %v2380
    %v2743 = vmul.f32 %v2702, %v2722
    %v2744 = vadd.f32 %v2742, %v2743
    %v2745 = vtanh.pop %v2744
    %v2746 = vmul.f32 %v2741, %v2745
    %v2747 = vmax.f32 %v2383, %v2683
    %v2748 = vmax.f32 %v2384, %v2746
    %v2749 = vpack.c.bf16 %v2683, %v2683
    %v2750 = vpack.c.bf16 %v2746, %v2746
    %2751 = vmatpush.bf16.msra.mxu0 %v1098
    %2752 = vmatpush.bf16.msra.mxu0 %v1090
    %2753 = vmatpush.bf16.msra.mxu0 %v1082
    %2754 = vmatpush.bf16.msra.mxu0 %v1074
    %2755 = vmatpush.bf16.msra.mxu0 %v1066
    %2756 = vmatpush.bf16.msra.mxu0 %v1058
    %2757 = vmatpush.bf16.msra.mxu0 %v1050
    %2758 = vmatpush.bf16.msra.mxu0 %v1042
    %2759 = vmatmul.bf16.gmra.mxu0 %v2749
    %v2760 = vpop.f32.mrf.mxu0
    %v2761 = vadd.f32 0.0, %v2760
    %v2762 = vpop.f32.mrf.mxu0
    %2763 = vdwg.mxu0
    %2764 = vmatpush.bf16.msra.mxu0 %v1162
    %2765 = vmatpush.bf16.msra.mxu0 %v1154
    %2766 = vmatpush.bf16.msra.mxu0 %v1146
    %2767 = vmatpush.bf16.msra.mxu0 %v1138
    %2768 = vmatpush.bf16.msra.mxu0 %v1130
    %2769 = vmatpush.bf16.msra.mxu0 %v1122
    %2770 = vmatpush.bf16.msra.mxu0 %v1114
    %2771 = vmatpush.bf16.msra.mxu0 %v1106
    %2772 = vmatmul.bf16.gmra.mxu0 %v2750
    %v2773 = vpop.f32.mrf.mxu0
    %v2774 = vadd.f32 %v2761, %v2773
    %v2775 = vpop.f32.mrf.mxu0
    %2776 = vdwg.mxu0
    %2777 = vmatpush.bf16.msra.mxu0 %v1099
    %2778 = vmatpush.bf16.msra.mxu0 %v1091
    %2779 = vmatpush.bf16.msra.mxu0 %v1083
    %2780 = vmatpush.bf16.msra.mxu0 %v1075
    %2781 = vmatpush.bf16.msra.mxu0 %v1067
    %2782 = vmatpush.bf16.msra.mxu0 %v1059
    %2783 = vmatpush.bf16.msra.mxu0 %v1051
    %2784 = vmatpush.bf16.msra.mxu0 %v1043
    %2785 = vmatmul.bf16.gmra.mxu0 %v2749
    %v2786 = vpop.f32.mrf.mxu0
    %v2787 = vadd.f32 0.0, %v2786
    %v2788 = vpop.f32.mrf.mxu0
    %2789 = vdwg.mxu0
    %2790 = vmatpush.bf16.msra.mxu0 %v1163
    %2791 = vmatpush.bf16.msra.mxu0 %v1155
    %2792 = vmatpush.bf16.msra.mxu0 %v1147
    %2793 = vmatpush.bf16.msra.mxu0 %v1139
    %2794 = vmatpush.bf16.msra.mxu0 %v1131
    %2795 = vmatpush.bf16.msra.mxu0 %v1123
    %2796 = vmatpush.bf16.msra.mxu0 %v1115
    %2797 = vmatpush.bf16.msra.mxu0 %v1107
    %2798 = vmatmul.bf16.gmra.mxu0 %v2750
    %v2799 = vpop.f32.mrf.mxu0
    %v2800 = vadd.f32 %v2787, %v2799
    %v2801 = vpop.f32.mrf.mxu0
    %2802 = vdwg.mxu0
    %2803 = vmatpush.bf16.msra.mxu0 %v1100
    %2804 = vmatpush.bf16.msra.mxu0 %v1092
    %2805 = vmatpush.bf16.msra.mxu0 %v1084
    %2806 = vmatpush.bf16.msra.mxu0 %v1076
    %2807 = vmatpush.bf16.msra.mxu0 %v1068
    %2808 = vmatpush.bf16.msra.mxu0 %v1060
    %2809 = vmatpush.bf16.msra.mxu0 %v1052
    %2810 = vmatpush.bf16.msra.mxu0 %v1044
    %2811 = vmatmul.bf16.gmra.mxu0 %v2749
    %v2812 = vpop.f32.mrf.mxu0
    %v2813 = vadd.f32 0.0, %v2812
    %v2814 = vpop.f32.mrf.mxu0
    %2815 = vdwg.mxu0
    %2816 = vmatpush.bf16.msra.mxu0 %v1164
    %2817 = vmatpush.bf16.msra.mxu0 %v1156
    %2818 = vmatpush.bf16.msra.mxu0 %v1148
    %2819 = vmatpush.bf16.msra.mxu0 %v1140
    %2820 = vmatpush.bf16.msra.mxu0 %v1132
    %2821 = vmatpush.bf16.msra.mxu0 %v1124
    %2822 = vmatpush.bf16.msra.mxu0 %v1116
    %2823 = vmatpush.bf16.msra.mxu0 %v1108
    %2824 = vmatmul.bf16.gmra.mxu0 %v2750
    %v2825 = vpop.f32.mrf.mxu0
    %v2826 = vadd.f32 %v2813, %v2825
    %v2827 = vpop.f32.mrf.mxu0
    %2828 = vdwg.mxu0
    %2829 = vmatpush.bf16.msra.mxu0 %v1101
    %2830 = vmatpush.bf16.msra.mxu0 %v1093
    %2831 = vmatpush.bf16.msra.mxu0 %v1085
    %2832 = vmatpush.bf16.msra.mxu0 %v1077
    %2833 = vmatpush.bf16.msra.mxu0 %v1069
    %2834 = vmatpush.bf16.msra.mxu0 %v1061
    %2835 = vmatpush.bf16.msra.mxu0 %v1053
    %2836 = vmatpush.bf16.msra.mxu0 %v1045
    %2837 = vmatmul.bf16.gmra.mxu0 %v2749
    %v2838 = vpop.f32.mrf.mxu0
    %v2839 = vadd.f32 0.0, %v2838
    %v2840 = vpop.f32.mrf.mxu0
    %2841 = vdwg.mxu0
    %2842 = vmatpush.bf16.msra.mxu0 %v1165
    %2843 = vmatpush.bf16.msra.mxu0 %v1157
    %2844 = vmatpush.bf16.msra.mxu0 %v1149
    %2845 = vmatpush.bf16.msra.mxu0 %v1141
    %2846 = vmatpush.bf16.msra.mxu0 %v1133
    %2847 = vmatpush.bf16.msra.mxu0 %v1125
    %2848 = vmatpush.bf16.msra.mxu0 %v1117
    %2849 = vmatpush.bf16.msra.mxu0 %v1109
    %2850 = vmatmul.bf16.gmra.mxu0 %v2750
    %v2851 = vpop.f32.mrf.mxu0
    %v2852 = vadd.f32 %v2839, %v2851
    %v2853 = vpop.f32.mrf.mxu0
    %2854 = vdwg.mxu0
    %2855 = vmatpush.bf16.msra.mxu0 %v1102
    %2856 = vmatpush.bf16.msra.mxu0 %v1094
    %2857 = vmatpush.bf16.msra.mxu0 %v1086
    %2858 = vmatpush.bf16.msra.mxu0 %v1078
    %2859 = vmatpush.bf16.msra.mxu0 %v1070
    %2860 = vmatpush.bf16.msra.mxu0 %v1062
    %2861 = vmatpush.bf16.msra.mxu0 %v1054
    %2862 = vmatpush.bf16.msra.mxu0 %v1046
    %2863 = vmatmul.bf16.gmra.mxu0 %v2749
    %v2864 = vpop.f32.mrf.mxu0
    %v2865 = vadd.f32 0.0, %v2864
    %v2866 = vpop.f32.mrf.mxu0
    %2867 = vdwg.mxu0
    %2868 = vmatpush.bf16.msra.mxu0 %v1166
    %2869 = vmatpush.bf16.msra.mxu0 %v1158
    %2870 = vmatpush.bf16.msra.mxu0 %v1150
    %2871 = vmatpush.bf16.msra.mxu0 %v1142
    %2872 = vmatpush.bf16.msra.mxu0 %v1134
    %2873 = vmatpush.bf16.msra.mxu0 %v1126
    %2874 = vmatpush.bf16.msra.mxu0 %v1118
    %2875 = vmatpush.bf16.msra.mxu0 %v1110
    %2876 = vmatmul.bf16.gmra.mxu0 %v2750
    %v2877 = vpop.f32.mrf.mxu0
    %v2878 = vadd.f32 %v2865, %v2877
    %v2879 = vpop.f32.mrf.mxu0
    %2880 = vdwg.mxu0
    %2881 = vmatpush.bf16.msra.mxu0 %v1103
    %2882 = vmatpush.bf16.msra.mxu0 %v1095
    %2883 = vmatpush.bf16.msra.mxu0 %v1087
    %2884 = vmatpush.bf16.msra.mxu0 %v1079
    %2885 = vmatpush.bf16.msra.mxu0 %v1071
    %2886 = vmatpush.bf16.msra.mxu0 %v1063
    %2887 = vmatpush.bf16.msra.mxu0 %v1055
    %2888 = vmatpush.bf16.msra.mxu0 %v1047
    %2889 = vmatmul.bf16.gmra.mxu0 %v2749
    %v2890 = vpop.f32.mrf.mxu0
    %v2891 = vadd.f32 0.0, %v2890
    %v2892 = vpop.f32.mrf.mxu0
    %2893 = vdwg.mxu0
    %2894 = vmatpush.bf16.msra.mxu0 %v1167
    %2895 = vmatpush.bf16.msra.mxu0 %v1159
    %2896 = vmatpush.bf16.msra.mxu0 %v1151
    %2897 = vmatpush.bf16.msra.mxu0 %v1143
    %2898 = vmatpush.bf16.msra.mxu0 %v1135
    %2899 = vmatpush.bf16.msra.mxu0 %v1127
    %2900 = vmatpush.bf16.msra.mxu0 %v1119
    %2901 = vmatpush.bf16.msra.mxu0 %v1111
    %2902 = vmatmul.bf16.gmra.mxu0 %v2750
    %v2903 = vpop.f32.mrf.mxu0
    %v2904 = vadd.f32 %v2891, %v2903
    %v2905 = vpop.f32.mrf.mxu0
    %2906 = vdwg.mxu0
    %2907 = vmatpush.bf16.msra.mxu0 %v1104
    %2908 = vmatpush.bf16.msra.mxu0 %v1096
    %2909 = vmatpush.bf16.msra.mxu0 %v1088
    %2910 = vmatpush.bf16.msra.mxu0 %v1080
    %2911 = vmatpush.bf16.msra.mxu0 %v1072
    %2912 = vmatpush.bf16.msra.mxu0 %v1064
    %2913 = vmatpush.bf16.msra.mxu0 %v1056
    %2914 = vmatpush.bf16.msra.mxu0 %v1048
    %2915 = vmatmul.bf16.gmra.mxu0 %v2749
    %v2916 = vpop.f32.mrf.mxu0
    %v2917 = vadd.f32 0.0, %v2916
    %v2918 = vpop.f32.mrf.mxu0
    %2919 = vdwg.mxu0
    %2920 = vmatpush.bf16.msra.mxu0 %v1168
    %2921 = vmatpush.bf16.msra.mxu0 %v1160
    %2922 = vmatpush.bf16.msra.mxu0 %v1152
    %2923 = vmatpush.bf16.msra.mxu0 %v1144
    %2924 = vmatpush.bf16.msra.mxu0 %v1136
    %2925 = vmatpush.bf16.msra.mxu0 %v1128
    %2926 = vmatpush.bf16.msra.mxu0 %v1120
    %2927 = vmatpush.bf16.msra.mxu0 %v1112
    %2928 = vmatmul.bf16.gmra.mxu0 %v2750
    %v2929 = vpop.f32.mrf.mxu0
    %v2930 = vadd.f32 %v2917, %v2929
    %v2931 = vpop.f32.mrf.mxu0
    %2932 = vdwg.mxu0
    %2933 = vmatpush.bf16.msra.mxu0 %v1105
    %2934 = vmatpush.bf16.msra.mxu0 %v1097
    %2935 = vmatpush.bf16.msra.mxu0 %v1089
    %2936 = vmatpush.bf16.msra.mxu0 %v1081
    %2937 = vmatpush.bf16.msra.mxu0 %v1073
    %2938 = vmatpush.bf16.msra.mxu0 %v1065
    %2939 = vmatpush.bf16.msra.mxu0 %v1057
    %2940 = vmatpush.bf16.msra.mxu0 %v1049
    %2941 = vmatmul.bf16.gmra.mxu0 %v2749
    %v2942 = vpop.f32.mrf.mxu0
    %v2943 = vadd.f32 0.0, %v2942
    %v2944 = vpop.f32.mrf.mxu0
    %2945 = vdwg.mxu0
    %2946 = vmatpush.bf16.msra.mxu0 %v1169
    %2947 = vmatpush.bf16.msra.mxu0 %v1161
    %2948 = vmatpush.bf16.msra.mxu0 %v1153
    %2949 = vmatpush.bf16.msra.mxu0 %v1145
    %2950 = vmatpush.bf16.msra.mxu0 %v1137
    %2951 = vmatpush.bf16.msra.mxu0 %v1129
    %2952 = vmatpush.bf16.msra.mxu0 %v1121
    %2953 = vmatpush.bf16.msra.mxu0 %v1113
    %2954 = vmatmul.bf16.gmra.mxu0 %v2750
    %v2955 = vpop.f32.mrf.mxu0
    %v2956 = vadd.f32 %v2943, %v2955
    %v2957 = vpop.f32.mrf.mxu0
    %2958 = vdwg.mxu0
    %v2959 = vadd.f32 %v2609, %v2774
    %v2960 = vadd.f32 %v2610, %v2800
    %v2961 = vadd.f32 %v2611, %v2826
    %v2962 = vadd.f32 %v2612, %v2852
    %v2963 = vadd.f32 %v2600, %v2878
    %v2964 = vadd.f32 %v2601, %v2904
    %v2965 = vadd.f32 %v2602, %v2930
    %v2966 = vadd.f32 %v2603, %v2956
    %v2967 = vxor.u32 %v2959, 2147483648
    %v2968 = vmul.f32 %v2967, 1.442695
    %v2969 = vpow.pop %v2968
    %v2970 = vadd.f32 %v2969, 1.0
    %v2971 = vrcp.pop %v2970
    %v2972 = vmul.f32 %v2970, %v2971
    %v2973 = vsub.f32 1.0, %v2972
    %v2974 = vmul.f32 %v2971, %v2973
    %v2975 = vadd.f32 %v2971, %v2974
    %vm2976 = vweird.f32 %v2970
    %vm2977 = vweird.f32 %v2971
    %vm2978 = vmor %vm2976, %vm2977
    %v2979 = vsel %vm2978, %v2971, %v2975
    %v2980 = vand.u32 2147483647, %v2970
    %vm2981 = vcmp.eq.f32.partialorder %v2980, 8.507059e+37
    %v2982 = vand.u32 %v2970, 2147483648
    %v2983 = vor.u32 1.1754944e-38, %v2982
    %v2984 = vsel %vm2981, %v2983, %v2979
    %v2985 = vmul.f32 1.0, %v2984
    %v2986 = vxor.u32 %v2960, 2147483648
    %v2987 = vmul.f32 %v2986, 1.442695
    %v2988 = vpow.pop %v2987
    %v2989 = vadd.f32 %v2988, 1.0
    %v2990 = vrcp.pop %v2989
    %v2991 = vmul.f32 %v2989, %v2990
    %v2992 = vsub.f32 1.0, %v2991
    %v2993 = vmul.f32 %v2990, %v2992
    %v2994 = vadd.f32 %v2990, %v2993
    %vm2995 = vweird.f32 %v2989
    %vm2996 = vweird.f32 %v2990
    %vm2997 = vmor %vm2995, %vm2996
    %v2998 = vsel %vm2997, %v2990, %v2994
    %v2999 = vand.u32 2147483647, %v2989
    %vm3000 = vcmp.eq.f32.partialorder %v2999, 8.507059e+37
    %v3001 = vand.u32 %v2989, 2147483648
    %v3002 = vor.u32 1.1754944e-38, %v3001
    %v3003 = vsel %vm3000, %v3002, %v2998
    %v3004 = vmul.f32 1.0, %v3003
    %v3005 = vtanh.pop %v2961
    %v3006 = vxor.u32 %v2962, 2147483648
    %v3007 = vmul.f32 %v3006, 1.442695
    %v3008 = vpow.pop %v3007
    %v3009 = vadd.f32 %v3008, 1.0
    %v3010 = vrcp.pop %v3009
    %v3011 = vmul.f32 %v3009, %v3010
    %v3012 = vsub.f32 1.0, %v3011
    %v3013 = vmul.f32 %v3010, %v3012
    %v3014 = vadd.f32 %v3010, %v3013
    %vm3015 = vweird.f32 %v3009
    %vm3016 = vweird.f32 %v3010
    %vm3017 = vmor %vm3015, %vm3016
    %v3018 = vsel %vm3017, %v3010, %v3014
    %v3019 = vand.u32 2147483647, %v3009
    %vm3020 = vcmp.eq.f32.partialorder %v3019, 8.507059e+37
    %v3021 = vand.u32 %v3009, 2147483648
    %v3022 = vor.u32 1.1754944e-38, %v3021
    %v3023 = vsel %vm3020, %v3022, %v3018
    %v3024 = vmul.f32 1.0, %v3023
    %v3025 = vmul.f32 %v3004, %v2681
    %v3026 = vmul.f32 %v2985, %v3005
    %v3027 = vadd.f32 %v3025, %v3026
    %v3028 = vtanh.pop %v3027
    %v3029 = vmul.f32 %v3024, %v3028
    %v3030 = vxor.u32 %v2963, 2147483648
    %v3031 = vmul.f32 %v3030, 1.442695
    %v3032 = vpow.pop %v3031
    %v3033 = vadd.f32 %v3032, 1.0
    %v3034 = vrcp.pop %v3033
    %v3035 = vmul.f32 %v3033, %v3034
    %v3036 = vsub.f32 1.0, %v3035
    %v3037 = vmul.f32 %v3034, %v3036
    %v3038 = vadd.f32 %v3034, %v3037
    %vm3039 = vweird.f32 %v3033
    %vm3040 = vweird.f32 %v3034
    %vm3041 = vmor %vm3039, %vm3040
    %v3042 = vsel %vm3041, %v3034, %v3038
    %v3043 = vand.u32 2147483647, %v3033
    %vm3044 = vcmp.eq.f32.partialorder %v3043, 8.507059e+37
    %v3045 = vand.u32 %v3033, 2147483648
    %v3046 = vor.u32 1.1754944e-38, %v3045
    %v3047 = vsel %vm3044, %v3046, %v3042
    %v3048 = vmul.f32 1.0, %v3047
    %v3049 = vxor.u32 %v2964, 2147483648
    %v3050 = vmul.f32 %v3049, 1.442695
    %v3051 = vpow.pop %v3050
    %v3052 = vadd.f32 %v3051, 1.0
    %v3053 = vrcp.pop %v3052
    %v3054 = vmul.f32 %v3052, %v3053
    %v3055 = vsub.f32 1.0, %v3054
    %v3056 = vmul.f32 %v3053, %v3055
    %v3057 = vadd.f32 %v3053, %v3056
    %vm3058 = vweird.f32 %v3052
    %vm3059 = vweird.f32 %v3053
    %vm3060 = vmor %vm3058, %vm3059
    %v3061 = vsel %vm3060, %v3053, %v3057
    %v3062 = vand.u32 2147483647, %v3052
    %vm3063 = vcmp.eq.f32.partialorder %v3062, 8.507059e+37
    %v3064 = vand.u32 %v3052, 2147483648
    %v3065 = vor.u32 1.1754944e-38, %v3064
    %v3066 = vsel %vm3063, %v3065, %v3061
    %v3067 = vmul.f32 1.0, %v3066
    %v3068 = vtanh.pop %v2965
    %v3069 = vxor.u32 %v2966, 2147483648
    %v3070 = vmul.f32 %v3069, 1.442695
    %v3071 = vpow.pop %v3070
    %v3072 = vadd.f32 %v3071, 1.0
    %v3073 = vrcp.pop %v3072
    %v3074 = vmul.f32 %v3072, %v3073
    %v3075 = vsub.f32 1.0, %v3074
    %v3076 = vmul.f32 %v3073, %v3075
    %v3077 = vadd.f32 %v3073, %v3076
    %vm3078 = vweird.f32 %v3072
    %vm3079 = vweird.f32 %v3073
    %vm3080 = vmor %vm3078, %vm3079
    %v3081 = vsel %vm3080, %v3073, %v3077
    %v3082 = vand.u32 2147483647, %v3072
    %vm3083 = vcmp.eq.f32.partialorder %v3082, 8.507059e+37
    %v3084 = vand.u32 %v3072, 2147483648
    %v3085 = vor.u32 1.1754944e-38, %v3084
    %v3086 = vsel %vm3083, %v3085, %v3081
    %v3087 = vmul.f32 1.0, %v3086
    %v3088 = vmul.f32 %v3067, %v2744
    %v3089 = vmul.f32 %v3048, %v3068
    %v3090 = vadd.f32 %v3088, %v3089
    %v3091 = vtanh.pop %v3090
    %v3092 = vmul.f32 %v3087, %v3091
    %v3093 = vmax.f32 %v2747, %v3029
    %v3094 = vmax.f32 %v2748, %v3092
    %v3095 = vpack.c.bf16 %v3029, %v3029
    %v3096 = vpack.c.bf16 %v3092, %v3092
    %3097 = vmatpush.bf16.msra.mxu0 %v1098
    %3098 = vmatpush.bf16.msra.mxu0 %v1090
    %3099 = vmatpush.bf16.msra.mxu0 %v1082
    %3100 = vmatpush.bf16.msra.mxu0 %v1074
    %3101 = vmatpush.bf16.msra.mxu0 %v1066
    %3102 = vmatpush.bf16.msra.mxu0 %v1058
    %3103 = vmatpush.bf16.msra.mxu0 %v1050
    %3104 = vmatpush.bf16.msra.mxu0 %v1042
    %3105 = vmatmul.bf16.gmra.mxu0 %v3095
    %v3106 = vpop.f32.mrf.mxu0
    %v3107 = vadd.f32 0.0, %v3106
    %v3108 = vpop.f32.mrf.mxu0
    %3109 = vdwg.mxu0
    %3110 = vmatpush.bf16.msra.mxu0 %v1162
    %3111 = vmatpush.bf16.msra.mxu0 %v1154
    %3112 = vmatpush.bf16.msra.mxu0 %v1146
    %3113 = vmatpush.bf16.msra.mxu0 %v1138
    %3114 = vmatpush.bf16.msra.mxu0 %v1130
    %3115 = vmatpush.bf16.msra.mxu0 %v1122
    %3116 = vmatpush.bf16.msra.mxu0 %v1114
    %3117 = vmatpush.bf16.msra.mxu0 %v1106
    %3118 = vmatmul.bf16.gmra.mxu0 %v3096
    %v3119 = vpop.f32.mrf.mxu0
    %v3120 = vadd.f32 %v3107, %v3119
    %v3121 = vpop.f32.mrf.mxu0
    %3122 = vdwg.mxu0
    %3123 = vmatpush.bf16.msra.mxu0 %v1099
    %3124 = vmatpush.bf16.msra.mxu0 %v1091
    %3125 = vmatpush.bf16.msra.mxu0 %v1083
    %3126 = vmatpush.bf16.msra.mxu0 %v1075
    %3127 = vmatpush.bf16.msra.mxu0 %v1067
    %3128 = vmatpush.bf16.msra.mxu0 %v1059
    %3129 = vmatpush.bf16.msra.mxu0 %v1051
    %3130 = vmatpush.bf16.msra.mxu0 %v1043
    %3131 = vmatmul.bf16.gmra.mxu0 %v3095
    %v3132 = vpop.f32.mrf.mxu0
    %v3133 = vadd.f32 0.0, %v3132
    %v3134 = vpop.f32.mrf.mxu0
    %3135 = vdwg.mxu0
    %3136 = vmatpush.bf16.msra.mxu0 %v1163
    %3137 = vmatpush.bf16.msra.mxu0 %v1155
    %3138 = vmatpush.bf16.msra.mxu0 %v1147
    %3139 = vmatpush.bf16.msra.mxu0 %v1139
    %3140 = vmatpush.bf16.msra.mxu0 %v1131
    %3141 = vmatpush.bf16.msra.mxu0 %v1123
    %3142 = vmatpush.bf16.msra.mxu0 %v1115
    %3143 = vmatpush.bf16.msra.mxu0 %v1107
    %3144 = vmatmul.bf16.gmra.mxu0 %v3096
    %v3145 = vpop.f32.mrf.mxu0
    %v3146 = vadd.f32 %v3133, %v3145
    %v3147 = vpop.f32.mrf.mxu0
    %3148 = vdwg.mxu0
    %3149 = vmatpush.bf16.msra.mxu0 %v1100
    %3150 = vmatpush.bf16.msra.mxu0 %v1092
    %3151 = vmatpush.bf16.msra.mxu0 %v1084
    %3152 = vmatpush.bf16.msra.mxu0 %v1076
    %3153 = vmatpush.bf16.msra.mxu0 %v1068
    %3154 = vmatpush.bf16.msra.mxu0 %v1060
    %3155 = vmatpush.bf16.msra.mxu0 %v1052
    %3156 = vmatpush.bf16.msra.mxu0 %v1044
    %3157 = vmatmul.bf16.gmra.mxu0 %v3095
    %v3158 = vpop.f32.mrf.mxu0
    %v3159 = vadd.f32 0.0, %v3158
    %v3160 = vpop.f32.mrf.mxu0
    %3161 = vdwg.mxu0
    %3162 = vmatpush.bf16.msra.mxu0 %v1164
    %3163 = vmatpush.bf16.msra.mxu0 %v1156
    %3164 = vmatpush.bf16.msra.mxu0 %v1148
    %3165 = vmatpush.bf16.msra.mxu0 %v1140
    %3166 = vmatpush.bf16.msra.mxu0 %v1132
    %3167 = vmatpush.bf16.msra.mxu0 %v1124
    %3168 = vmatpush.bf16.msra.mxu0 %v1116
    %3169 = vmatpush.bf16.msra.mxu0 %v1108
    %3170 = vmatmul.bf16.gmra.mxu0 %v3096
    %v3171 = vpop.f32.mrf.mxu0
    %v3172 = vadd.f32 %v3159, %v3171
    %v3173 = vpop.f32.mrf.mxu0
    %3174 = vdwg.mxu0
    %3175 = vmatpush.bf16.msra.mxu0 %v1101
    %3176 = vmatpush.bf16.msra.mxu0 %v1093
    %3177 = vmatpush.bf16.msra.mxu0 %v1085
    %3178 = vmatpush.bf16.msra.mxu0 %v1077
    %3179 = vmatpush.bf16.msra.mxu0 %v1069
    %3180 = vmatpush.bf16.msra.mxu0 %v1061
    %3181 = vmatpush.bf16.msra.mxu0 %v1053
    %3182 = vmatpush.bf16.msra.mxu0 %v1045
    %3183 = vmatmul.bf16.gmra.mxu0 %v3095
    %v3184 = vpop.f32.mrf.mxu0
    %v3185 = vadd.f32 0.0, %v3184
    %v3186 = vpop.f32.mrf.mxu0
    %3187 = vdwg.mxu0
    %3188 = vmatpush.bf16.msra.mxu0 %v1165
    %3189 = vmatpush.bf16.msra.mxu0 %v1157
    %3190 = vmatpush.bf16.msra.mxu0 %v1149
    %3191 = vmatpush.bf16.msra.mxu0 %v1141
    %3192 = vmatpush.bf16.msra.mxu0 %v1133
    %3193 = vmatpush.bf16.msra.mxu0 %v1125
    %3194 = vmatpush.bf16.msra.mxu0 %v1117
    %3195 = vmatpush.bf16.msra.mxu0 %v1109
    %3196 = vmatmul.bf16.gmra.mxu0 %v3096
    %v3197 = vpop.f32.mrf.mxu0
    %v3198 = vadd.f32 %v3185, %v3197
    %v3199 = vpop.f32.mrf.mxu0
    %3200 = vdwg.mxu0
    %3201 = vmatpush.bf16.msra.mxu0 %v1102
    %3202 = vmatpush.bf16.msra.mxu0 %v1094
    %3203 = vmatpush.bf16.msra.mxu0 %v1086
    %3204 = vmatpush.bf16.msra.mxu0 %v1078
    %3205 = vmatpush.bf16.msra.mxu0 %v1070
    %3206 = vmatpush.bf16.msra.mxu0 %v1062
    %3207 = vmatpush.bf16.msra.mxu0 %v1054
    %3208 = vmatpush.bf16.msra.mxu0 %v1046
    %3209 = vmatmul.bf16.gmra.mxu0 %v3095
    %v3210 = vpop.f32.mrf.mxu0
    %v3211 = vadd.f32 0.0, %v3210
    %v3212 = vpop.f32.mrf.mxu0
    %3213 = vdwg.mxu0
    %3214 = vmatpush.bf16.msra.mxu0 %v1166
    %3215 = vmatpush.bf16.msra.mxu0 %v1158
    %3216 = vmatpush.bf16.msra.mxu0 %v1150
    %3217 = vmatpush.bf16.msra.mxu0 %v1142
    %3218 = vmatpush.bf16.msra.mxu0 %v1134
    %3219 = vmatpush.bf16.msra.mxu0 %v1126
    %3220 = vmatpush.bf16.msra.mxu0 %v1118
    %3221 = vmatpush.bf16.msra.mxu0 %v1110
    %3222 = vmatmul.bf16.gmra.mxu0 %v3096
    %v3223 = vpop.f32.mrf.mxu0
    %v3224 = vadd.f32 %v3211, %v3223
    %v3225 = vpop.f32.mrf.mxu0
    %3226 = vdwg.mxu0
    %3227 = vmatpush.bf16.msra.mxu0 %v1103
    %3228 = vmatpush.bf16.msra.mxu0 %v1095
    %3229 = vmatpush.bf16.msra.mxu0 %v1087
    %3230 = vmatpush.bf16.msra.mxu0 %v1079
    %3231 = vmatpush.bf16.msra.mxu0 %v1071
    %3232 = vmatpush.bf16.msra.mxu0 %v1063
    %3233 = vmatpush.bf16.msra.mxu0 %v1055
    %3234 = vmatpush.bf16.msra.mxu0 %v1047
    %3235 = vmatmul.bf16.gmra.mxu0 %v3095
    %v3236 = vpop.f32.mrf.mxu0
    %v3237 = vadd.f32 0.0, %v3236
    %v3238 = vpop.f32.mrf.mxu0
    %3239 = vdwg.mxu0
    %3240 = vmatpush.bf16.msra.mxu0 %v1167
    %3241 = vmatpush.bf16.msra.mxu0 %v1159
    %3242 = vmatpush.bf16.msra.mxu0 %v1151
    %3243 = vmatpush.bf16.msra.mxu0 %v1143
    %3244 = vmatpush.bf16.msra.mxu0 %v1135
    %3245 = vmatpush.bf16.msra.mxu0 %v1127
    %3246 = vmatpush.bf16.msra.mxu0 %v1119
    %3247 = vmatpush.bf16.msra.mxu0 %v1111
    %3248 = vmatmul.bf16.gmra.mxu0 %v3096
    %v3249 = vpop.f32.mrf.mxu0
    %v3250 = vadd.f32 %v3237, %v3249
    %v3251 = vpop.f32.mrf.mxu0
    %3252 = vdwg.mxu0
    %3253 = vmatpush.bf16.msra.mxu0 %v1104
    %3254 = vmatpush.bf16.msra.mxu0 %v1096
    %3255 = vmatpush.bf16.msra.mxu0 %v1088
    %3256 = vmatpush.bf16.msra.mxu0 %v1080
    %3257 = vmatpush.bf16.msra.mxu0 %v1072
    %3258 = vmatpush.bf16.msra.mxu0 %v1064
    %3259 = vmatpush.bf16.msra.mxu0 %v1056
    %3260 = vmatpush.bf16.msra.mxu0 %v1048
    %3261 = vmatmul.bf16.gmra.mxu0 %v3095
    %v3262 = vpop.f32.mrf.mxu0
    %v3263 = vadd.f32 0.0, %v3262
    %v3264 = vpop.f32.mrf.mxu0
    %3265 = vdwg.mxu0
    %3266 = vmatpush.bf16.msra.mxu0 %v1168
    %3267 = vmatpush.bf16.msra.mxu0 %v1160
    %3268 = vmatpush.bf16.msra.mxu0 %v1152
    %3269 = vmatpush.bf16.msra.mxu0 %v1144
    %3270 = vmatpush.bf16.msra.mxu0 %v1136
    %3271 = vmatpush.bf16.msra.mxu0 %v1128
    %3272 = vmatpush.bf16.msra.mxu0 %v1120
    %3273 = vmatpush.bf16.msra.mxu0 %v1112
    %3274 = vmatmul.bf16.gmra.mxu0 %v3096
    %v3275 = vpop.f32.mrf.mxu0
    %v3276 = vadd.f32 %v3263, %v3275
    %v3277 = vpop.f32.mrf.mxu0
    %3278 = vdwg.mxu0
    %3279 = vmatpush.bf16.msra.mxu0 %v1105
    %3280 = vmatpush.bf16.msra.mxu0 %v1097
    %3281 = vmatpush.bf16.msra.mxu0 %v1089
    %3282 = vmatpush.bf16.msra.mxu0 %v1081
    %3283 = vmatpush.bf16.msra.mxu0 %v1073
    %3284 = vmatpush.bf16.msra.mxu0 %v1065
    %3285 = vmatpush.bf16.msra.mxu0 %v1057
    %3286 = vmatpush.bf16.msra.mxu0 %v1049
    %3287 = vmatmul.bf16.gmra.mxu0 %v3095
    %v3288 = vpop.f32.mrf.mxu0
    %v3289 = vadd.f32 0.0, %v3288
    %v3290 = vpop.f32.mrf.mxu0
    %3291 = vdwg.mxu0
    %3292 = vmatpush.bf16.msra.mxu0 %v1169
    %3293 = vmatpush.bf16.msra.mxu0 %v1161
    %3294 = vmatpush.bf16.msra.mxu0 %v1153
    %3295 = vmatpush.bf16.msra.mxu0 %v1145
    %3296 = vmatpush.bf16.msra.mxu0 %v1137
    %3297 = vmatpush.bf16.msra.mxu0 %v1129
    %3298 = vmatpush.bf16.msra.mxu0 %v1121
    %3299 = vmatpush.bf16.msra.mxu0 %v1113
    %3300 = vmatmul.bf16.gmra.mxu0 %v3096
    %v3301 = vpop.f32.mrf.mxu0
    %v3302 = vadd.f32 %v3289, %v3301
    %v3303 = vpop.f32.mrf.mxu0
    %3304 = vdwg.mxu0
    %v3305 = vadd.f32 %v2245, %v3120
    %v3306 = vadd.f32 %v2246, %v3146
    %v3307 = vadd.f32 %v2247, %v3172
    %v3308 = vadd.f32 %v2248, %v3198
    %v3309 = vadd.f32 %v2236, %v3224
    %v3310 = vadd.f32 %v2237, %v3250
    %v3311 = vadd.f32 %v2238, %v3276
    %v3312 = vadd.f32 %v2239, %v3302
    %v3313 = vxor.u32 %v3305, 2147483648
    %v3314 = vmul.f32 %v3313, 1.442695
    %v3315 = vpow.pop %v3314
    %v3316 = vadd.f32 %v3315, 1.0
    %v3317 = vrcp.pop %v3316
    %v3318 = vmul.f32 %v3316, %v3317
    %v3319 = vsub.f32 1.0, %v3318
    %v3320 = vmul.f32 %v3317, %v3319
    %v3321 = vadd.f32 %v3317, %v3320
    %vm3322 = vweird.f32 %v3316
    %vm3323 = vweird.f32 %v3317
    %vm3324 = vmor %vm3322, %vm3323
    %v3325 = vsel %vm3324, %v3317, %v3321
    %v3326 = vand.u32 2147483647, %v3316
    %vm3327 = vcmp.eq.f32.partialorder %v3326, 8.507059e+37
    %v3328 = vand.u32 %v3316, 2147483648
    %v3329 = vor.u32 1.1754944e-38, %v3328
    %v3330 = vsel %vm3327, %v3329, %v3325
    %v3331 = vmul.f32 1.0, %v3330
    %v3332 = vxor.u32 %v3306, 2147483648
    %v3333 = vmul.f32 %v3332, 1.442695
    %v3334 = vpow.pop %v3333
    %v3335 = vadd.f32 %v3334, 1.0
    %v3336 = vrcp.pop %v3335
    %v3337 = vmul.f32 %v3335, %v3336
    %v3338 = vsub.f32 1.0, %v3337
    %v3339 = vmul.f32 %v3336, %v3338
    %v3340 = vadd.f32 %v3336, %v3339
    %vm3341 = vweird.f32 %v3335
    %vm3342 = vweird.f32 %v3336
    %vm3343 = vmor %vm3341, %vm3342
    %v3344 = vsel %vm3343, %v3336, %v3340
    %v3345 = vand.u32 2147483647, %v3335
    %vm3346 = vcmp.eq.f32.partialorder %v3345, 8.507059e+37
    %v3347 = vand.u32 %v3335, 2147483648
    %v3348 = vor.u32 1.1754944e-38, %v3347
    %v3349 = vsel %vm3346, %v3348, %v3344
    %v3350 = vmul.f32 1.0, %v3349
    %v3351 = vtanh.pop %v3307
    %v3352 = vxor.u32 %v3308, 2147483648
    %v3353 = vmul.f32 %v3352, 1.442695
    %v3354 = vpow.pop %v3353
    %v3355 = vadd.f32 %v3354, 1.0
    %v3356 = vrcp.pop %v3355
    %v3357 = vmul.f32 %v3355, %v3356
    %v3358 = vsub.f32 1.0, %v3357
    %v3359 = vmul.f32 %v3356, %v3358
    %v3360 = vadd.f32 %v3356, %v3359
    %vm3361 = vweird.f32 %v3355
    %vm3362 = vweird.f32 %v3356
    %vm3363 = vmor %vm3361, %vm3362
    %v3364 = vsel %vm3363, %v3356, %v3360
    %v3365 = vand.u32 2147483647, %v3355
    %vm3366 = vcmp.eq.f32.partialorder %v3365, 8.507059e+37
    %v3367 = vand.u32 %v3355, 2147483648
    %v3368 = vor.u32 1.1754944e-38, %v3367
    %v3369 = vsel %vm3366, %v3368, %v3364
    %v3370 = vmul.f32 1.0, %v3369
    %v3371 = vmul.f32 %v3350, %v3027
    %v3372 = vmul.f32 %v3331, %v3351
    %v3373 = vadd.f32 %v3371, %v3372
    %v3374 = vtanh.pop %v3373
    %v3375 = vmul.f32 %v3370, %v3374
    %v3376 = vxor.u32 %v3309, 2147483648
    %v3377 = vmul.f32 %v3376, 1.442695
    %v3378 = vpow.pop %v3377
    %v3379 = vadd.f32 %v3378, 1.0
    %v3380 = vrcp.pop %v3379
    %v3381 = vmul.f32 %v3379, %v3380
    %v3382 = vsub.f32 1.0, %v3381
    %v3383 = vmul.f32 %v3380, %v3382
    %v3384 = vadd.f32 %v3380, %v3383
    %vm3385 = vweird.f32 %v3379
    %vm3386 = vweird.f32 %v3380
    %vm3387 = vmor %vm3385, %vm3386
    %v3388 = vsel %vm3387, %v3380, %v3384
    %v3389 = vand.u32 2147483647, %v3379
    %vm3390 = vcmp.eq.f32.partialorder %v3389, 8.507059e+37
    %v3391 = vand.u32 %v3379, 2147483648
    %v3392 = vor.u32 1.1754944e-38, %v3391
    %v3393 = vsel %vm3390, %v3392, %v3388
    %v3394 = vmul.f32 1.0, %v3393
    %v3395 = vxor.u32 %v3310, 2147483648
    %v3396 = vmul.f32 %v3395, 1.442695
    %v3397 = vpow.pop %v3396
    %v3398 = vadd.f32 %v3397, 1.0
    %v3399 = vrcp.pop %v3398
    %v3400 = vmul.f32 %v3398, %v3399
    %v3401 = vsub.f32 1.0, %v3400
    %v3402 = vmul.f32 %v3399, %v3401
    %v3403 = vadd.f32 %v3399, %v3402
    %vm3404 = vweird.f32 %v3398
    %vm3405 = vweird.f32 %v3399
    %vm3406 = vmor %vm3404, %vm3405
    %v3407 = vsel %vm3406, %v3399, %v3403
    %v3408 = vand.u32 2147483647, %v3398
    %vm3409 = vcmp.eq.f32.partialorder %v3408, 8.507059e+37
    %v3410 = vand.u32 %v3398, 2147483648
    %v3411 = vor.u32 1.1754944e-38, %v3410
    %v3412 = vsel %vm3409, %v3411, %v3407
    %v3413 = vmul.f32 1.0, %v3412
    %v3414 = vtanh.pop %v3311
    %v3415 = vxor.u32 %v3312, 2147483648
    %v3416 = vmul.f32 %v3415, 1.442695
    %v3417 = vpow.pop %v3416
    %v3418 = vadd.f32 %v3417, 1.0
    %v3419 = vrcp.pop %v3418
    %v3420 = vmul.f32 %v3418, %v3419
    %v3421 = vsub.f32 1.0, %v3420
    %v3422 = vmul.f32 %v3419, %v3421
    %v3423 = vadd.f32 %v3419, %v3422
    %vm3424 = vweird.f32 %v3418
    %vm3425 = vweird.f32 %v3419
    %vm3426 = vmor %vm3424, %vm3425
    %v3427 = vsel %vm3426, %v3419, %v3423
    %v3428 = vand.u32 2147483647, %v3418
    %vm3429 = vcmp.eq.f32.partialorder %v3428, 8.507059e+37
    %v3430 = vand.u32 %v3418, 2147483648
    %v3431 = vor.u32 1.1754944e-38, %v3430
    %v3432 = vsel %vm3429, %v3431, %v3427
    %v3433 = vmul.f32 1.0, %v3432
    %v3434 = vmul.f32 %v3413, %v3090
    %v3435 = vmul.f32 %v3394, %v3414
    %v3436 = vadd.f32 %v3434, %v3435
    %v3437 = vtanh.pop %v3436
    %v3438 = vmul.f32 %v3433, %v3437
    %v3439 = vmax.f32 %v3093, %v3375
    %v3440 = vmax.f32 %v3094, %v3438
    %v3441 = vpack.c.bf16 %v3375, %v3375
    %v3442 = vpack.c.bf16 %v3438, %v3438
    %3443 = vmatpush.bf16.msra.mxu0 %v1098
    %3444 = vmatpush.bf16.msra.mxu0 %v1090
    %3445 = vmatpush.bf16.msra.mxu0 %v1082
    %3446 = vmatpush.bf16.msra.mxu0 %v1074
    %3447 = vmatpush.bf16.msra.mxu0 %v1066
    %3448 = vmatpush.bf16.msra.mxu0 %v1058
    %3449 = vmatpush.bf16.msra.mxu0 %v1050
    %3450 = vmatpush.bf16.msra.mxu0 %v1042
    %3451 = vmatmul.bf16.gmra.mxu0 %v3441
    %v3452 = vpop.f32.mrf.mxu0
    %v3453 = vadd.f32 0.0, %v3452
    %v3454 = vpop.f32.mrf.mxu0
    %3455 = vdwg.mxu0
    %3456 = vmatpush.bf16.msra.mxu0 %v1162
    %3457 = vmatpush.bf16.msra.mxu0 %v1154
    %3458 = vmatpush.bf16.msra.mxu0 %v1146
    %3459 = vmatpush.bf16.msra.mxu0 %v1138
    %3460 = vmatpush.bf16.msra.mxu0 %v1130
    %3461 = vmatpush.bf16.msra.mxu0 %v1122
    %3462 = vmatpush.bf16.msra.mxu0 %v1114
    %3463 = vmatpush.bf16.msra.mxu0 %v1106
    %3464 = vmatmul.bf16.gmra.mxu0 %v3442
    %v3465 = vpop.f32.mrf.mxu0
    %v3466 = vadd.f32 %v3453, %v3465
    %v3467 = vpop.f32.mrf.mxu0
    %3468 = vdwg.mxu0
    %3469 = vmatpush.bf16.msra.mxu0 %v1099
    %3470 = vmatpush.bf16.msra.mxu0 %v1091
    %3471 = vmatpush.bf16.msra.mxu0 %v1083
    %3472 = vmatpush.bf16.msra.mxu0 %v1075
    %3473 = vmatpush.bf16.msra.mxu0 %v1067
    %3474 = vmatpush.bf16.msra.mxu0 %v1059
    %3475 = vmatpush.bf16.msra.mxu0 %v1051
    %3476 = vmatpush.bf16.msra.mxu0 %v1043
    %3477 = vmatmul.bf16.gmra.mxu0 %v3441
    %v3478 = vpop.f32.mrf.mxu0
    %v3479 = vadd.f32 0.0, %v3478
    %v3480 = vpop.f32.mrf.mxu0
    %3481 = vdwg.mxu0
    %3482 = vmatpush.bf16.msra.mxu0 %v1163
    %3483 = vmatpush.bf16.msra.mxu0 %v1155
    %3484 = vmatpush.bf16.msra.mxu0 %v1147
    %3485 = vmatpush.bf16.msra.mxu0 %v1139
    %3486 = vmatpush.bf16.msra.mxu0 %v1131
    %3487 = vmatpush.bf16.msra.mxu0 %v1123
    %3488 = vmatpush.bf16.msra.mxu0 %v1115
    %3489 = vmatpush.bf16.msra.mxu0 %v1107
    %3490 = vmatmul.bf16.gmra.mxu0 %v3442
    %v3491 = vpop.f32.mrf.mxu0
    %v3492 = vadd.f32 %v3479, %v3491
    %v3493 = vpop.f32.mrf.mxu0
    %3494 = vdwg.mxu0
    %3495 = vmatpush.bf16.msra.mxu0 %v1100
    %3496 = vmatpush.bf16.msra.mxu0 %v1092
    %3497 = vmatpush.bf16.msra.mxu0 %v1084
    %3498 = vmatpush.bf16.msra.mxu0 %v1076
    %3499 = vmatpush.bf16.msra.mxu0 %v1068
    %3500 = vmatpush.bf16.msra.mxu0 %v1060
    %3501 = vmatpush.bf16.msra.mxu0 %v1052
    %3502 = vmatpush.bf16.msra.mxu0 %v1044
    %3503 = vmatmul.bf16.gmra.mxu0 %v3441
    %v3504 = vpop.f32.mrf.mxu0
    %v3505 = vadd.f32 0.0, %v3504
    %v3506 = vpop.f32.mrf.mxu0
    %3507 = vdwg.mxu0
    %3508 = vmatpush.bf16.msra.mxu0 %v1164
    %3509 = vmatpush.bf16.msra.mxu0 %v1156
    %3510 = vmatpush.bf16.msra.mxu0 %v1148
    %3511 = vmatpush.bf16.msra.mxu0 %v1140
    %3512 = vmatpush.bf16.msra.mxu0 %v1132
    %3513 = vmatpush.bf16.msra.mxu0 %v1124
    %3514 = vmatpush.bf16.msra.mxu0 %v1116
    %3515 = vmatpush.bf16.msra.mxu0 %v1108
    %3516 = vmatmul.bf16.gmra.mxu0 %v3442
    %v3517 = vpop.f32.mrf.mxu0
    %v3518 = vadd.f32 %v3505, %v3517
    %v3519 = vpop.f32.mrf.mxu0
    %3520 = vdwg.mxu0
    %3521 = vmatpush.bf16.msra.mxu0 %v1101
    %3522 = vmatpush.bf16.msra.mxu0 %v1093
    %3523 = vmatpush.bf16.msra.mxu0 %v1085
    %3524 = vmatpush.bf16.msra.mxu0 %v1077
    %3525 = vmatpush.bf16.msra.mxu0 %v1069
    %3526 = vmatpush.bf16.msra.mxu0 %v1061
    %3527 = vmatpush.bf16.msra.mxu0 %v1053
    %3528 = vmatpush.bf16.msra.mxu0 %v1045
    %3529 = vmatmul.bf16.gmra.mxu0 %v3441
    %v3530 = vpop.f32.mrf.mxu0
    %v3531 = vadd.f32 0.0, %v3530
    %v3532 = vpop.f32.mrf.mxu0
    %3533 = vdwg.mxu0
    %3534 = vmatpush.bf16.msra.mxu0 %v1165
    %3535 = vmatpush.bf16.msra.mxu0 %v1157
    %3536 = vmatpush.bf16.msra.mxu0 %v1149
    %3537 = vmatpush.bf16.msra.mxu0 %v1141
    %3538 = vmatpush.bf16.msra.mxu0 %v1133
    %3539 = vmatpush.bf16.msra.mxu0 %v1125
    %3540 = vmatpush.bf16.msra.mxu0 %v1117
    %3541 = vmatpush.bf16.msra.mxu0 %v1109
    %3542 = vmatmul.bf16.gmra.mxu0 %v3442
    %v3543 = vpop.f32.mrf.mxu0
    %v3544 = vadd.f32 %v3531, %v3543
    %v3545 = vpop.f32.mrf.mxu0
    %3546 = vdwg.mxu0
    %3547 = vmatpush.bf16.msra.mxu0 %v1102
    %3548 = vmatpush.bf16.msra.mxu0 %v1094
    %3549 = vmatpush.bf16.msra.mxu0 %v1086
    %3550 = vmatpush.bf16.msra.mxu0 %v1078
    %3551 = vmatpush.bf16.msra.mxu0 %v1070
    %3552 = vmatpush.bf16.msra.mxu0 %v1062
    %3553 = vmatpush.bf16.msra.mxu0 %v1054
    %3554 = vmatpush.bf16.msra.mxu0 %v1046
    %3555 = vmatmul.bf16.gmra.mxu0 %v3441
    %v3556 = vpop.f32.mrf.mxu0
    %v3557 = vadd.f32 0.0, %v3556
    %v3558 = vpop.f32.mrf.mxu0
    %3559 = vdwg.mxu0
    %3560 = vmatpush.bf16.msra.mxu0 %v1166
    %3561 = vmatpush.bf16.msra.mxu0 %v1158
    %3562 = vmatpush.bf16.msra.mxu0 %v1150
    %3563 = vmatpush.bf16.msra.mxu0 %v1142
    %3564 = vmatpush.bf16.msra.mxu0 %v1134
    %3565 = vmatpush.bf16.msra.mxu0 %v1126
    %3566 = vmatpush.bf16.msra.mxu0 %v1118
    %3567 = vmatpush.bf16.msra.mxu0 %v1110
    %3568 = vmatmul.bf16.gmra.mxu0 %v3442
    %v3569 = vpop.f32.mrf.mxu0
    %v3570 = vadd.f32 %v3557, %v3569
    %v3571 = vpop.f32.mrf.mxu0
    %3572 = vdwg.mxu0
    %3573 = vmatpush.bf16.msra.mxu0 %v1103
    %3574 = vmatpush.bf16.msra.mxu0 %v1095
    %3575 = vmatpush.bf16.msra.mxu0 %v1087
    %3576 = vmatpush.bf16.msra.mxu0 %v1079
    %3577 = vmatpush.bf16.msra.mxu0 %v1071
    %3578 = vmatpush.bf16.msra.mxu0 %v1063
    %3579 = vmatpush.bf16.msra.mxu0 %v1055
    %3580 = vmatpush.bf16.msra.mxu0 %v1047
    %3581 = vmatmul.bf16.gmra.mxu0 %v3441
    %v3582 = vpop.f32.mrf.mxu0
    %v3583 = vadd.f32 0.0, %v3582
    %v3584 = vpop.f32.mrf.mxu0
    %3585 = vdwg.mxu0
    %3586 = vmatpush.bf16.msra.mxu0 %v1167
    %3587 = vmatpush.bf16.msra.mxu0 %v1159
    %3588 = vmatpush.bf16.msra.mxu0 %v1151
    %3589 = vmatpush.bf16.msra.mxu0 %v1143
    %3590 = vmatpush.bf16.msra.mxu0 %v1135
    %3591 = vmatpush.bf16.msra.mxu0 %v1127
    %3592 = vmatpush.bf16.msra.mxu0 %v1119
    %3593 = vmatpush.bf16.msra.mxu0 %v1111
    %3594 = vmatmul.bf16.gmra.mxu0 %v3442
    %v3595 = vpop.f32.mrf.mxu0
    %v3596 = vadd.f32 %v3583, %v3595
    %v3597 = vpop.f32.mrf.mxu0
    %3598 = vdwg.mxu0
    %3599 = vmatpush.bf16.msra.mxu0 %v1104
    %3600 = vmatpush.bf16.msra.mxu0 %v1096
    %3601 = vmatpush.bf16.msra.mxu0 %v1088
    %3602 = vmatpush.bf16.msra.mxu0 %v1080
    %3603 = vmatpush.bf16.msra.mxu0 %v1072
    %3604 = vmatpush.bf16.msra.mxu0 %v1064
    %3605 = vmatpush.bf16.msra.mxu0 %v1056
    %3606 = vmatpush.bf16.msra.mxu0 %v1048
    %3607 = vmatmul.bf16.gmra.mxu0 %v3441
    %v3608 = vpop.f32.mrf.mxu0
    %v3609 = vadd.f32 0.0, %v3608
    %v3610 = vpop.f32.mrf.mxu0
    %3611 = vdwg.mxu0
    %3612 = vmatpush.bf16.msra.mxu0 %v1168
    %3613 = vmatpush.bf16.msra.mxu0 %v1160
    %3614 = vmatpush.bf16.msra.mxu0 %v1152
    %3615 = vmatpush.bf16.msra.mxu0 %v1144
    %3616 = vmatpush.bf16.msra.mxu0 %v1136
    %3617 = vmatpush.bf16.msra.mxu0 %v1128
    %3618 = vmatpush.bf16.msra.mxu0 %v1120
    %3619 = vmatpush.bf16.msra.mxu0 %v1112
    %3620 = vmatmul.bf16.gmra.mxu0 %v3442
    %v3621 = vpop.f32.mrf.mxu0
    %v3622 = vadd.f32 %v3609, %v3621
    %v3623 = vpop.f32.mrf.mxu0
    %3624 = vdwg.mxu0
    %3625 = vmatpush.bf16.msra.mxu0 %v1105
    %3626 = vmatpush.bf16.msra.mxu0 %v1097
    %3627 = vmatpush.bf16.msra.mxu0 %v1089
    %3628 = vmatpush.bf16.msra.mxu0 %v1081
    %3629 = vmatpush.bf16.msra.mxu0 %v1073
    %3630 = vmatpush.bf16.msra.mxu0 %v1065
    %3631 = vmatpush.bf16.msra.mxu0 %v1057
    %3632 = vmatpush.bf16.msra.mxu0 %v1049
    %3633 = vmatmul.bf16.gmra.mxu0 %v3441
    %v3634 = vpop.f32.mrf.mxu0
    %v3635 = vadd.f32 0.0, %v3634
    %v3636 = vpop.f32.mrf.mxu0
    %3637 = vdwg.mxu0
    %3638 = vmatpush.bf16.msra.mxu0 %v1169
    %3639 = vmatpush.bf16.msra.mxu0 %v1161
    %3640 = vmatpush.bf16.msra.mxu0 %v1153
    %3641 = vmatpush.bf16.msra.mxu0 %v1145
    %3642 = vmatpush.bf16.msra.mxu0 %v1137
    %3643 = vmatpush.bf16.msra.mxu0 %v1129
    %3644 = vmatpush.bf16.msra.mxu0 %v1121
    %3645 = vmatpush.bf16.msra.mxu0 %v1113
    %3646 = vmatmul.bf16.gmra.mxu0 %v3442
    %v3647 = vpop.f32.mrf.mxu0
    %v3648 = vadd.f32 %v3635, %v3647
    %v3649 = vpop.f32.mrf.mxu0
    %3650 = vdwg.mxu0
    %v3651 = vadd.f32 %v1881, %v3466
    %v3652 = vadd.f32 %v1882, %v3492
    %v3653 = vadd.f32 %v1883, %v3518
    %v3654 = vadd.f32 %v1884, %v3544
    %v3655 = vadd.f32 %v1872, %v3570
    %v3656 = vadd.f32 %v1873, %v3596
    %v3657 = vadd.f32 %v1874, %v3622
    %v3658 = vadd.f32 %v1875, %v3648
    %v3659 = vxor.u32 %v3651, 2147483648
    %v3660 = vmul.f32 %v3659, 1.442695
    %v3661 = vpow.pop %v3660
    %v3662 = vadd.f32 %v3661, 1.0
    %v3663 = vrcp.pop %v3662
    %v3664 = vmul.f32 %v3662, %v3663
    %v3665 = vsub.f32 1.0, %v3664
    %v3666 = vmul.f32 %v3663, %v3665
    %v3667 = vadd.f32 %v3663, %v3666
    %vm3668 = vweird.f32 %v3662
    %vm3669 = vweird.f32 %v3663
    %vm3670 = vmor %vm3668, %vm3669
    %v3671 = vsel %vm3670, %v3663, %v3667
    %v3672 = vand.u32 2147483647, %v3662
    %vm3673 = vcmp.eq.f32.partialorder %v3672, 8.507059e+37
    %v3674 = vand.u32 %v3662, 2147483648
    %v3675 = vor.u32 1.1754944e-38, %v3674
    %v3676 = vsel %vm3673, %v3675, %v3671
    %v3677 = vmul.f32 1.0, %v3676
    %v3678 = vxor.u32 %v3652, 2147483648
    %v3679 = vmul.f32 %v3678, 1.442695
    %v3680 = vpow.pop %v3679
    %v3681 = vadd.f32 %v3680, 1.0
    %v3682 = vrcp.pop %v3681
    %v3683 = vmul.f32 %v3681, %v3682
    %v3684 = vsub.f32 1.0, %v3683
    %v3685 = vmul.f32 %v3682, %v3684
    %v3686 = vadd.f32 %v3682, %v3685
    %vm3687 = vweird.f32 %v3681
    %vm3688 = vweird.f32 %v3682
    %vm3689 = vmor %vm3687, %vm3688
    %v3690 = vsel %vm3689, %v3682, %v3686
    %v3691 = vand.u32 2147483647, %v3681
    %vm3692 = vcmp.eq.f32.partialorder %v3691, 8.507059e+37
    %v3693 = vand.u32 %v3681, 2147483648
    %v3694 = vor.u32 1.1754944e-38, %v3693
    %v3695 = vsel %vm3692, %v3694, %v3690
    %v3696 = vmul.f32 1.0, %v3695
    %v3697 = vtanh.pop %v3653
    %v3698 = vxor.u32 %v3654, 2147483648
    %v3699 = vmul.f32 %v3698, 1.442695
    %v3700 = vpow.pop %v3699
    %v3701 = vadd.f32 %v3700, 1.0
    %v3702 = vrcp.pop %v3701
    %v3703 = vmul.f32 %v3701, %v3702
    %v3704 = vsub.f32 1.0, %v3703
    %v3705 = vmul.f32 %v3702, %v3704
    %v3706 = vadd.f32 %v3702, %v3705
    %vm3707 = vweird.f32 %v3701
    %vm3708 = vweird.f32 %v3702
    %vm3709 = vmor %vm3707, %vm3708
    %v3710 = vsel %vm3709, %v3702, %v3706
    %v3711 = vand.u32 2147483647, %v3701
    %vm3712 = vcmp.eq.f32.partialorder %v3711, 8.507059e+37
    %v3713 = vand.u32 %v3701, 2147483648
    %v3714 = vor.u32 1.1754944e-38, %v3713
    %v3715 = vsel %vm3712, %v3714, %v3710
    %v3716 = vmul.f32 1.0, %v3715
    %v3717 = vmul.f32 %v3696, %v3373
    %v3718 = vmul.f32 %v3677, %v3697
    %v3719 = vadd.f32 %v3717, %v3718
    %v3720 = vtanh.pop %v3719
    %v3721 = vmul.f32 %v3716, %v3720
    %v3722 = vxor.u32 %v3655, 2147483648
    %v3723 = vmul.f32 %v3722, 1.442695
    %v3724 = vpow.pop %v3723
    %v3725 = vadd.f32 %v3724, 1.0
    %v3726 = vrcp.pop %v3725
    %v3727 = vmul.f32 %v3725, %v3726
    %v3728 = vsub.f32 1.0, %v3727
    %v3729 = vmul.f32 %v3726, %v3728
    %v3730 = vadd.f32 %v3726, %v3729
    %vm3731 = vweird.f32 %v3725
    %vm3732 = vweird.f32 %v3726
    %vm3733 = vmor %vm3731, %vm3732
    %v3734 = vsel %vm3733, %v3726, %v3730
    %v3735 = vand.u32 2147483647, %v3725
    %vm3736 = vcmp.eq.f32.partialorder %v3735, 8.507059e+37
    %v3737 = vand.u32 %v3725, 2147483648
    %v3738 = vor.u32 1.1754944e-38, %v3737
    %v3739 = vsel %vm3736, %v3738, %v3734
    %v3740 = vmul.f32 1.0, %v3739
    %v3741 = vxor.u32 %v3656, 2147483648
    %v3742 = vmul.f32 %v3741, 1.442695
    %v3743 = vpow.pop %v3742
    %v3744 = vadd.f32 %v3743, 1.0
    %v3745 = vrcp.pop %v3744
    %v3746 = vmul.f32 %v3744, %v3745
    %v3747 = vsub.f32 1.0, %v3746
    %v3748 = vmul.f32 %v3745, %v3747
    %v3749 = vadd.f32 %v3745, %v3748
    %vm3750 = vweird.f32 %v3744
    %vm3751 = vweird.f32 %v3745
    %vm3752 = vmor %vm3750, %vm3751
    %v3753 = vsel %vm3752, %v3745, %v3749
    %v3754 = vand.u32 2147483647, %v3744
    %vm3755 = vcmp.eq.f32.partialorder %v3754, 8.507059e+37
    %v3756 = vand.u32 %v3744, 2147483648
    %v3757 = vor.u32 1.1754944e-38, %v3756
    %v3758 = vsel %vm3755, %v3757, %v3753
    %v3759 = vmul.f32 1.0, %v3758
    %v3760 = vtanh.pop %v3657
    %v3761 = vxor.u32 %v3658, 2147483648
    %v3762 = vmul.f32 %v3761, 1.442695
    %v3763 = vpow.pop %v3762
    %v3764 = vadd.f32 %v3763, 1.0
    %v3765 = vrcp.pop %v3764
    %v3766 = vmul.f32 %v3764, %v3765
    %v3767 = vsub.f32 1.0, %v3766
    %v3768 = vmul.f32 %v3765, %v3767
    %v3769 = vadd.f32 %v3765, %v3768
    %vm3770 = vweird.f32 %v3764
    %vm3771 = vweird.f32 %v3765
    %vm3772 = vmor %vm3770, %vm3771
    %v3773 = vsel %vm3772, %v3765, %v3769
    %v3774 = vand.u32 2147483647, %v3764
    %vm3775 = vcmp.eq.f32.partialorder %v3774, 8.507059e+37
    %v3776 = vand.u32 %v3764, 2147483648
    %v3777 = vor.u32 1.1754944e-38, %v3776
    %v3778 = vsel %vm3775, %v3777, %v3773
    %v3779 = vmul.f32 1.0, %v3778
    %v3780 = vmul.f32 %v3759, %v3436
    %v3781 = vmul.f32 %v3740, %v3760
    %v3782 = vadd.f32 %v3780, %v3781
    %v3783 = vtanh.pop %v3782
    %v3784 = vmul.f32 %v3779, %v3783
    %v3785 = vmax.f32 %v3439, %v3721
    %v3786 = vmax.f32 %v3440, %v3784
    %v3787 = vpack.c.bf16 %v3721, %v3721
    %v3788 = vpack.c.bf16 %v3784, %v3784
    %3789 = vmatpush.bf16.msra.mxu0 %v1098
    %3790 = vmatpush.bf16.msra.mxu0 %v1090
    %3791 = vmatpush.bf16.msra.mxu0 %v1082
    %3792 = vmatpush.bf16.msra.mxu0 %v1074
    %3793 = vmatpush.bf16.msra.mxu0 %v1066
    %3794 = vmatpush.bf16.msra.mxu0 %v1058
    %3795 = vmatpush.bf16.msra.mxu0 %v1050
    %3796 = vmatpush.bf16.msra.mxu0 %v1042
    %3797 = vmatmul.bf16.gmra.mxu0 %v3787
    %v3798 = vpop.f32.mrf.mxu0
    %v3799 = vadd.f32 0.0, %v3798
    %v3800 = vpop.f32.mrf.mxu0
    %3801 = vdwg.mxu0
    %3802 = vmatpush.bf16.msra.mxu0 %v1162
    %3803 = vmatpush.bf16.msra.mxu0 %v1154
    %3804 = vmatpush.bf16.msra.mxu0 %v1146
    %3805 = vmatpush.bf16.msra.mxu0 %v1138
    %3806 = vmatpush.bf16.msra.mxu0 %v1130
    %3807 = vmatpush.bf16.msra.mxu0 %v1122
    %3808 = vmatpush.bf16.msra.mxu0 %v1114
    %3809 = vmatpush.bf16.msra.mxu0 %v1106
    %3810 = vmatmul.bf16.gmra.mxu0 %v3788
    %v3811 = vpop.f32.mrf.mxu0
    %v3812 = vadd.f32 %v3799, %v3811
    %v3813 = vpop.f32.mrf.mxu0
    %3814 = vdwg.mxu0
    %3815 = vmatpush.bf16.msra.mxu0 %v1099
    %3816 = vmatpush.bf16.msra.mxu0 %v1091
    %3817 = vmatpush.bf16.msra.mxu0 %v1083
    %3818 = vmatpush.bf16.msra.mxu0 %v1075
    %3819 = vmatpush.bf16.msra.mxu0 %v1067
    %3820 = vmatpush.bf16.msra.mxu0 %v1059
    %3821 = vmatpush.bf16.msra.mxu0 %v1051
    %3822 = vmatpush.bf16.msra.mxu0 %v1043
    %3823 = vmatmul.bf16.gmra.mxu0 %v3787
    %v3824 = vpop.f32.mrf.mxu0
    %v3825 = vadd.f32 0.0, %v3824
    %v3826 = vpop.f32.mrf.mxu0
    %3827 = vdwg.mxu0
    %3828 = vmatpush.bf16.msra.mxu0 %v1163
    %3829 = vmatpush.bf16.msra.mxu0 %v1155
    %3830 = vmatpush.bf16.msra.mxu0 %v1147
    %3831 = vmatpush.bf16.msra.mxu0 %v1139
    %3832 = vmatpush.bf16.msra.mxu0 %v1131
    %3833 = vmatpush.bf16.msra.mxu0 %v1123
    %3834 = vmatpush.bf16.msra.mxu0 %v1115
    %3835 = vmatpush.bf16.msra.mxu0 %v1107
    %3836 = vmatmul.bf16.gmra.mxu0 %v3788
    %v3837 = vpop.f32.mrf.mxu0
    %v3838 = vadd.f32 %v3825, %v3837
    %v3839 = vpop.f32.mrf.mxu0
    %3840 = vdwg.mxu0
    %3841 = vmatpush.bf16.msra.mxu0 %v1100
    %3842 = vmatpush.bf16.msra.mxu0 %v1092
    %3843 = vmatpush.bf16.msra.mxu0 %v1084
    %3844 = vmatpush.bf16.msra.mxu0 %v1076
    %3845 = vmatpush.bf16.msra.mxu0 %v1068
    %3846 = vmatpush.bf16.msra.mxu0 %v1060
    %3847 = vmatpush.bf16.msra.mxu0 %v1052
    %3848 = vmatpush.bf16.msra.mxu0 %v1044
    %3849 = vmatmul.bf16.gmra.mxu0 %v3787
    %v3850 = vpop.f32.mrf.mxu0
    %v3851 = vadd.f32 0.0, %v3850
    %v3852 = vpop.f32.mrf.mxu0
    %3853 = vdwg.mxu0
    %3854 = vmatpush.bf16.msra.mxu0 %v1164
    %3855 = vmatpush.bf16.msra.mxu0 %v1156
    %3856 = vmatpush.bf16.msra.mxu0 %v1148
    %3857 = vmatpush.bf16.msra.mxu0 %v1140
    %3858 = vmatpush.bf16.msra.mxu0 %v1132
    %3859 = vmatpush.bf16.msra.mxu0 %v1124
    %3860 = vmatpush.bf16.msra.mxu0 %v1116
    %3861 = vmatpush.bf16.msra.mxu0 %v1108
    %3862 = vmatmul.bf16.gmra.mxu0 %v3788
    %v3863 = vpop.f32.mrf.mxu0
    %v3864 = vadd.f32 %v3851, %v3863
    %v3865 = vpop.f32.mrf.mxu0
    %3866 = vdwg.mxu0
    %3867 = vmatpush.bf16.msra.mxu0 %v1101
    %3868 = vmatpush.bf16.msra.mxu0 %v1093
    %3869 = vmatpush.bf16.msra.mxu0 %v1085
    %3870 = vmatpush.bf16.msra.mxu0 %v1077
    %3871 = vmatpush.bf16.msra.mxu0 %v1069
    %3872 = vmatpush.bf16.msra.mxu0 %v1061
    %3873 = vmatpush.bf16.msra.mxu0 %v1053
    %3874 = vmatpush.bf16.msra.mxu0 %v1045
    %3875 = vmatmul.bf16.gmra.mxu0 %v3787
    %v3876 = vpop.f32.mrf.mxu0
    %v3877 = vadd.f32 0.0, %v3876
    %v3878 = vpop.f32.mrf.mxu0
    %3879 = vdwg.mxu0
    %3880 = vmatpush.bf16.msra.mxu0 %v1165
    %3881 = vmatpush.bf16.msra.mxu0 %v1157
    %3882 = vmatpush.bf16.msra.mxu0 %v1149
    %3883 = vmatpush.bf16.msra.mxu0 %v1141
    %3884 = vmatpush.bf16.msra.mxu0 %v1133
    %3885 = vmatpush.bf16.msra.mxu0 %v1125
    %3886 = vmatpush.bf16.msra.mxu0 %v1117
    %3887 = vmatpush.bf16.msra.mxu0 %v1109
    %3888 = vmatmul.bf16.gmra.mxu0 %v3788
    %v3889 = vpop.f32.mrf.mxu0
    %v3890 = vadd.f32 %v3877, %v3889
    %v3891 = vpop.f32.mrf.mxu0
    %3892 = vdwg.mxu0
    %3893 = vmatpush.bf16.msra.mxu0 %v1102
    %3894 = vmatpush.bf16.msra.mxu0 %v1094
    %3895 = vmatpush.bf16.msra.mxu0 %v1086
    %3896 = vmatpush.bf16.msra.mxu0 %v1078
    %3897 = vmatpush.bf16.msra.mxu0 %v1070
    %3898 = vmatpush.bf16.msra.mxu0 %v1062
    %3899 = vmatpush.bf16.msra.mxu0 %v1054
    %3900 = vmatpush.bf16.msra.mxu0 %v1046
    %3901 = vmatmul.bf16.gmra.mxu0 %v3787
    %v3902 = vpop.f32.mrf.mxu0
    %v3903 = vadd.f32 0.0, %v3902
    %v3904 = vpop.f32.mrf.mxu0
    %3905 = vdwg.mxu0
    %3906 = vmatpush.bf16.msra.mxu0 %v1166
    %3907 = vmatpush.bf16.msra.mxu0 %v1158
    %3908 = vmatpush.bf16.msra.mxu0 %v1150
    %3909 = vmatpush.bf16.msra.mxu0 %v1142
    %3910 = vmatpush.bf16.msra.mxu0 %v1134
    %3911 = vmatpush.bf16.msra.mxu0 %v1126
    %3912 = vmatpush.bf16.msra.mxu0 %v1118
    %3913 = vmatpush.bf16.msra.mxu0 %v1110
    %3914 = vmatmul.bf16.gmra.mxu0 %v3788
    %v3915 = vpop.f32.mrf.mxu0
    %v3916 = vadd.f32 %v3903, %v3915
    %v3917 = vpop.f32.mrf.mxu0
    %3918 = vdwg.mxu0
    %3919 = vmatpush.bf16.msra.mxu0 %v1103
    %3920 = vmatpush.bf16.msra.mxu0 %v1095
    %3921 = vmatpush.bf16.msra.mxu0 %v1087
    %3922 = vmatpush.bf16.msra.mxu0 %v1079
    %3923 = vmatpush.bf16.msra.mxu0 %v1071
    %3924 = vmatpush.bf16.msra.mxu0 %v1063
    %3925 = vmatpush.bf16.msra.mxu0 %v1055
    %3926 = vmatpush.bf16.msra.mxu0 %v1047
    %3927 = vmatmul.bf16.gmra.mxu0 %v3787
    %v3928 = vpop.f32.mrf.mxu0
    %v3929 = vadd.f32 0.0, %v3928
    %v3930 = vpop.f32.mrf.mxu0
    %3931 = vdwg.mxu0
    %3932 = vmatpush.bf16.msra.mxu0 %v1167
    %3933 = vmatpush.bf16.msra.mxu0 %v1159
    %3934 = vmatpush.bf16.msra.mxu0 %v1151
    %3935 = vmatpush.bf16.msra.mxu0 %v1143
    %3936 = vmatpush.bf16.msra.mxu0 %v1135
    %3937 = vmatpush.bf16.msra.mxu0 %v1127
    %3938 = vmatpush.bf16.msra.mxu0 %v1119
    %3939 = vmatpush.bf16.msra.mxu0 %v1111
    %3940 = vmatmul.bf16.gmra.mxu0 %v3788
    %v3941 = vpop.f32.mrf.mxu0
    %v3942 = vadd.f32 %v3929, %v3941
    %v3943 = vpop.f32.mrf.mxu0
    %3944 = vdwg.mxu0
    %3945 = vmatpush.bf16.msra.mxu0 %v1104
    %3946 = vmatpush.bf16.msra.mxu0 %v1096
    %3947 = vmatpush.bf16.msra.mxu0 %v1088
    %3948 = vmatpush.bf16.msra.mxu0 %v1080
    %3949 = vmatpush.bf16.msra.mxu0 %v1072
    %3950 = vmatpush.bf16.msra.mxu0 %v1064
    %3951 = vmatpush.bf16.msra.mxu0 %v1056
    %3952 = vmatpush.bf16.msra.mxu0 %v1048
    %3953 = vmatmul.bf16.gmra.mxu0 %v3787
    %v3954 = vpop.f32.mrf.mxu0
    %v3955 = vadd.f32 0.0, %v3954
    %v3956 = vpop.f32.mrf.mxu0
    %3957 = vdwg.mxu0
    %3958 = vmatpush.bf16.msra.mxu0 %v1168
    %3959 = vmatpush.bf16.msra.mxu0 %v1160
    %3960 = vmatpush.bf16.msra.mxu0 %v1152
    %3961 = vmatpush.bf16.msra.mxu0 %v1144
    %3962 = vmatpush.bf16.msra.mxu0 %v1136
    %3963 = vmatpush.bf16.msra.mxu0 %v1128
    %3964 = vmatpush.bf16.msra.mxu0 %v1120
    %3965 = vmatpush.bf16.msra.mxu0 %v1112
    %3966 = vmatmul.bf16.gmra.mxu0 %v3788
    %v3967 = vpop.f32.mrf.mxu0
    %v3968 = vadd.f32 %v3955, %v3967
    %v3969 = vpop.f32.mrf.mxu0
    %3970 = vdwg.mxu0
    %3971 = vmatpush.bf16.msra.mxu0 %v1105
    %3972 = vmatpush.bf16.msra.mxu0 %v1097
    %3973 = vmatpush.bf16.msra.mxu0 %v1089
    %3974 = vmatpush.bf16.msra.mxu0 %v1081
    %3975 = vmatpush.bf16.msra.mxu0 %v1073
    %3976 = vmatpush.bf16.msra.mxu0 %v1065
    %3977 = vmatpush.bf16.msra.mxu0 %v1057
    %3978 = vmatpush.bf16.msra.mxu0 %v1049
    %3979 = vmatmul.bf16.gmra.mxu0 %v3787
    %v3980 = vpop.f32.mrf.mxu0
    %v3981 = vadd.f32 0.0, %v3980
    %v3982 = vpop.f32.mrf.mxu0
    %3983 = vdwg.mxu0
    %3984 = vmatpush.bf16.msra.mxu0 %v1169
    %3985 = vmatpush.bf16.msra.mxu0 %v1161
    %3986 = vmatpush.bf16.msra.mxu0 %v1153
    %3987 = vmatpush.bf16.msra.mxu0 %v1145
    %3988 = vmatpush.bf16.msra.mxu0 %v1137
    %3989 = vmatpush.bf16.msra.mxu0 %v1129
    %3990 = vmatpush.bf16.msra.mxu0 %v1121
    %3991 = vmatpush.bf16.msra.mxu0 %v1113
    %3992 = vmatmul.bf16.gmra.mxu0 %v3788
    %v3993 = vpop.f32.mrf.mxu0
    %v3994 = vadd.f32 %v3981, %v3993
    %v3995 = vpop.f32.mrf.mxu0
    %3996 = vdwg.mxu0
    %v3997 = vadd.f32 %v1519, %v3812
    %v3998 = vadd.f32 %v1520, %v3838
    %v3999 = vadd.f32 %v1521, %v3864
    %v4000 = vadd.f32 %v1522, %v3890
    %v4001 = vadd.f32 %v1510, %v3916
    %v4002 = vadd.f32 %v1511, %v3942
    %v4003 = vadd.f32 %v1512, %v3968
    %v4004 = vadd.f32 %v1513, %v3994
    %v4005 = vxor.u32 %v3997, 2147483648
    %v4006 = vmul.f32 %v4005, 1.442695
    %v4007 = vpow.pop %v4006
    %v4008 = vadd.f32 %v4007, 1.0
    %v4009 = vrcp.pop %v4008
    %v4010 = vmul.f32 %v4008, %v4009
    %v4011 = vsub.f32 1.0, %v4010
    %v4012 = vmul.f32 %v4009, %v4011
    %v4013 = vadd.f32 %v4009, %v4012
    %vm4014 = vweird.f32 %v4008
    %vm4015 = vweird.f32 %v4009
    %vm4016 = vmor %vm4014, %vm4015
    %v4017 = vsel %vm4016, %v4009, %v4013
    %v4018 = vand.u32 2147483647, %v4008
    %vm4019 = vcmp.eq.f32.partialorder %v4018, 8.507059e+37
    %v4020 = vand.u32 %v4008, 2147483648
    %v4021 = vor.u32 1.1754944e-38, %v4020
    %v4022 = vsel %vm4019, %v4021, %v4017
    %v4023 = vmul.f32 1.0, %v4022
    %v4024 = vxor.u32 %v3998, 2147483648
    %v4025 = vmul.f32 %v4024, 1.442695
    %v4026 = vpow.pop %v4025
    %v4027 = vadd.f32 %v4026, 1.0
    %v4028 = vrcp.pop %v4027
    %v4029 = vmul.f32 %v4027, %v4028
    %v4030 = vsub.f32 1.0, %v4029
    %v4031 = vmul.f32 %v4028, %v4030
    %v4032 = vadd.f32 %v4028, %v4031
    %vm4033 = vweird.f32 %v4027
    %vm4034 = vweird.f32 %v4028
    %vm4035 = vmor %vm4033, %vm4034
    %v4036 = vsel %vm4035, %v4028, %v4032
    %v4037 = vand.u32 2147483647, %v4027
    %vm4038 = vcmp.eq.f32.partialorder %v4037, 8.507059e+37
    %v4039 = vand.u32 %v4027, 2147483648
    %v4040 = vor.u32 1.1754944e-38, %v4039
    %v4041 = vsel %vm4038, %v4040, %v4036
    %v4042 = vmul.f32 1.0, %v4041
    %v4043 = vtanh.pop %v3999
    %v4044 = vxor.u32 %v4000, 2147483648
    %v4045 = vmul.f32 %v4044, 1.442695
    %v4046 = vpow.pop %v4045
    %v4047 = vadd.f32 %v4046, 1.0
    %v4048 = vrcp.pop %v4047
    %v4049 = vmul.f32 %v4047, %v4048
    %v4050 = vsub.f32 1.0, %v4049
    %v4051 = vmul.f32 %v4048, %v4050
    %v4052 = vadd.f32 %v4048, %v4051
    %vm4053 = vweird.f32 %v4047
    %vm4054 = vweird.f32 %v4048
    %vm4055 = vmor %vm4053, %vm4054
    %v4056 = vsel %vm4055, %v4048, %v4052
    %v4057 = vand.u32 2147483647, %v4047
    %vm4058 = vcmp.eq.f32.partialorder %v4057, 8.507059e+37
    %v4059 = vand.u32 %v4047, 2147483648
    %v4060 = vor.u32 1.1754944e-38, %v4059
    %v4061 = vsel %vm4058, %v4060, %v4056
    %v4062 = vmul.f32 1.0, %v4061
    %v4063 = vmul.f32 %v4042, %v3719
    %v4064 = vmul.f32 %v4023, %v4043
    %v4065 = vadd.f32 %v4063, %v4064
    %v4066 = vtanh.pop %v4065
    %v4067 = vmul.f32 %v4062, %v4066
    %v4068 = vxor.u32 %v4001, 2147483648
    %v4069 = vmul.f32 %v4068, 1.442695
    %v4070 = vpow.pop %v4069
    %v4071 = vadd.f32 %v4070, 1.0
    %v4072 = vrcp.pop %v4071
    %v4073 = vmul.f32 %v4071, %v4072
    %v4074 = vsub.f32 1.0, %v4073
    %v4075 = vmul.f32 %v4072, %v4074
    %v4076 = vadd.f32 %v4072, %v4075
    %vm4077 = vweird.f32 %v4071
    %vm4078 = vweird.f32 %v4072
    %vm4079 = vmor %vm4077, %vm4078
    %v4080 = vsel %vm4079, %v4072, %v4076
    %v4081 = vand.u32 2147483647, %v4071
    %vm4082 = vcmp.eq.f32.partialorder %v4081, 8.507059e+37
    %v4083 = vand.u32 %v4071, 2147483648
    %v4084 = vor.u32 1.1754944e-38, %v4083
    %v4085 = vsel %vm4082, %v4084, %v4080
    %v4086 = vmul.f32 1.0, %v4085
    %v4087 = vxor.u32 %v4002, 2147483648
    %v4088 = vmul.f32 %v4087, 1.442695
    %v4089 = vpow.pop %v4088
    %v4090 = vadd.f32 %v4089, 1.0
    %v4091 = vrcp.pop %v4090
    %v4092 = vmul.f32 %v4090, %v4091
    %v4093 = vsub.f32 1.0, %v4092
    %v4094 = vmul.f32 %v4091, %v4093
    %v4095 = vadd.f32 %v4091, %v4094
    %vm4096 = vweird.f32 %v4090
    %vm4097 = vweird.f32 %v4091
    %vm4098 = vmor %vm4096, %vm4097
    %v4099 = vsel %vm4098, %v4091, %v4095
    %v4100 = vand.u32 2147483647, %v4090
    %vm4101 = vcmp.eq.f32.partialorder %v4100, 8.507059e+37
    %v4102 = vand.u32 %v4090, 2147483648
    %v4103 = vor.u32 1.1754944e-38, %v4102
    %v4104 = vsel %vm4101, %v4103, %v4099
    %v4105 = vmul.f32 1.0, %v4104
    %v4106 = vtanh.pop %v4003
    %v4107 = vxor.u32 %v4004, 2147483648
    %v4108 = vmul.f32 %v4107, 1.442695
    %v4109 = vpow.pop %v4108
    %v4110 = vadd.f32 %v4109, 1.0
    %v4111 = vrcp.pop %v4110
    %v4112 = vmul.f32 %v4110, %v4111
    %v4113 = vsub.f32 1.0, %v4112
    %v4114 = vmul.f32 %v4111, %v4113
    %v4115 = vadd.f32 %v4111, %v4114
    %vm4116 = vweird.f32 %v4110
    %vm4117 = vweird.f32 %v4111
    %vm4118 = vmor %vm4116, %vm4117
    %v4119 = vsel %vm4118, %v4111, %v4115
    %v4120 = vand.u32 2147483647, %v4110
    %vm4121 = vcmp.eq.f32.partialorder %v4120, 8.507059e+37
    %v4122 = vand.u32 %v4110, 2147483648
    %v4123 = vor.u32 1.1754944e-38, %v4122
    %v4124 = vsel %vm4121, %v4123, %v4119
    %v4125 = vmul.f32 1.0, %v4124
    %v4126 = vmul.f32 %v4105, %v3782
    %v4127 = vmul.f32 %v4086, %v4106
    %v4128 = vadd.f32 %v4126, %v4127
    %v4129 = vtanh.pop %v4128
    %v4130 = vmul.f32 %v4125, %v4129
    %v4131 = vmax.f32 %v3785, %v4067
    %v4132 = vmax.f32 %v3786, %v4130
    %4133 = vst [vmem:[%s8] sm:$0xff] %v4131
    %4134 = vst [vmem:[%s8 + $0x8] sm:$0xff] %v4132
    %v4135 = vpack.c.bf16 %v4131, %v4131
    %v4136 = vpack.c.bf16 %v4132, %v4132
    %v4137 = vld [vmem:[#allocation5] sm:$0xff]
    %v4138 = vld [vmem:[#allocation5 + $0x8] sm:$0xff]
    %v4139 = vld [vmem:[#allocation5 + $0x10] sm:$0xff]
    %v4140 = vld [vmem:[#allocation5 + $0x18] sm:$0xff]
    %v4141 = vld [vmem:[#allocation5 + $0x20] sm:$0xff]
    %v4142 = vld [vmem:[#allocation5 + $0x28] sm:$0xff]
    %v4143 = vld [vmem:[#allocation5 + $0x30] sm:$0xff]
    %v4144 = vld [vmem:[#allocation5 + $0x38] sm:$0xff]
    %v4145 = vld [vmem:[#allocation5 + $0x40] sm:$0xff]
    %v4146 = vld [vmem:[#allocation5 + $0x48] sm:$0xff]
    %v4147 = vld [vmem:[#allocation5 + $0x50] sm:$0xff]
    %v4148 = vld [vmem:[#allocation5 + $0x58] sm:$0xff]
    %v4149 = vld [vmem:[#allocation5 + $0x60] sm:$0xff]
    %v4150 = vld [vmem:[#allocation5 + $0x68] sm:$0xff]
    %v4151 = vld [vmem:[#allocation5 + $0x70] sm:$0xff]
    %v4152 = vld [vmem:[#allocation5 + $0x78] sm:$0xff]
    %v4153 = vld [vmem:[#allocation5 + $0x80] sm:$0xff]
    %v4154 = vld [vmem:[#allocation5 + $0x88] sm:$0xff]
    %v4155 = vld [vmem:[#allocation5 + $0x90] sm:$0xff]
    %v4156 = vld [vmem:[#allocation5 + $0x98] sm:$0xff]
    %v4157 = vld [vmem:[#allocation5 + $0xa0] sm:$0xff]
    %v4158 = vld [vmem:[#allocation5 + $0xa8] sm:$0xff]
    %v4159 = vld [vmem:[#allocation5 + $0xb0] sm:$0xff]
    %v4160 = vld [vmem:[#allocation5 + $0xb8] sm:$0xff]
    %v4161 = vld [vmem:[#allocation5 + $0xc0] sm:$0xff]
    %v4162 = vld [vmem:[#allocation5 + $0xc8] sm:$0xff]
    %v4163 = vld [vmem:[#allocation5 + $0xd0] sm:$0xff]
    %v4164 = vld [vmem:[#allocation5 + $0xd8] sm:$0xff]
    %v4165 = vld [vmem:[#allocation5 + $0xe0] sm:$0xff]
    %v4166 = vld [vmem:[#allocation5 + $0xe8] sm:$0xff]
    %v4167 = vld [vmem:[#allocation5 + $0xf0] sm:$0xff]
    %v4168 = vld [vmem:[#allocation5 + $0xf8] sm:$0xff]
    %v4169 = vld [vmem:[#allocation5 + $0x100] sm:$0xff]
    %v4170 = vld [vmem:[#allocation5 + $0x108] sm:$0xff]
    %v4171 = vld [vmem:[#allocation5 + $0x110] sm:$0xff]
    %v4172 = vld [vmem:[#allocation5 + $0x118] sm:$0xff]
    %v4173 = vld [vmem:[#allocation5 + $0x120] sm:$0xff]
    %v4174 = vld [vmem:[#allocation5 + $0x128] sm:$0xff]
    %v4175 = vld [vmem:[#allocation5 + $0x130] sm:$0xff]
    %v4176 = vld [vmem:[#allocation5 + $0x138] sm:$0xff]
    %v4177 = vld [vmem:[#allocation5 + $0x140] sm:$0xff]
    %v4178 = vld [vmem:[#allocation5 + $0x148] sm:$0xff]
    %v4179 = vld [vmem:[#allocation5 + $0x150] sm:$0xff]
    %v4180 = vld [vmem:[#allocation5 + $0x158] sm:$0xff]
    %v4181 = vld [vmem:[#allocation5 + $0x160] sm:$0xff]
    %v4182 = vld [vmem:[#allocation5 + $0x168] sm:$0xff]
    %v4183 = vld [vmem:[#allocation5 + $0x170] sm:$0xff]
    %v4184 = vld [vmem:[#allocation5 + $0x178] sm:$0xff]
    %v4185 = vld [vmem:[#allocation5 + $0x180] sm:$0xff]
    %v4186 = vld [vmem:[#allocation5 + $0x188] sm:$0xff]
    %v4187 = vld [vmem:[#allocation5 + $0x190] sm:$0xff]
    %v4188 = vld [vmem:[#allocation5 + $0x198] sm:$0xff]
    %v4189 = vld [vmem:[#allocation5 + $0x1a0] sm:$0xff]
    %v4190 = vld [vmem:[#allocation5 + $0x1a8] sm:$0xff]
    %v4191 = vld [vmem:[#allocation5 + $0x1b0] sm:$0xff]
    %v4192 = vld [vmem:[#allocation5 + $0x1b8] sm:$0xff]
    %v4193 = vld [vmem:[#allocation5 + $0x1c0] sm:$0xff]
    %v4194 = vld [vmem:[#allocation5 + $0x1c8] sm:$0xff]
    %v4195 = vld [vmem:[#allocation5 + $0x1d0] sm:$0xff]
    %v4196 = vld [vmem:[#allocation5 + $0x1d8] sm:$0xff]
    %v4197 = vld [vmem:[#allocation5 + $0x1e0] sm:$0xff]
    %v4198 = vld [vmem:[#allocation5 + $0x1e8] sm:$0xff]
    %v4199 = vld [vmem:[#allocation5 + $0x1f0] sm:$0xff]
    %v4200 = vld [vmem:[#allocation5 + $0x1f8] sm:$0xff]
    %v4201 = vld [vmem:[%s5] sm:$0xf]
    %v4203 = vperm.slane %v4201, 0
    %v4204 = vperm.slane %v4201, 1
    %v4205 = vperm.slane %v4201, 2
    %v4206 = vperm.slane %v4201, 3
    %v4275 = vunpack.c.l.b16 %v4137
    %v4276 = vunpack.c.h.b16 %v4137
    %v4277 = vunpack.c.l.b16 %v4138
    %v4278 = vunpack.c.h.b16 %v4138
    %v4279 = vunpack.c.l.b16 %v4139
    %v4280 = vunpack.c.h.b16 %v4139
    %v4281 = vunpack.c.l.b16 %v4140
    %v4282 = vunpack.c.h.b16 %v4140
    %v4283 = vunpack.c.l.b16 %v4141
    %v4284 = vunpack.c.h.b16 %v4141
    %v4285 = vunpack.c.l.b16 %v4142
    %v4286 = vunpack.c.h.b16 %v4142
    %v4287 = vunpack.c.l.b16 %v4143
    %v4288 = vunpack.c.h.b16 %v4143
    %v4289 = vunpack.c.l.b16 %v4144
    %v4290 = vunpack.c.h.b16 %v4144
    %v4291 = vunpack.c.l.b16 %v4145
    %v4292 = vunpack.c.h.b16 %v4145
    %v4293 = vunpack.c.l.b16 %v4146
    %v4294 = vunpack.c.h.b16 %v4146
    %v4295 = vunpack.c.l.b16 %v4147
    %v4296 = vunpack.c.h.b16 %v4147
    %v4297 = vunpack.c.l.b16 %v4148
    %v4298 = vunpack.c.h.b16 %v4148
    %v4299 = vunpack.c.l.b16 %v4149
    %v4300 = vunpack.c.h.b16 %v4149
    %v4301 = vunpack.c.l.b16 %v4150
    %v4302 = vunpack.c.h.b16 %v4150
    %v4303 = vunpack.c.l.b16 %v4151
    %v4304 = vunpack.c.h.b16 %v4151
    %v4305 = vunpack.c.l.b16 %v4152
    %v4306 = vunpack.c.h.b16 %v4152
    %v4307 = vunpack.c.l.b16 %v4153
    %v4308 = vunpack.c.h.b16 %v4153
    %v4309 = vunpack.c.l.b16 %v4154
    %v4310 = vunpack.c.h.b16 %v4154
    %v4311 = vunpack.c.l.b16 %v4155
    %v4312 = vunpack.c.h.b16 %v4155
    %v4313 = vunpack.c.l.b16 %v4156
    %v4314 = vunpack.c.h.b16 %v4156
    %v4315 = vunpack.c.l.b16 %v4157
    %v4316 = vunpack.c.h.b16 %v4157
    %v4317 = vunpack.c.l.b16 %v4158
    %v4318 = vunpack.c.h.b16 %v4158
    %v4319 = vunpack.c.l.b16 %v4159
    %v4320 = vunpack.c.h.b16 %v4159
    %v4321 = vunpack.c.l.b16 %v4160
    %v4322 = vunpack.c.h.b16 %v4160
    %v4323 = vunpack.c.l.b16 %v4161
    %v4324 = vunpack.c.h.b16 %v4161
    %v4325 = vunpack.c.l.b16 %v4162
    %v4326 = vunpack.c.h.b16 %v4162
    %v4327 = vunpack.c.l.b16 %v4163
    %v4328 = vunpack.c.h.b16 %v4163
    %v4329 = vunpack.c.l.b16 %v4164
    %v4330 = vunpack.c.h.b16 %v4164
    %v4331 = vunpack.c.l.b16 %v4165
    %v4332 = vunpack.c.h.b16 %v4165
    %v4333 = vunpack.c.l.b16 %v4166
    %v4334 = vunpack.c.h.b16 %v4166
    %v4335 = vunpack.c.l.b16 %v4167
    %v4336 = vunpack.c.h.b16 %v4167
    %v4337 = vunpack.c.l.b16 %v4168
    %v4338 = vunpack.c.h.b16 %v4168
    %v4339 = vunpack.c.l.b16 %v4169
    %v4340 = vunpack.c.h.b16 %v4169
    %v4341 = vunpack.c.l.b16 %v4170
    %v4342 = vunpack.c.h.b16 %v4170
    %v4343 = vunpack.c.l.b16 %v4171
    %v4344 = vunpack.c.h.b16 %v4171
    %v4345 = vunpack.c.l.b16 %v4172
    %v4346 = vunpack.c.h.b16 %v4172
    %v4347 = vunpack.c.l.b16 %v4173
    %v4348 = vunpack.c.h.b16 %v4173
    %v4349 = vunpack.c.l.b16 %v4174
    %v4350 = vunpack.c.h.b16 %v4174
    %v4351 = vunpack.c.l.b16 %v4175
    %v4352 = vunpack.c.h.b16 %v4175
    %v4353 = vunpack.c.l.b16 %v4176
    %v4354 = vunpack.c.h.b16 %v4176
    %v4355 = vunpack.c.l.b16 %v4177
    %v4356 = vunpack.c.h.b16 %v4177
    %v4357 = vunpack.c.l.b16 %v4178
    %v4358 = vunpack.c.h.b16 %v4178
    %v4359 = vunpack.c.l.b16 %v4179
    %v4360 = vunpack.c.h.b16 %v4179
    %v4361 = vunpack.c.l.b16 %v4180
    %v4362 = vunpack.c.h.b16 %v4180
    %v4363 = vunpack.c.l.b16 %v4181
    %v4364 = vunpack.c.h.b16 %v4181
    %v4365 = vunpack.c.l.b16 %v4182
    %v4366 = vunpack.c.h.b16 %v4182
    %v4367 = vunpack.c.l.b16 %v4183
    %v4368 = vunpack.c.h.b16 %v4183
    %v4369 = vunpack.c.l.b16 %v4184
    %v4370 = vunpack.c.h.b16 %v4184
    %v4371 = vunpack.c.l.b16 %v4185
    %v4372 = vunpack.c.h.b16 %v4185
    %v4373 = vunpack.c.l.b16 %v4186
    %v4374 = vunpack.c.h.b16 %v4186
    %v4375 = vunpack.c.l.b16 %v4187
    %v4376 = vunpack.c.h.b16 %v4187
    %v4377 = vunpack.c.l.b16 %v4188
    %v4378 = vunpack.c.h.b16 %v4188
    %v4379 = vunpack.c.l.b16 %v4189
    %v4380 = vunpack.c.h.b16 %v4189
    %v4381 = vunpack.c.l.b16 %v4190
    %v4382 = vunpack.c.h.b16 %v4190
    %v4383 = vunpack.c.l.b16 %v4191
    %v4384 = vunpack.c.h.b16 %v4191
    %v4385 = vunpack.c.l.b16 %v4192
    %v4386 = vunpack.c.h.b16 %v4192
    %v4387 = vunpack.c.l.b16 %v4193
    %v4388 = vunpack.c.h.b16 %v4193
    %v4389 = vunpack.c.l.b16 %v4194
    %v4390 = vunpack.c.h.b16 %v4194
    %v4391 = vunpack.c.l.b16 %v4195
    %v4392 = vunpack.c.h.b16 %v4195
    %v4393 = vunpack.c.l.b16 %v4196
    %v4394 = vunpack.c.h.b16 %v4196
    %v4395 = vunpack.c.l.b16 %v4197
    %v4396 = vunpack.c.h.b16 %v4197
    %v4397 = vunpack.c.l.b16 %v4198
    %v4398 = vunpack.c.h.b16 %v4198
    %v4399 = vunpack.c.l.b16 %v4199
    %v4400 = vunpack.c.h.b16 %v4199
    %v4401 = vunpack.c.l.b16 %v4200
    %v4402 = vunpack.c.h.b16 %v4200
    %v4403 = vpack.c.b16 %v4279, %v4275
    %v4404 = vpack.c.b16 %v4280, %v4276
    %v4405 = vpack.c.b16 %v4281, %v4277
    %v4406 = vpack.c.b16 %v4282, %v4278
    %v4407 = vpack.c.b16 %v4287, %v4283
    %v4408 = vpack.c.b16 %v4288, %v4284
    %v4409 = vpack.c.b16 %v4289, %v4285
    %v4410 = vpack.c.b16 %v4290, %v4286
    %v4411 = vpack.c.b16 %v4295, %v4291
    %v4412 = vpack.c.b16 %v4296, %v4292
    %v4413 = vpack.c.b16 %v4297, %v4293
    %v4414 = vpack.c.b16 %v4298, %v4294
    %v4415 = vpack.c.b16 %v4303, %v4299
    %v4416 = vpack.c.b16 %v4304, %v4300
    %v4417 = vpack.c.b16 %v4305, %v4301
    %v4418 = vpack.c.b16 %v4306, %v4302
    %v4419 = vpack.c.b16 %v4311, %v4307
    %v4420 = vpack.c.b16 %v4312, %v4308
    %v4421 = vpack.c.b16 %v4313, %v4309
    %v4422 = vpack.c.b16 %v4314, %v4310
    %v4423 = vpack.c.b16 %v4319, %v4315
    %v4424 = vpack.c.b16 %v4320, %v4316
    %v4425 = vpack.c.b16 %v4321, %v4317
    %v4426 = vpack.c.b16 %v4322, %v4318
    %v4427 = vpack.c.b16 %v4327, %v4323
    %v4428 = vpack.c.b16 %v4328, %v4324
    %v4429 = vpack.c.b16 %v4329, %v4325
    %v4430 = vpack.c.b16 %v4330, %v4326
    %v4431 = vpack.c.b16 %v4335, %v4331
    %v4432 = vpack.c.b16 %v4336, %v4332
    %v4433 = vpack.c.b16 %v4337, %v4333
    %v4434 = vpack.c.b16 %v4338, %v4334
    %v4435 = vpack.c.b16 %v4343, %v4339
    %v4436 = vpack.c.b16 %v4344, %v4340
    %v4437 = vpack.c.b16 %v4345, %v4341
    %v4438 = vpack.c.b16 %v4346, %v4342
    %v4439 = vpack.c.b16 %v4351, %v4347
    %v4440 = vpack.c.b16 %v4352, %v4348
    %v4441 = vpack.c.b16 %v4353, %v4349
    %v4442 = vpack.c.b16 %v4354, %v4350
    %v4443 = vpack.c.b16 %v4359, %v4355
    %v4444 = vpack.c.b16 %v4360, %v4356
    %v4445 = vpack.c.b16 %v4361, %v4357
    %v4446 = vpack.c.b16 %v4362, %v4358
    %v4447 = vpack.c.b16 %v4367, %v4363
    %v4448 = vpack.c.b16 %v4368, %v4364
    %v4449 = vpack.c.b16 %v4369, %v4365
    %v4450 = vpack.c.b16 %v4370, %v4366
    %v4451 = vpack.c.b16 %v4375, %v4371
    %v4452 = vpack.c.b16 %v4376, %v4372
    %v4453 = vpack.c.b16 %v4377, %v4373
    %v4454 = vpack.c.b16 %v4378, %v4374
    %v4455 = vpack.c.b16 %v4383, %v4379
    %v4456 = vpack.c.b16 %v4384, %v4380
    %v4457 = vpack.c.b16 %v4385, %v4381
    %v4458 = vpack.c.b16 %v4386, %v4382
    %v4459 = vpack.c.b16 %v4391, %v4387
    %v4460 = vpack.c.b16 %v4392, %v4388
    %v4461 = vpack.c.b16 %v4393, %v4389
    %v4462 = vpack.c.b16 %v4394, %v4390
    %v4463 = vpack.c.b16 %v4399, %v4395
    %v4464 = vpack.c.b16 %v4400, %v4396
    %v4465 = vpack.c.b16 %v4401, %v4397
    %v4466 = vpack.c.b16 %v4402, %v4398
    %4531 = vmatpush.bf16.msra.mxu0 %v4431
    %4532 = vmatpush.bf16.msra.mxu0 %v4427
    %4533 = vmatpush.bf16.msra.mxu0 %v4423
    %4534 = vmatpush.bf16.msra.mxu0 %v4419
    %4535 = vmatpush.bf16.msra.mxu0 %v4415
    %4536 = vmatpush.bf16.msra.mxu0 %v4411
    %4537 = vmatpush.bf16.msra.mxu0 %v4407
    %4538 = vmatpush.bf16.msra.mxu0 %v4403
    %4539 = vmatmul.bf16.gmra.mxu0 %v4135
    %v4540 = vpop.f32.mrf.mxu0
    %v4541 = vadd.f32 %v4203, %v4540
    %v4542 = vpop.f32.mrf.mxu0
    %4543 = vdwg.mxu0
    %4544 = vmatpush.bf16.msra.mxu0 %v4463
    %4545 = vmatpush.bf16.msra.mxu0 %v4459
    %4546 = vmatpush.bf16.msra.mxu0 %v4455
    %4547 = vmatpush.bf16.msra.mxu0 %v4451
    %4548 = vmatpush.bf16.msra.mxu0 %v4447
    %4549 = vmatpush.bf16.msra.mxu0 %v4443
    %4550 = vmatpush.bf16.msra.mxu0 %v4439
    %4551 = vmatpush.bf16.msra.mxu0 %v4435
    %4552 = vmatmul.bf16.gmra.mxu0 %v4136
    %v4553 = vpop.f32.mrf.mxu0
    %v4554 = vadd.f32 %v4541, %v4553
    %v4555 = vpop.f32.mrf.mxu0
    %4556 = vdwg.mxu0
    %4557 = vmatpush.bf16.msra.mxu0 %v4432
    %4558 = vmatpush.bf16.msra.mxu0 %v4428
    %4559 = vmatpush.bf16.msra.mxu0 %v4424
    %4560 = vmatpush.bf16.msra.mxu0 %v4420
    %4561 = vmatpush.bf16.msra.mxu0 %v4416
    %4562 = vmatpush.bf16.msra.mxu0 %v4412
    %4563 = vmatpush.bf16.msra.mxu0 %v4408
    %4564 = vmatpush.bf16.msra.mxu0 %v4404
    %4565 = vmatmul.bf16.gmra.mxu0 %v4135
    %v4566 = vpop.f32.mrf.mxu0
    %v4567 = vadd.f32 %v4204, %v4566
    %v4568 = vpop.f32.mrf.mxu0
    %4569 = vdwg.mxu0
    %4570 = vmatpush.bf16.msra.mxu0 %v4464
    %4571 = vmatpush.bf16.msra.mxu0 %v4460
    %4572 = vmatpush.bf16.msra.mxu0 %v4456
    %4573 = vmatpush.bf16.msra.mxu0 %v4452
    %4574 = vmatpush.bf16.msra.mxu0 %v4448
    %4575 = vmatpush.bf16.msra.mxu0 %v4444
    %4576 = vmatpush.bf16.msra.mxu0 %v4440
    %4577 = vmatpush.bf16.msra.mxu0 %v4436
    %4578 = vmatmul.bf16.gmra.mxu0 %v4136
    %v4579 = vpop.f32.mrf.mxu0
    %v4580 = vadd.f32 %v4567, %v4579
    %v4581 = vpop.f32.mrf.mxu0
    %4582 = vdwg.mxu0
    %4583 = vmatpush.bf16.msra.mxu0 %v4433
    %4584 = vmatpush.bf16.msra.mxu0 %v4429
    %4585 = vmatpush.bf16.msra.mxu0 %v4425
    %4586 = vmatpush.bf16.msra.mxu0 %v4421
    %4587 = vmatpush.bf16.msra.mxu0 %v4417
    %4588 = vmatpush.bf16.msra.mxu0 %v4413
    %4589 = vmatpush.bf16.msra.mxu0 %v4409
    %4590 = vmatpush.bf16.msra.mxu0 %v4405
    %4591 = vmatmul.bf16.gmra.mxu0 %v4135
    %v4592 = vpop.f32.mrf.mxu0
    %v4593 = vadd.f32 %v4205, %v4592
    %v4594 = vpop.f32.mrf.mxu0
    %4595 = vdwg.mxu0
    %4596 = vmatpush.bf16.msra.mxu0 %v4465
    %4597 = vmatpush.bf16.msra.mxu0 %v4461
    %4598 = vmatpush.bf16.msra.mxu0 %v4457
    %4599 = vmatpush.bf16.msra.mxu0 %v4453
    %4600 = vmatpush.bf16.msra.mxu0 %v4449
    %4601 = vmatpush.bf16.msra.mxu0 %v4445
    %4602 = vmatpush.bf16.msra.mxu0 %v4441
    %4603 = vmatpush.bf16.msra.mxu0 %v4437
    %4604 = vmatmul.bf16.gmra.mxu0 %v4136
    %v4605 = vpop.f32.mrf.mxu0
    %v4606 = vadd.f32 %v4593, %v4605
    %v4607 = vpop.f32.mrf.mxu0
    %4608 = vdwg.mxu0
    %4609 = vmatpush.bf16.msra.mxu0 %v4434
    %4610 = vmatpush.bf16.msra.mxu0 %v4430
    %4611 = vmatpush.bf16.msra.mxu0 %v4426
    %4612 = vmatpush.bf16.msra.mxu0 %v4422
    %4613 = vmatpush.bf16.msra.mxu0 %v4418
    %4614 = vmatpush.bf16.msra.mxu0 %v4414
    %4615 = vmatpush.bf16.msra.mxu0 %v4410
    %4616 = vmatpush.bf16.msra.mxu0 %v4406
    %4617 = vmatmul.bf16.gmra.mxu0 %v4135
    %v4618 = vpop.f32.mrf.mxu0
    %v4619 = vadd.f32 %v4206, %v4618
    %v4620 = vpop.f32.mrf.mxu0
    %4621 = vdwg.mxu0
    %4622 = vmatpush.bf16.msra.mxu0 %v4466
    %4623 = vmatpush.bf16.msra.mxu0 %v4462
    %4624 = vmatpush.bf16.msra.mxu0 %v4458
    %4625 = vmatpush.bf16.msra.mxu0 %v4454
    %4626 = vmatpush.bf16.msra.mxu0 %v4450
    %4627 = vmatpush.bf16.msra.mxu0 %v4446
    %4628 = vmatpush.bf16.msra.mxu0 %v4442
    %4629 = vmatpush.bf16.msra.mxu0 %v4438
    %4630 = vmatmul.bf16.gmra.mxu0 %v4136
    %v4631 = vpop.f32.mrf.mxu0
    %v4632 = vadd.f32 %v4619, %v4631
    %v4633 = vpop.f32.mrf.mxu0
    %4634 = vdwg.mxu0
    %v4635 = vmax.f32 %v4554, 0.0
    %v4636 = vmax.f32 %v4580, 0.0
    %v4637 = vmax.f32 %v4606, 0.0
    %v4638 = vmax.f32 %v4632, 0.0
    %v4639 = vpack.c.bf16 %v4635, %v4635
    %v4640 = vpack.c.bf16 %v4636, %v4636
    %v4641 = vpack.c.bf16 %v4637, %v4637
    %v4642 = vpack.c.bf16 %v4638, %v4638
    %v4643 = vld [vmem:[#allocation7] sm:$0xf]
    %v4644 = vld [vmem:[#allocation7 + $0x4] sm:$0xf]
    %v4645 = vld [vmem:[#allocation7 + $0x8] sm:$0xf]
    %v4646 = vld [vmem:[#allocation7 + $0xc] sm:$0xf]
    %v4647 = vld [vmem:[#allocation7 + $0x10] sm:$0xf]
    %v4648 = vld [vmem:[#allocation7 + $0x14] sm:$0xf]
    %v4649 = vld [vmem:[#allocation7 + $0x18] sm:$0xf]
    %v4650 = vld [vmem:[#allocation7 + $0x1c] sm:$0xf]
    %v4651 = vld [vmem:[#allocation7 + $0x20] sm:$0xf]
    %v4652 = vld [vmem:[#allocation7 + $0x24] sm:$0xf]
    %v4653 = vld [vmem:[#allocation7 + $0x28] sm:$0xf]
    %v4654 = vld [vmem:[#allocation7 + $0x2c] sm:$0xf]
    %v4655 = vld [vmem:[#allocation7 + $0x30] sm:$0xf]
    %v4656 = vld [vmem:[#allocation7 + $0x34] sm:$0xf]
    %v4657 = vld [vmem:[#allocation7 + $0x38] sm:$0xf]
    %v4658 = vld [vmem:[#allocation7 + $0x3c] sm:$0xf]
    %v4659 = vld [vmem:[#allocation7 + $0x40] sm:$0xf]
    %v4660 = vld [vmem:[#allocation7 + $0x44] sm:$0xf]
    %v4661 = vld [vmem:[#allocation7 + $0x48] sm:$0xf]
    %v4662 = vld [vmem:[#allocation7 + $0x4c] sm:$0xf]
    %v4663 = vld [vmem:[#allocation7 + $0x50] sm:$0xf]
    %v4664 = vld [vmem:[#allocation7 + $0x54] sm:$0xf]
    %v4665 = vld [vmem:[#allocation7 + $0x58] sm:$0xf]
    %v4666 = vld [vmem:[#allocation7 + $0x5c] sm:$0xf]
    %v4667 = vld [vmem:[#allocation7 + $0x60] sm:$0xf]
    %v4668 = vld [vmem:[#allocation7 + $0x64] sm:$0xf]
    %v4669 = vld [vmem:[#allocation7 + $0x68] sm:$0xf]
    %v4670 = vld [vmem:[#allocation7 + $0x6c] sm:$0xf]
    %v4671 = vld [vmem:[#allocation7 + $0x70] sm:$0xf]
    %v4672 = vld [vmem:[#allocation7 + $0x74] sm:$0xf]
    %v4673 = vld [vmem:[#allocation7 + $0x78] sm:$0xf]
    %v4674 = vld [vmem:[#allocation7 + $0x7c] sm:$0xf]
    %v4675 = vld [vmem:[#allocation7 + $0x80] sm:$0xf]
    %v4676 = vld [vmem:[#allocation7 + $0x84] sm:$0xf]
    %v4677 = vld [vmem:[#allocation7 + $0x88] sm:$0xf]
    %v4678 = vld [vmem:[#allocation7 + $0x8c] sm:$0xf]
    %v4679 = vld [vmem:[#allocation7 + $0x90] sm:$0xf]
    %v4680 = vld [vmem:[#allocation7 + $0x94] sm:$0xf]
    %v4681 = vld [vmem:[#allocation7 + $0x98] sm:$0xf]
    %v4682 = vld [vmem:[#allocation7 + $0x9c] sm:$0xf]
    %v4683 = vld [vmem:[#allocation7 + $0xa0] sm:$0xf]
    %v4684 = vld [vmem:[#allocation7 + $0xa4] sm:$0xf]
    %v4685 = vld [vmem:[#allocation7 + $0xa8] sm:$0xf]
    %v4686 = vld [vmem:[#allocation7 + $0xac] sm:$0xf]
    %v4687 = vld [vmem:[#allocation7 + $0xb0] sm:$0xf]
    %v4688 = vld [vmem:[#allocation7 + $0xb4] sm:$0xf]
    %v4689 = vld [vmem:[#allocation7 + $0xb8] sm:$0xf]
    %v4690 = vld [vmem:[#allocation7 + $0xbc] sm:$0xf]
    %v4691 = vld [vmem:[#allocation7 + $0xc0] sm:$0xf]
    %v4692 = vld [vmem:[#allocation7 + $0xc4] sm:$0xf]
    %v4693 = vld [vmem:[#allocation7 + $0xc8] sm:$0xf]
    %v4694 = vld [vmem:[#allocation7 + $0xcc] sm:$0xf]
    %v4695 = vld [vmem:[#allocation7 + $0xd0] sm:$0xf]
    %v4696 = vld [vmem:[#allocation7 + $0xd4] sm:$0xf]
    %v4697 = vld [vmem:[#allocation7 + $0xd8] sm:$0xf]
    %v4698 = vld [vmem:[#allocation7 + $0xdc] sm:$0xf]
    %v4699 = vld [vmem:[#allocation7 + $0xe0] sm:$0xf]
    %v4700 = vld [vmem:[#allocation7 + $0xe4] sm:$0xf]
    %v4701 = vld [vmem:[#allocation7 + $0xe8] sm:$0xf]
    %v4702 = vld [vmem:[#allocation7 + $0xec] sm:$0xf]
    %v4703 = vld [vmem:[#allocation7 + $0xf0] sm:$0xf]
    %v4704 = vld [vmem:[#allocation7 + $0xf4] sm:$0xf]
    %v4705 = vld [vmem:[#allocation7 + $0xf8] sm:$0xf]
    %v4706 = vld [vmem:[#allocation7 + $0xfc] sm:$0xf]
    %v4707 = vld [vmem:[%s7] sm:$0x1]
    %v4709 = vperm.slane %v4707, 0
    %v4775 = vunpack.c.l.b16 %v4643
    %v4776 = vunpack.c.l.b16 %v4644
    %v4777 = vunpack.c.l.b16 %v4645
    %v4778 = vunpack.c.l.b16 %v4646
    %v4779 = vunpack.c.l.b16 %v4647
    %v4780 = vunpack.c.l.b16 %v4648
    %v4781 = vunpack.c.l.b16 %v4649
    %v4782 = vunpack.c.l.b16 %v4650
    %v4783 = vunpack.c.l.b16 %v4651
    %v4784 = vunpack.c.l.b16 %v4652
    %v4785 = vunpack.c.l.b16 %v4653
    %v4786 = vunpack.c.l.b16 %v4654
    %v4787 = vunpack.c.l.b16 %v4655
    %v4788 = vunpack.c.l.b16 %v4656
    %v4789 = vunpack.c.l.b16 %v4657
    %v4790 = vunpack.c.l.b16 %v4658
    %v4791 = vunpack.c.l.b16 %v4659
    %v4792 = vunpack.c.l.b16 %v4660
    %v4793 = vunpack.c.l.b16 %v4661
    %v4794 = vunpack.c.l.b16 %v4662
    %v4795 = vunpack.c.l.b16 %v4663
    %v4796 = vunpack.c.l.b16 %v4664
    %v4797 = vunpack.c.l.b16 %v4665
    %v4798 = vunpack.c.l.b16 %v4666
    %v4799 = vunpack.c.l.b16 %v4667
    %v4800 = vunpack.c.l.b16 %v4668
    %v4801 = vunpack.c.l.b16 %v4669
    %v4802 = vunpack.c.l.b16 %v4670
    %v4803 = vunpack.c.l.b16 %v4671
    %v4804 = vunpack.c.l.b16 %v4672
    %v4805 = vunpack.c.l.b16 %v4673
    %v4806 = vunpack.c.l.b16 %v4674
    %v4807 = vunpack.c.l.b16 %v4675
    %v4808 = vunpack.c.l.b16 %v4676
    %v4809 = vunpack.c.l.b16 %v4677
    %v4810 = vunpack.c.l.b16 %v4678
    %v4811 = vunpack.c.l.b16 %v4679
    %v4812 = vunpack.c.l.b16 %v4680
    %v4813 = vunpack.c.l.b16 %v4681
    %v4814 = vunpack.c.l.b16 %v4682
    %v4815 = vunpack.c.l.b16 %v4683
    %v4816 = vunpack.c.l.b16 %v4684
    %v4817 = vunpack.c.l.b16 %v4685
    %v4818 = vunpack.c.l.b16 %v4686
    %v4819 = vunpack.c.l.b16 %v4687
    %v4820 = vunpack.c.l.b16 %v4688
    %v4821 = vunpack.c.l.b16 %v4689
    %v4822 = vunpack.c.l.b16 %v4690
    %v4823 = vunpack.c.l.b16 %v4691
    %v4824 = vunpack.c.l.b16 %v4692
    %v4825 = vunpack.c.l.b16 %v4693
    %v4826 = vunpack.c.l.b16 %v4694
    %v4827 = vunpack.c.l.b16 %v4695
    %v4828 = vunpack.c.l.b16 %v4696
    %v4829 = vunpack.c.l.b16 %v4697
    %v4830 = vunpack.c.l.b16 %v4698
    %v4831 = vunpack.c.l.b16 %v4699
    %v4832 = vunpack.c.l.b16 %v4700
    %v4833 = vunpack.c.l.b16 %v4701
    %v4834 = vunpack.c.l.b16 %v4702
    %v4835 = vunpack.c.l.b16 %v4703
    %v4836 = vunpack.c.l.b16 %v4704
    %v4837 = vunpack.c.l.b16 %v4705
    %v4838 = vunpack.c.l.b16 %v4706
    %v4839 = vpack.c.b16 %v4776, %v4775
    %v4840 = vpack.c.b16 %v4778, %v4777
    %v4841 = vpack.c.b16 %v4780, %v4779
    %v4842 = vpack.c.b16 %v4782, %v4781
    %v4843 = vpack.c.b16 %v4784, %v4783
    %v4844 = vpack.c.b16 %v4786, %v4785
    %v4845 = vpack.c.b16 %v4788, %v4787
    %v4846 = vpack.c.b16 %v4790, %v4789
    %v4847 = vpack.c.b16 %v4792, %v4791
    %v4848 = vpack.c.b16 %v4794, %v4793
    %v4849 = vpack.c.b16 %v4796, %v4795
    %v4850 = vpack.c.b16 %v4798, %v4797
    %v4851 = vpack.c.b16 %v4800, %v4799
    %v4852 = vpack.c.b16 %v4802, %v4801
    %v4853 = vpack.c.b16 %v4804, %v4803
    %v4854 = vpack.c.b16 %v4806, %v4805
    %v4855 = vpack.c.b16 %v4808, %v4807
    %v4856 = vpack.c.b16 %v4810, %v4809
    %v4857 = vpack.c.b16 %v4812, %v4811
    %v4858 = vpack.c.b16 %v4814, %v4813
    %v4859 = vpack.c.b16 %v4816, %v4815
    %v4860 = vpack.c.b16 %v4818, %v4817
    %v4861 = vpack.c.b16 %v4820, %v4819
    %v4862 = vpack.c.b16 %v4822, %v4821
    %v4863 = vpack.c.b16 %v4824, %v4823
    %v4864 = vpack.c.b16 %v4826, %v4825
    %v4865 = vpack.c.b16 %v4828, %v4827
    %v4866 = vpack.c.b16 %v4830, %v4829
    %v4867 = vpack.c.b16 %v4832, %v4831
    %v4868 = vpack.c.b16 %v4834, %v4833
    %v4869 = vpack.c.b16 %v4836, %v4835
    %v4870 = vpack.c.b16 %v4838, %v4837
    %4903 = vmatpush.bf16.msra.mxu0 %v4846
    %4904 = vmatpush.bf16.msra.mxu0 %v4845
    %4905 = vmatpush.bf16.msra.mxu0 %v4844
    %4906 = vmatpush.bf16.msra.mxu0 %v4843
    %4907 = vmatpush.bf16.msra.mxu0 %v4842
    %4908 = vmatpush.bf16.msra.mxu0 %v4841
    %4909 = vmatpush.bf16.msra.mxu0 %v4840
    %4910 = vmatpush.bf16.msra.mxu0 %v4839
    %4911 = vmatmul.bf16.gmra.mxu0 %v4639
    %v4912 = vpop.f32.mrf.mxu0
    %v4913 = vadd.f32 %v4709, %v4912
    %v4914 = vpop.f32.mrf.mxu0
    %4915 = vdwg.mxu0
    %4916 = vmatpush.bf16.msra.mxu0 %v4854
    %4917 = vmatpush.bf16.msra.mxu0 %v4853
    %4918 = vmatpush.bf16.msra.mxu0 %v4852
    %4919 = vmatpush.bf16.msra.mxu0 %v4851
    %4920 = vmatpush.bf16.msra.mxu0 %v4850
    %4921 = vmatpush.bf16.msra.mxu0 %v4849
    %4922 = vmatpush.bf16.msra.mxu0 %v4848
    %4923 = vmatpush.bf16.msra.mxu0 %v4847
    %4924 = vmatmul.bf16.gmra.mxu0 %v4640
    %v4925 = vpop.f32.mrf.mxu0
    %v4926 = vadd.f32 %v4913, %v4925
    %v4927 = vpop.f32.mrf.mxu0
    %4928 = vdwg.mxu0
    %4929 = vmatpush.bf16.msra.mxu0 %v4862
    %4930 = vmatpush.bf16.msra.mxu0 %v4861
    %4931 = vmatpush.bf16.msra.mxu0 %v4860
    %4932 = vmatpush.bf16.msra.mxu0 %v4859
    %4933 = vmatpush.bf16.msra.mxu0 %v4858
    %4934 = vmatpush.bf16.msra.mxu0 %v4857
    %4935 = vmatpush.bf16.msra.mxu0 %v4856
    %4936 = vmatpush.bf16.msra.mxu0 %v4855
    %4937 = vmatmul.bf16.gmra.mxu0 %v4641
    %v4938 = vpop.f32.mrf.mxu0
    %v4939 = vadd.f32 %v4926, %v4938
    %v4940 = vpop.f32.mrf.mxu0
    %4941 = vdwg.mxu0
    %4942 = vmatpush.bf16.msra.mxu0 %v4870
    %4943 = vmatpush.bf16.msra.mxu0 %v4869
    %4944 = vmatpush.bf16.msra.mxu0 %v4868
    %4945 = vmatpush.bf16.msra.mxu0 %v4867
    %4946 = vmatpush.bf16.msra.mxu0 %v4866
    %4947 = vmatpush.bf16.msra.mxu0 %v4865
    %4948 = vmatpush.bf16.msra.mxu0 %v4864
    %4949 = vmatpush.bf16.msra.mxu0 %v4863
    %4950 = vmatmul.bf16.gmra.mxu0 %v4642
    %v4951 = vpop.f32.mrf.mxu0
    %v4952 = vadd.f32 %v4939, %v4951
    %v4953 = vpop.f32.mrf.mxu0
    %4954 = vdwg.mxu0
    %4955 = vst [vmem:[%s9] sm:$0xff] %v4952
    // Predicated region
    $region46: #{iest_classifier_forward.1} parent=1 // pred_check
      _
    $region47: #{iest_classifier_forward.1} parent=1 // pred_check_branch
      %4957 = sbr.rel (0) target = $region49
    $region48: #{iest_classifier_forward.1} parent=1 // pred_region
      _
    $region49: #{iest_classifier_forward.1} parent=1 // pred_fallthru
      _
    // Predicated region
    $region50: #{iest_classifier_forward.1} parent=1 // pred_check
      _
    $region51: #{iest_classifier_forward.1} parent=1 // pred_check_branch
      %4959 = sbr.rel (0) target = $region53
    $region52: #{iest_classifier_forward.1} parent=1 // pred_region
      _
    $region53: #{iest_classifier_forward.1} parent=1 // pred_fallthru
      _
    // Predicated region
    $region54: #{iest_classifier_forward.1} parent=1 // pred_check
      _
    $region55: #{iest_classifier_forward.1} parent=1 // pred_check_branch
      %4961 = sbr.rel (0) target = $region57
    $region56: #{iest_classifier_forward.1} parent=1 // pred_region
      _
    $region57: #{iest_classifier_forward.1} parent=1 // pred_fallthru
      _
    // Predicated region
    $region58: #{iest_classifier_forward.1} parent=1 // pred_check
      _
    $region59: #{iest_classifier_forward.1} parent=1 // pred_check_branch
      %4963 = sbr.rel (0) target = $region61
    $region60: #{iest_classifier_forward.1} parent=1 // pred_region
      _
    $region61: #{iest_classifier_forward.1} parent=1 // pred_fallthru
      _
    %4964 = vsyncpa [#allocation4], 1
    %4965 = vsyncpa [#allocation6], 1

</llo_original>
